<compile_context>
chip_gen: v7x
topology: tpu7x:2x2x1
jax: 0.10.0
libtpu: 0.0.40
codegen_flags: <defaults>
</compile_context>

<pallas_src>
import functools
import math

import jax
import jax.numpy as jnp
import numpy as np
from jax.experimental import pallas as pl
from jax.experimental.pallas import tpu as pltpu


def clip_layer_kernel(
    x_ref,
    ln1w_ref, ln1b_ref,
    wq_ref, bq_ref,
    wk_ref, bk_ref,
    wv_ref, bv_ref,
    wo_ref, bo_ref,
    ln2w_ref, ln2b_ref,
    w1_ref, b1_ref,
    w2_ref, b2_ref,
    out_ref,
    *,
    n_head: int,
    d_head: int,
    eps: float,
    n_f_chunks: int,
):
    Bt, S, D = x_ref.shape
    H, dh = n_head, d_head
    M = Bt * S

    x = x_ref[...].reshape(M, D)                         # (M, D) f32, leading-dim merge only

    # ---------------- LayerNorm 1 (f32) ----------------
    mu = jnp.mean(x, axis=-1, keepdims=True)
    xc = x - mu
    var = jnp.mean(xc * xc, axis=-1, keepdims=True)
    xn = xc * jax.lax.rsqrt(var + eps) * ln1w_ref[0] + ln1b_ref[0]
    xn_bf = xn.astype(jnp.bfloat16)

    # ------------- Q/K/V projections (bf16 MXU, f32 accumulate) -------------
    # 1/sqrt(d_head) is already folded into wq / bq on the host.
    q = (jnp.dot(xn_bf, wq_ref[...], preferred_element_type=jnp.float32)
         + bq_ref[0]).astype(jnp.bfloat16)
    k = (jnp.dot(xn_bf, wk_ref[...], preferred_element_type=jnp.float32)
         + bk_ref[0]).astype(jnp.bfloat16)
    v = (jnp.dot(xn_bf, wv_ref[...], preferred_element_type=jnp.float32)
         + bv_ref[0]).astype(jnp.bfloat16)
    q3 = q.reshape(Bt, S, D)                             # bf16, cast once before any slicing
    k3 = k.reshape(Bt, S, D)
    v3 = v.reshape(Bt, S, D)

    # Additive causal bias, computed once.
    row = jax.lax.broadcasted_iota(jnp.int32, (S, S), 0)
    col = jax.lax.broadcasted_iota(jnp.int32, (S, S), 1)
    bias = jnp.where(col > row, jnp.float32(-1e30), jnp.float32(0.0))     # (S, S)

    # ------------- Per-head causal attention, batched over Bt -------------
    # Head outputs fold straight back through the out-projection:
    #   attn = sum_h ctx_h @ Wo[h]   (no concat / stack / relayout of ctx).
    attn = jnp.zeros((M, D), jnp.float32)
    for h in range(H):
        c0 = h * dh
        qh = q3[:, :, c0:c0 + dh]                        # (Bt, S, dh) bf16
        kh = k3[:, :, c0:c0 + dh]
        vh = v3[:, :, c0:c0 + dh]

        s = jnp.einsum('bqd,bkd->bqk', qh, kh,
                       preferred_element_type=jnp.float32)               # (Bt, S, S) f32
        s = s + bias[None]
        m = jnp.max(s, axis=-1, keepdims=True)
        p = jnp.exp(s - m)
        p = p * pl.reciprocal(jnp.sum(p, axis=-1, keepdims=True), approx=True)

        ctx = jnp.einsum('bqk,bkd->bqd', p.astype(jnp.bfloat16), vh,
                         preferred_element_type=jnp.float32)             # (Bt, S, dh) f32
        attn = attn + jnp.dot(ctx.reshape(M, dh).astype(jnp.bfloat16), wo_ref[h],
                              preferred_element_type=jnp.float32)
    attn = attn + bo_ref[0]

    # residual 1 (f32)
    x1 = x + attn

    # ---------------- LayerNorm 2 (f32) ----------------
    mu2 = jnp.mean(x1, axis=-1, keepdims=True)
    xc2 = x1 - mu2
    var2 = jnp.mean(xc2 * xc2, axis=-1, keepdims=True)
    x2n = xc2 * jax.lax.rsqrt(var2 + eps) * ln2w_ref[0] + ln2b_ref[0]
    x2n_bf = x2n.astype(jnp.bfloat16)

    # -------- MLP with QuickGELU, streamed over d_ff chunks (n_f_chunks==1 => fused) --------
    d_ff = w1_ref.shape[1]
    fc = d_ff // n_f_chunks
    b1_full = b1_ref[0]
    h2 = jnp.zeros((M, D), jnp.float32)
    for c in range(n_f_chunks):
        sl = slice(c * fc, (c + 1) * fc)
        h1 = jnp.dot(x2n_bf, w1_ref[:, sl],
                     preferred_element_type=jnp.float32) + b1_full[sl]
        h1 = h1 * jax.nn.sigmoid(1.702 * h1)             # QuickGELU (f32)
        h2 = h2 + jnp.dot(h1.astype(jnp.bfloat16), w2_ref[sl, :],
                          preferred_element_type=jnp.float32)
    h2 = h2 + b2_ref[0]

    # residual 2
    out_ref[...] = (x1 + h2).reshape(Bt, S, D)


def _vmem_capacity_bytes() -> int:
    try:
        cap = int(pltpu.get_tpu_info().vmem_capacity_bytes)
        if cap > 0:
            return cap
    except Exception:
        pass
    return 128 * 1024 * 1024


def clip_layer(x, params, *, n_head, eps=1e-5):
    """x: (B, S, D) float32.  params: PyTorch-convention weights (W: (out, in), b: (out,))."""
    B, S, D = x.shape
    assert D % n_head == 0
    d_head = D // n_head
    d_ff = 4 * D
    scale = 1.0 / math.sqrt(d_head)

    # ---- sequence padding to a sublane multiple (causality keeps pad rows inert) ----
    S_pad = ((S + 7) // 8) * 8
    xp = x if S_pad == S else jnp.pad(x, ((0, 0), (0, S_pad - S), (0, 0)))
    # TODO(synk): lane-pad D to a multiple of 128 (needs masked LayerNorm stats) for odd
    # widths; real CLIP widths (512/768/1024) already satisfy this.

    wdt = jnp.bfloat16
    wqkv = jnp.asarray(params["wqkv"], jnp.float32)            # (3D, D) PyTorch (out, in)
    wq_t = (wqkv[0 * D:1 * D].T * scale).astype(wdt)           # (D, D) in->out, scale folded
    wk_t = wqkv[1 * D:2 * D].T.astype(wdt)
    wv_t = wqkv[2 * D:3 * D].T.astype(wdt)
    bqkv = jnp.asarray(params["bqkv"], jnp.float32)
    bq = (bqkv[0 * D:1 * D] * scale).reshape(1, D)
    bk = bqkv[1 * D:2 * D].reshape(1, D)
    bv = bqkv[2 * D:3 * D].reshape(1, D)

    wo_h = jnp.asarray(params["wo"], jnp.float32).T.astype(wdt).reshape(n_head, d_head, D)
    bo = jnp.asarray(params["bo"], jnp.float32).reshape(1, D)
    w1_t = jnp.asarray(params["w1"], jnp.float32).T.astype(wdt)   # (D, 4D)
    b1 = jnp.asarray(params["b1"], jnp.float32).reshape(1, d_ff)
    w2_t = jnp.asarray(params["w2"], jnp.float32).T.astype(wdt)   # (4D, D)
    b2 = jnp.asarray(params["b2"], jnp.float32).reshape(1, D)
    ln1w = jnp.asarray(params["ln1_w"], jnp.float32).reshape(1, D)
    ln1b = jnp.asarray(params["ln1_b"], jnp.float32).reshape(1, D)
    ln2w = jnp.asarray(params["ln2_w"], jnp.float32).reshape(1, D)
    ln2b = jnp.asarray(params["ln2_b"], jnp.float32).reshape(1, D)

    # ---- per-generation sizing ----
    vmem_cap = _vmem_capacity_bytes()
    small_vmem = vmem_cap < (100 * 1024 * 1024)        # v7x-like: 64 MiB/core, 2 TCs/chip

    # MLP chunking over d_ff: stream 1024/512-wide column blocks on small-VMEM parts.
    n_f_chunks = 1
    if small_vmem:
        for fc in (1024, 512):
            if d_ff > fc and d_ff % fc == 0:
                n_f_chunks = d_ff // fc
                break

    # Batch-block selection: fatten M = Bt * S_pad up to a per-generation row target;
    # on 2-TC parts keep at least 2 grid steps so both TensorCores get work.
    row_target = 512 if small_vmem else 1024
    bt_cap = B
    if small_vmem and B >= 2:
        bt_cap = max(1, B // 2)
    Bt = 1
    for cand in range(1, bt_cap + 1):
        if B % cand == 0 and cand * S_pad <= max(row_target, S_pad):
            Bt = cand
    grid = (B // Bt,)

    kernel = functools.partial(clip_layer_kernel, n_head=n_head, d_head=d_head,
                               eps=eps, n_f_chunks=n_f_chunks)

    operands = (xp, ln1w, ln1b, wq_t, bq, wk_t, bk, wv_t, bv,
                wo_h, bo, ln2w, ln2b, w1_t, b1, w2_t, b2)

    # ---- cost estimate + VMEM budget ----
    M_total = B * S_pad
    flops = (3 * 2 * M_total * D * D + 2 * M_total * D * D
             + 2 * 2 * M_total * D * d_ff
             + 4 * B * n_head * S_pad * S_pad * d_head)
    transcendentals = B * n_head * S_pad * S_pad + M_total * d_ff + 4 * M_total
    weight_bytes = 2 * (wq_t.size + wk_t.size + wv_t.size + wo_h.size + w1_t.size + w2_t.size)
    small_bytes = 4 * (9 * D + d_ff)
    bytes_accessed = 2 * M_total * D * 4 + weight_bytes + small_bytes
    cost = pl.CostEstimate(flops=int(flops), transcendentals=int(transcendentals),
                           bytes_accessed=int(bytes_accessed))

    M_blk = Bt * S_pad
    fc_cols = d_ff // n_f_chunks
    act_bytes = 4 * M_blk * (8 * D + fc_cols) + 4 * 2 * Bt * S_pad * S_pad
    io_bytes = 2 * 2 * M_blk * D * 4                    # double-buffered x / out blocks
    est_vmem = 2 * (weight_bytes + small_bytes) + io_bytes + act_bytes
    vmem_limit = int(min(max(2 * est_vmem, 32 * 1024 * 1024), (vmem_cap * 4) // 5))

    x_spec = pl.BlockSpec((Bt, S_pad, D), lambda b: (b, 0, 0))
    out_spec = pl.BlockSpec((Bt, S_pad, D), lambda b: (b, 0, 0))

    def invoke(single_buffer_weights: bool):
        def fixed(shape):
            nd = len(shape)
            if single_buffer_weights:
                return pl.BlockSpec(shape, lambda b, _nd=nd: (0,) * _nd,
                                    pipeline_mode=pl.Buffered(buffer_count=1))
            return pl.BlockSpec(shape, lambda b, _nd=nd: (0,) * _nd)

        in_specs = [
            x_spec,
            fixed((1, D)), fixed((1, D)),                 # ln1 w, b
            fixed((D, D)), fixed((1, D)),                 # Wq^T (scaled), bq (scaled)
            fixed((D, D)), fixed((1, D)),                 # Wk^T, bk
            fixed((D, D)), fixed((1, D)),                 # Wv^T, bv
            fixed((n_head, d_head, D)), fixed((1, D)),    # Wo^T split per head, bo
            fixed((1, D)), fixed((1, D)),                 # ln2 w, b
            fixed((D, d_ff)), fixed((1, d_ff)),           # W1^T, b1
            fixed((d_ff, D)), fixed((1, D)),              # W2^T, b2
        ]
        out = pl.pallas_call(
            kernel,
            out_shape=jax.ShapeDtypeStruct((B, S_pad, D), jnp.float32),
            grid_spec=pltpu.PrefetchScalarGridSpec(
                num_scalar_prefetch=0,
                grid=grid,
                in_specs=in_specs,
                out_specs=out_spec,
            ),
            compiler_params=pltpu.CompilerParams(
                dimension_semantics=("parallel",),
                vmem_limit_bytes=vmem_limit,
            ),
            cost_estimate=cost,
        )(*operands)
        return jax.block_until_ready(out)

    try:
        # Grid-invariant weights: single-buffer them (constant index_map => a second
        # pipeline buffer is pure VMEM waste; ~13-24 MiB bf16 for real CLIP widths).
        out = invoke(True)
    except Exception:
        # Fallback for JAX builds without BlockSpec.pipeline_mode / Buffered(1).
        out = invoke(False)

    return out[:, :S, :] if S_pad != S else out


def clip_layer_reference(x, params, *, n_head):
    """Pure-JAX f32 reference mirroring the PyTorch forward exactly."""
    B, S, D = x.shape
    d_head = D // n_head
    eps = 1e-5

    def ln(z, w, b):
        mu = jnp.mean(z, axis=-1, keepdims=True)
        var = jnp.mean((z - mu) ** 2, axis=-1, keepdims=True)
        return (z - mu) / jnp.sqrt(var + eps) * w + b

    residue = x
    h = ln(x, params["ln1_w"], params["ln1_b"])
    qkv = h @ params["wqkv"].T + params["bqkv"]
    q, k, v = jnp.split(qkv, 3, axis=-1)
    q = q.reshape(B, S, n_head, d_head).transpose(0, 2, 1, 3)
    k = k.reshape(B, S, n_head, d_head).transpose(0, 2, 1, 3)
    v = v.reshape(B, S, n_head, d_head).transpose(0, 2, 1, 3)
    w = jnp.einsum("bhqd,bhkd->bhqk", q, k)
    mask = jnp.triu(jnp.ones((S, S), dtype=bool), 1)
    w = jnp.where(mask, -jnp.inf, w) / math.sqrt(d_head)
    w = jax.nn.softmax(w, axis=-1)
    o = jnp.einsum("bhqk,bhkd->bhqd", w, v).transpose(0, 2, 1, 3).reshape(B, S, D)
    o = o @ params["wo"].T + params["bo"]
    x1 = residue + o

    residue = x1
    h = ln(x1, params["ln2_w"], params["ln2_b"])
    h = h @ params["w1"].T + params["b1"]
    h = h * jax.nn.sigmoid(1.702 * h)
    h = h @ params["w2"].T + params["b2"]
    return residue + h


if __name__ == "__main__":
    B, S, D, NH = 2, 8, 32, 4

    key = jax.random.PRNGKey(0)
    ks = jax.random.split(key, 12)
    sc = 0.02
    params = {
        "ln1_w": 1.0 + 0.1 * jax.random.normal(ks[9], (D,), jnp.float32),
        "ln1_b": 0.1 * jax.random.normal(ks[10], (D,), jnp.float32),
        "wqkv": sc * jax.random.normal(ks[0], (3 * D, D), jnp.float32),
        "bqkv": sc * jax.random.normal(ks[1], (3 * D,), jnp.float32),
        "wo": sc * jax.random.normal(ks[2], (D, D), jnp.float32),
        "bo": sc * jax.random.normal(ks[3], (D,), jnp.float32),
        "ln2_w": 1.0 + 0.1 * jax.random.normal(ks[11], (D,), jnp.float32),
        "ln2_b": 0.1 * jax.random.normal(ks[7], (D,), jnp.float32),
        "w1": sc * jax.random.normal(ks[4], (4 * D, D), jnp.float32),
        "b1": sc * jax.random.normal(ks[5], (4 * D,), jnp.float32),
        "w2": sc * jax.random.normal(ks[6], (D, 4 * D), jnp.float32),
        "b2": sc * jax.random.normal(ks[7], (D,), jnp.float32),
    }
    x = jax.random.normal(ks[8], (B, S, D), jnp.float32)

    out = jax.block_until_ready(clip_layer(x, params, n_head=NH))
    ref = jax.block_until_ready(clip_layer_reference(x, params, n_head=NH))

    assert out.shape == (B, S, D)
    # bf16 matmuls + approx-reciprocal softmax vs f32 reference -> loose-ish tolerance.
    np.testing.assert_allclose(np.asarray(out), np.asarray(ref), rtol=2e-2, atol=2e-2)
    print("KERNEL_OK")
</pallas_src>

<mosaic_0001>
module attributes {stable_mosaic.version = 11 : i64} {
  func.func @clip_layer_kernel(%arg0: i32, %arg1: memref<2x8x32xf32, #tpu.memory_space<vmem>>, %arg2: memref<1x32xf32, #tpu.memory_space<vmem>>, %arg3: memref<1x32xf32, #tpu.memory_space<vmem>>, %arg4: memref<32x32xbf16, #tpu.memory_space<vmem>>, %arg5: memref<1x32xf32, #tpu.memory_space<vmem>>, %arg6: memref<32x32xbf16, #tpu.memory_space<vmem>>, %arg7: memref<1x32xf32, #tpu.memory_space<vmem>>, %arg8: memref<32x32xbf16, #tpu.memory_space<vmem>>, %arg9: memref<1x32xf32, #tpu.memory_space<vmem>>, %arg10: memref<4x8x32xbf16, #tpu.memory_space<vmem>>, %arg11: memref<1x32xf32, #tpu.memory_space<vmem>>, %arg12: memref<1x32xf32, #tpu.memory_space<vmem>>, %arg13: memref<1x32xf32, #tpu.memory_space<vmem>>, %arg14: memref<32x128xbf16, #tpu.memory_space<vmem>>, %arg15: memref<1x128xf32, #tpu.memory_space<vmem>>, %arg16: memref<128x32xbf16, #tpu.memory_space<vmem>>, %arg17: memref<1x32xf32, #tpu.memory_space<vmem>>, %arg18: memref<2x8x32xf32, #tpu.memory_space<vmem>>) attributes {dimension_semantics = [#tpu.dimension_semantics<parallel>], iteration_bounds = array<i64: 1>, scalar_prefetch = 0 : i64, scratch_operands = 0 : i64, tpu.core_type = #tpu.core_type<tc>, window_params = [{transform_indices = @transform_0, window_bounds = array<i64: 2, 8, 32>}, {pipeline_mode = #tpu.pipeline_mode<synchronous>, transform_indices = @transform_1, window_bounds = array<i64: 1, 32>}, {pipeline_mode = #tpu.pipeline_mode<synchronous>, transform_indices = @transform_2, window_bounds = array<i64: 1, 32>}, {pipeline_mode = #tpu.pipeline_mode<synchronous>, transform_indices = @transform_3, window_bounds = array<i64: 32, 32>}, {pipeline_mode = #tpu.pipeline_mode<synchronous>, transform_indices = @transform_4, window_bounds = array<i64: 1, 32>}, {pipeline_mode = #tpu.pipeline_mode<synchronous>, transform_indices = @transform_5, window_bounds = array<i64: 32, 32>}, {pipeline_mode = #tpu.pipeline_mode<synchronous>, transform_indices = @transform_6, window_bounds = array<i64: 1, 32>}, {pipeline_mode = #tpu.pipeline_mode<synchronous>, transform_indices = @transform_7, window_bounds = array<i64: 32, 32>}, {pipeline_mode = #tpu.pipeline_mode<synchronous>, transform_indices = @transform_8, window_bounds = array<i64: 1, 32>}, {pipeline_mode = #tpu.pipeline_mode<synchronous>, transform_indices = @transform_9, window_bounds = array<i64: 4, 8, 32>}, {pipeline_mode = #tpu.pipeline_mode<synchronous>, transform_indices = @transform_10, window_bounds = array<i64: 1, 32>}, {pipeline_mode = #tpu.pipeline_mode<synchronous>, transform_indices = @transform_11, window_bounds = array<i64: 1, 32>}, {pipeline_mode = #tpu.pipeline_mode<synchronous>, transform_indices = @transform_12, window_bounds = array<i64: 1, 32>}, {pipeline_mode = #tpu.pipeline_mode<synchronous>, transform_indices = @transform_13, window_bounds = array<i64: 32, 128>}, {pipeline_mode = #tpu.pipeline_mode<synchronous>, transform_indices = @transform_14, window_bounds = array<i64: 1, 128>}, {pipeline_mode = #tpu.pipeline_mode<synchronous>, transform_indices = @transform_15, window_bounds = array<i64: 128, 32>}, {pipeline_mode = #tpu.pipeline_mode<synchronous>, transform_indices = @transform_16, window_bounds = array<i64: 1, 32>}, {transform_indices = @transform_17, window_bounds = array<i64: 2, 8, 32>}]} {
    %c0 = arith.constant 0 : index
    %c0_0 = arith.constant 0 : index
    %c0_1 = arith.constant 0 : index
    %0 = vector.load %arg1[%c0, %c0_0, %c0_1] : memref<2x8x32xf32, #tpu.memory_space<vmem>>, vector<2x8x32xf32>
    %1 = vector.shape_cast %0 : vector<2x8x32xf32> to vector<16x32xf32>
    %cst = arith.constant dense<0.000000e+00> : vector<16xf32>
    %2 = vector.multi_reduction <add>, %1, %cst [1] : vector<16x32xf32> to vector<16xf32>
    %3 = vector.shape_cast %2 : vector<16xf32> to vector<16x1xf32>
    %cst_2 = arith.constant 3.200000e+01 : f32
    %4 = vector.broadcast %cst_2 : f32 to vector<16x1xf32>
    %5 = arith.divf %3, %4 : vector<16x1xf32>
    %6 = vector.broadcast %5 : vector<16x1xf32> to vector<16x32xf32>
    %7 = arith.subf %1, %6 : vector<16x32xf32>
    %8 = arith.mulf %7, %7 : vector<16x32xf32>
    %cst_3 = arith.constant dense<0.000000e+00> : vector<16xf32>
    %9 = vector.multi_reduction <add>, %8, %cst_3 [1] : vector<16x32xf32> to vector<16xf32>
    %10 = vector.shape_cast %9 : vector<16xf32> to vector<16x1xf32>
    %cst_4 = arith.constant 3.200000e+01 : f32
    %11 = vector.broadcast %cst_4 : f32 to vector<16x1xf32>
    %12 = arith.divf %10, %11 : vector<16x1xf32>
    %cst_5 = arith.constant 9.99999974E-6 : f32
    %13 = vector.broadcast %cst_5 : f32 to vector<16x1xf32>
    %14 = arith.addf %12, %13 : vector<16x1xf32>
    %15 = math.rsqrt %14 : vector<16x1xf32>
    %16 = vector.broadcast %15 : vector<16x1xf32> to vector<16x32xf32>
    %17 = arith.mulf %7, %16 : vector<16x32xf32>
    %c0_6 = arith.constant 0 : index
    %c0_7 = arith.constant 0 : index
    %18 = vector.load %arg2[%c0_6, %c0_7] : memref<1x32xf32, #tpu.memory_space<vmem>>, vector<1x32xf32>
    %19 = vector.shape_cast %18 : vector<1x32xf32> to vector<32xf32>
    %20 = vector.shape_cast %19 : vector<32xf32> to vector<1x32xf32>
    %21 = vector.broadcast %20 : vector<1x32xf32> to vector<16x32xf32>
    %22 = arith.mulf %17, %21 : vector<16x32xf32>
    %c0_8 = arith.constant 0 : index
    %c0_9 = arith.constant 0 : index
    %23 = vector.load %arg3[%c0_8, %c0_9] : memref<1x32xf32, #tpu.memory_space<vmem>>, vector<1x32xf32>
    %24 = vector.shape_cast %23 : vector<1x32xf32> to vector<32xf32>
    %25 = vector.shape_cast %24 : vector<32xf32> to vector<1x32xf32>
    %26 = vector.broadcast %25 : vector<1x32xf32> to vector<16x32xf32>
    %27 = arith.addf %22, %26 : vector<16x32xf32>
    %28 = arith.truncf %27 : vector<16x32xf32> to vector<16x32xbf16>
    %c0_10 = arith.constant 0 : index
    %c0_11 = arith.constant 0 : index
    %29 = vector.load %arg4[%c0_10, %c0_11] : memref<32x32xbf16, #tpu.memory_space<vmem>>, vector<32x32xbf16>
    %cst_12 = arith.constant dense<0.000000e+00> : vector<16x32xf32>
    %30 = tpu.matmul %28, %29, %cst_12 {dimension_numbers = #tpu.dot_dimension_numbers<[1], [0], [0], [1], [0, 0, 1, 1], [], []>} : vector<16x32xbf16>, vector<32x32xbf16>, vector<16x32xf32> -> vector<16x32xf32>
    %c0_13 = arith.constant 0 : index
    %c0_14 = arith.constant 0 : index
    %31 = vector.load %arg5[%c0_13, %c0_14] : memref<1x32xf32, #tpu.memory_space<vmem>>, vector<1x32xf32>
    %32 = vector.shape_cast %31 : vector<1x32xf32> to vector<32xf32>
    %33 = vector.shape_cast %32 : vector<32xf32> to vector<1x32xf32>
    %34 = vector.broadcast %33 : vector<1x32xf32> to vector<16x32xf32>
    %35 = arith.addf %30, %34 : vector<16x32xf32>
    %36 = arith.truncf %35 : vector<16x32xf32> to vector<16x32xbf16>
    %c0_15 = arith.constant 0 : index
    %c0_16 = arith.constant 0 : index
    %37 = vector.load %arg6[%c0_15, %c0_16] : memref<32x32xbf16, #tpu.memory_space<vmem>>, vector<32x32xbf16>
    %cst_17 = arith.constant dense<0.000000e+00> : vector<16x32xf32>
    %38 = tpu.matmul %28, %37, %cst_17 {dimension_numbers = #tpu.dot_dimension_numbers<[1], [0], [0], [1], [0, 0, 1, 1], [], []>} : vector<16x32xbf16>, vector<32x32xbf16>, vector<16x32xf32> -> vector<16x32xf32>
    %c0_18 = arith.constant 0 : index
    %c0_19 = arith.constant 0 : index
    %39 = vector.load %arg7[%c0_18, %c0_19] : memref<1x32xf32, #tpu.memory_space<vmem>>, vector<1x32xf32>
    %40 = vector.shape_cast %39 : vector<1x32xf32> to vector<32xf32>
    %41 = vector.shape_cast %40 : vector<32xf32> to vector<1x32xf32>
    %42 = vector.broadcast %41 : vector<1x32xf32> to vector<16x32xf32>
    %43 = arith.addf %38, %42 : vector<16x32xf32>
    %44 = arith.truncf %43 : vector<16x32xf32> to vector<16x32xbf16>
    %c0_20 = arith.constant 0 : index
    %c0_21 = arith.constant 0 : index
    %45 = vector.load %arg8[%c0_20, %c0_21] : memref<32x32xbf16, #tpu.memory_space<vmem>>, vector<32x32xbf16>
    %cst_22 = arith.constant dense<0.000000e+00> : vector<16x32xf32>
    %46 = tpu.matmul %28, %45, %cst_22 {dimension_numbers = #tpu.dot_dimension_numbers<[1], [0], [0], [1], [0, 0, 1, 1], [], []>} : vector<16x32xbf16>, vector<32x32xbf16>, vector<16x32xf32> -> vector<16x32xf32>
    %c0_23 = arith.constant 0 : index
    %c0_24 = arith.constant 0 : index
    %47 = vector.load %arg9[%c0_23, %c0_24] : memref<1x32xf32, #tpu.memory_space<vmem>>, vector<1x32xf32>
    %48 = vector.shape_cast %47 : vector<1x32xf32> to vector<32xf32>
    %49 = vector.shape_cast %48 : vector<32xf32> to vector<1x32xf32>
    %50 = vector.broadcast %49 : vector<1x32xf32> to vector<16x32xf32>
    %51 = arith.addf %46, %50 : vector<16x32xf32>
    %52 = arith.truncf %51 : vector<16x32xf32> to vector<16x32xbf16>
    %53 = vector.shape_cast %36 : vector<16x32xbf16> to vector<2x8x32xbf16>
    %54 = vector.shape_cast %44 : vector<16x32xbf16> to vector<2x8x32xbf16>
    %55 = vector.shape_cast %52 : vector<16x32xbf16> to vector<2x8x32xbf16>
    %56 = tpu.iota {dimensions = array<i32: 0>} : vector<8x8xi32>
    %57 = tpu.iota {dimensions = array<i32: 1>} : vector<8x8xi32>
    %58 = arith.cmpi sgt, %57, %56 : vector<8x8xi32>
    %cst_25 = arith.constant -1.000000e+30 : f32
    %cst_26 = arith.constant 0.000000e+00 : f32
    %59 = vector.broadcast %cst_25 : f32 to vector<8x8xf32>
    %60 = vector.broadcast %cst_26 : f32 to vector<8x8xf32>
    %61 = arith.select %58, %59, %60 : vector<8x8xi1>, vector<8x8xf32>
    %cst_27 = arith.constant 0.000000e+00 : f32
    %62 = vector.broadcast %cst_27 : f32 to vector<16x32xf32>
    %63 = vector.extract_strided_slice %53 {offsets = [0, 0, 0], sizes = [2, 8, 8], strides = [1, 1, 1]} : vector<2x8x32xbf16> to vector<2x8x8xbf16>
    %64 = vector.extract_strided_slice %54 {offsets = [0, 0, 0], sizes = [2, 8, 8], strides = [1, 1, 1]} : vector<2x8x32xbf16> to vector<2x8x8xbf16>
    %65 = vector.extract_strided_slice %55 {offsets = [0, 0, 0], sizes = [2, 8, 8], strides = [1, 1, 1]} : vector<2x8x32xbf16> to vector<2x8x8xbf16>
    "tpu.trace_start"() <{level = 10 : i32, message = "bqd,bkd->bqk"}> : () -> ()
    %cst_28 = arith.constant dense<0.000000e+00> : vector<2x8x8xf32>
    %66 = tpu.matmul %63, %64, %cst_28 {dimension_numbers = #tpu.dot_dimension_numbers<[2], [2], [1], [1], [0, 0, 0, 1, 1, 1], [0], [0]>} : vector<2x8x8xbf16>, vector<2x8x8xbf16>, vector<2x8x8xf32> -> vector<2x8x8xf32>
    "tpu.trace_stop"() : () -> ()
    %67 = vector.shape_cast %61 : vector<8x8xf32> to vector<1x8x8xf32>
    %68 = vector.broadcast %67 : vector<1x8x8xf32> to vector<2x8x8xf32>
    %69 = arith.addf %66, %68 : vector<2x8x8xf32>
    %cst_29 = arith.constant dense<0xFF800000> : vector<2x8xf32>
    %70 = vector.multi_reduction <maximumf>, %69, %cst_29 [2] : vector<2x8x8xf32> to vector<2x8xf32>
    %71 = vector.shape_cast %70 : vector<2x8xf32> to vector<2x8x1xf32>
    %72 = vector.broadcast %71 : vector<2x8x1xf32> to vector<2x8x8xf32>
    %73 = arith.subf %69, %72 : vector<2x8x8xf32>
    %74 = math.exp %73 : vector<2x8x8xf32>
    %cst_30 = arith.constant dense<0.000000e+00> : vector<2x8xf32>
    %75 = vector.multi_reduction <add>, %74, %cst_30 [2] : vector<2x8x8xf32> to vector<2x8xf32>
    %76 = vector.shape_cast %75 : vector<2x8xf32> to vector<2x8x1xf32>
    %77 = tpu.reciprocal %76 {approx = true} : vector<2x8x1xf32> -> vector<2x8x1xf32>
    %78 = vector.broadcast %77 : vector<2x8x1xf32> to vector<2x8x8xf32>
    %79 = arith.mulf %74, %78 : vector<2x8x8xf32>
    %80 = arith.truncf %79 : vector<2x8x8xf32> to vector<2x8x8xbf16>
    "tpu.trace_start"() <{level = 10 : i32, message = "bqk,bkd->bqd"}> : () -> ()
    %cst_31 = arith.constant dense<0.000000e+00> : vector<2x8x8xf32>
    %81 = tpu.matmul %80, %65, %cst_31 {dimension_numbers = #tpu.dot_dimension_numbers<[2], [1], [1], [2], [0, 0, 0, 1, 1, 2], [0], [0]>} : vector<2x8x8xbf16>, vector<2x8x8xbf16>, vector<2x8x8xf32> -> vector<2x8x8xf32>
    "tpu.trace_stop"() : () -> ()
    %82 = vector.shape_cast %81 : vector<2x8x8xf32> to vector<16x8xf32>
    %83 = arith.truncf %82 : vector<16x8xf32> to vector<16x8xbf16>
    %c0_32 = arith.constant 0 : index
    %c0_33 = arith.constant 0 : index
    %c0_34 = arith.constant 0 : index
    %84 = vector.load %arg10[%c0_32, %c0_33, %c0_34] : memref<4x8x32xbf16, #tpu.memory_space<vmem>>, vector<1x8x32xbf16>
    %85 = vector.shape_cast %84 : vector<1x8x32xbf16> to vector<8x32xbf16>
    %cst_35 = arith.constant dense<0.000000e+00> : vector<16x32xf32>
    %86 = tpu.matmul %83, %85, %cst_35 {dimension_numbers = #tpu.dot_dimension_numbers<[1], [0], [0], [1], [0, 0, 1, 1], [], []>} : vector<16x8xbf16>, vector<8x32xbf16>, vector<16x32xf32> -> vector<16x32xf32>
    %87 = arith.addf %62, %86 : vector<16x32xf32>
    %88 = vector.extract_strided_slice %53 {offsets = [0, 0, 8], sizes = [2, 8, 8], strides = [1, 1, 1]} : vector<2x8x32xbf16> to vector<2x8x8xbf16>
    %89 = vector.extract_strided_slice %54 {offsets = [0, 0, 8], sizes = [2, 8, 8], strides = [1, 1, 1]} : vector<2x8x32xbf16> to vector<2x8x8xbf16>
    %90 = vector.extract_strided_slice %55 {offsets = [0, 0, 8], sizes = [2, 8, 8], strides = [1, 1, 1]} : vector<2x8x32xbf16> to vector<2x8x8xbf16>
    "tpu.trace_start"() <{level = 10 : i32, message = "bqd,bkd->bqk"}> : () -> ()
    %cst_36 = arith.constant dense<0.000000e+00> : vector<2x8x8xf32>
    %91 = tpu.matmul %88, %89, %cst_36 {dimension_numbers = #tpu.dot_dimension_numbers<[2], [2], [1], [1], [0, 0, 0, 1, 1, 1], [0], [0]>} : vector<2x8x8xbf16>, vector<2x8x8xbf16>, vector<2x8x8xf32> -> vector<2x8x8xf32>
    "tpu.trace_stop"() : () -> ()
    %92 = vector.shape_cast %61 : vector<8x8xf32> to vector<1x8x8xf32>
    %93 = vector.broadcast %92 : vector<1x8x8xf32> to vector<2x8x8xf32>
    %94 = arith.addf %91, %93 : vector<2x8x8xf32>
    %cst_37 = arith.constant dense<0xFF800000> : vector<2x8xf32>
    %95 = vector.multi_reduction <maximumf>, %94, %cst_37 [2] : vector<2x8x8xf32> to vector<2x8xf32>
    %96 = vector.shape_cast %95 : vector<2x8xf32> to vector<2x8x1xf32>
    %97 = vector.broadcast %96 : vector<2x8x1xf32> to vector<2x8x8xf32>
    %98 = arith.subf %94, %97 : vector<2x8x8xf32>
    %99 = math.exp %98 : vector<2x8x8xf32>
    %cst_38 = arith.constant dense<0.000000e+00> : vector<2x8xf32>
    %100 = vector.multi_reduction <add>, %99, %cst_38 [2] : vector<2x8x8xf32> to vector<2x8xf32>
    %101 = vector.shape_cast %100 : vector<2x8xf32> to vector<2x8x1xf32>
    %102 = tpu.reciprocal %101 {approx = true} : vector<2x8x1xf32> -> vector<2x8x1xf32>
    %103 = vector.broadcast %102 : vector<2x8x1xf32> to vector<2x8x8xf32>
    %104 = arith.mulf %99, %103 : vector<2x8x8xf32>
    %105 = arith.truncf %104 : vector<2x8x8xf32> to vector<2x8x8xbf16>
    "tpu.trace_start"() <{level = 10 : i32, message = "bqk,bkd->bqd"}> : () -> ()
    %cst_39 = arith.constant dense<0.000000e+00> : vector<2x8x8xf32>
    %106 = tpu.matmul %105, %90, %cst_39 {dimension_numbers = #tpu.dot_dimension_numbers<[2], [1], [1], [2], [0, 0, 0, 1, 1, 2], [0], [0]>} : vector<2x8x8xbf16>, vector<2x8x8xbf16>, vector<2x8x8xf32> -> vector<2x8x8xf32>
    "tpu.trace_stop"() : () -> ()
    %107 = vector.shape_cast %106 : vector<2x8x8xf32> to vector<16x8xf32>
    %108 = arith.truncf %107 : vector<16x8xf32> to vector<16x8xbf16>
    %c1 = arith.constant 1 : index
    %c0_40 = arith.constant 0 : index
    %c0_41 = arith.constant 0 : index
    %109 = vector.load %arg10[%c1, %c0_40, %c0_41] : memref<4x8x32xbf16, #tpu.memory_space<vmem>>, vector<1x8x32xbf16>
    %110 = vector.shape_cast %109 : vector<1x8x32xbf16> to vector<8x32xbf16>
    %cst_42 = arith.constant dense<0.000000e+00> : vector<16x32xf32>
    %111 = tpu.matmul %108, %110, %cst_42 {dimension_numbers = #tpu.dot_dimension_numbers<[1], [0], [0], [1], [0, 0, 1, 1], [], []>} : vector<16x8xbf16>, vector<8x32xbf16>, vector<16x32xf32> -> vector<16x32xf32>
    %112 = arith.addf %87, %111 : vector<16x32xf32>
    %113 = vector.extract_strided_slice %53 {offsets = [0, 0, 16], sizes = [2, 8, 8], strides = [1, 1, 1]} : vector<2x8x32xbf16> to vector<2x8x8xbf16>
    %114 = vector.extract_strided_slice %54 {offsets = [0, 0, 16], sizes = [2, 8, 8], strides = [1, 1, 1]} : vector<2x8x32xbf16> to vector<2x8x8xbf16>
    %115 = vector.extract_strided_slice %55 {offsets = [0, 0, 16], sizes = [2, 8, 8], strides = [1, 1, 1]} : vector<2x8x32xbf16> to vector<2x8x8xbf16>
    "tpu.trace_start"() <{level = 10 : i32, message = "bqd,bkd->bqk"}> : () -> ()
    %cst_43 = arith.constant dense<0.000000e+00> : vector<2x8x8xf32>
    %116 = tpu.matmul %113, %114, %cst_43 {dimension_numbers = #tpu.dot_dimension_numbers<[2], [2], [1], [1], [0, 0, 0, 1, 1, 1], [0], [0]>} : vector<2x8x8xbf16>, vector<2x8x8xbf16>, vector<2x8x8xf32> -> vector<2x8x8xf32>
    "tpu.trace_stop"() : () -> ()
    %117 = vector.shape_cast %61 : vector<8x8xf32> to vector<1x8x8xf32>
    %118 = vector.broadcast %117 : vector<1x8x8xf32> to vector<2x8x8xf32>
    %119 = arith.addf %116, %118 : vector<2x8x8xf32>
    %cst_44 = arith.constant dense<0xFF800000> : vector<2x8xf32>
    %120 = vector.multi_reduction <maximumf>, %119, %cst_44 [2] : vector<2x8x8xf32> to vector<2x8xf32>
    %121 = vector.shape_cast %120 : vector<2x8xf32> to vector<2x8x1xf32>
    %122 = vector.broadcast %121 : vector<2x8x1xf32> to vector<2x8x8xf32>
    %123 = arith.subf %119, %122 : vector<2x8x8xf32>
    %124 = math.exp %123 : vector<2x8x8xf32>
    %cst_45 = arith.constant dense<0.000000e+00> : vector<2x8xf32>
    %125 = vector.multi_reduction <add>, %124, %cst_45 [2] : vector<2x8x8xf32> to vector<2x8xf32>
    %126 = vector.shape_cast %125 : vector<2x8xf32> to vector<2x8x1xf32>
    %127 = tpu.reciprocal %126 {approx = true} : vector<2x8x1xf32> -> vector<2x8x1xf32>
    %128 = vector.broadcast %127 : vector<2x8x1xf32> to vector<2x8x8xf32>
    %129 = arith.mulf %124, %128 : vector<2x8x8xf32>
    %130 = arith.truncf %129 : vector<2x8x8xf32> to vector<2x8x8xbf16>
    "tpu.trace_start"() <{level = 10 : i32, message = "bqk,bkd->bqd"}> : () -> ()
    %cst_46 = arith.constant dense<0.000000e+00> : vector<2x8x8xf32>
    %131 = tpu.matmul %130, %115, %cst_46 {dimension_numbers = #tpu.dot_dimension_numbers<[2], [1], [1], [2], [0, 0, 0, 1, 1, 2], [0], [0]>} : vector<2x8x8xbf16>, vector<2x8x8xbf16>, vector<2x8x8xf32> -> vector<2x8x8xf32>
    "tpu.trace_stop"() : () -> ()
    %132 = vector.shape_cast %131 : vector<2x8x8xf32> to vector<16x8xf32>
    %133 = arith.truncf %132 : vector<16x8xf32> to vector<16x8xbf16>
    %c2 = arith.constant 2 : index
    %c0_47 = arith.constant 0 : index
    %c0_48 = arith.constant 0 : index
    %134 = vector.load %arg10[%c2, %c0_47, %c0_48] : memref<4x8x32xbf16, #tpu.memory_space<vmem>>, vector<1x8x32xbf16>
    %135 = vector.shape_cast %134 : vector<1x8x32xbf16> to vector<8x32xbf16>
    %cst_49 = arith.constant dense<0.000000e+00> : vector<16x32xf32>
    %136 = tpu.matmul %133, %135, %cst_49 {dimension_numbers = #tpu.dot_dimension_numbers<[1], [0], [0], [1], [0, 0, 1, 1], [], []>} : vector<16x8xbf16>, vector<8x32xbf16>, vector<16x32xf32> -> vector<16x32xf32>
    %137 = arith.addf %112, %136 : vector<16x32xf32>
    %138 = vector.extract_strided_slice %53 {offsets = [0, 0, 24], sizes = [2, 8, 8], strides = [1, 1, 1]} : vector<2x8x32xbf16> to vector<2x8x8xbf16>
    %139 = vector.extract_strided_slice %54 {offsets = [0, 0, 24], sizes = [2, 8, 8], strides = [1, 1, 1]} : vector<2x8x32xbf16> to vector<2x8x8xbf16>
    %140 = vector.extract_strided_slice %55 {offsets = [0, 0, 24], sizes = [2, 8, 8], strides = [1, 1, 1]} : vector<2x8x32xbf16> to vector<2x8x8xbf16>
    "tpu.trace_start"() <{level = 10 : i32, message = "bqd,bkd->bqk"}> : () -> ()
    %cst_50 = arith.constant dense<0.000000e+00> : vector<2x8x8xf32>
    %141 = tpu.matmul %138, %139, %cst_50 {dimension_numbers = #tpu.dot_dimension_numbers<[2], [2], [1], [1], [0, 0, 0, 1, 1, 1], [0], [0]>} : vector<2x8x8xbf16>, vector<2x8x8xbf16>, vector<2x8x8xf32> -> vector<2x8x8xf32>
    "tpu.trace_stop"() : () -> ()
    %142 = vector.shape_cast %61 : vector<8x8xf32> to vector<1x8x8xf32>
    %143 = vector.broadcast %142 : vector<1x8x8xf32> to vector<2x8x8xf32>
    %144 = arith.addf %141, %143 : vector<2x8x8xf32>
    %cst_51 = arith.constant dense<0xFF800000> : vector<2x8xf32>
    %145 = vector.multi_reduction <maximumf>, %144, %cst_51 [2] : vector<2x8x8xf32> to vector<2x8xf32>
    %146 = vector.shape_cast %145 : vector<2x8xf32> to vector<2x8x1xf32>
    %147 = vector.broadcast %146 : vector<2x8x1xf32> to vector<2x8x8xf32>
    %148 = arith.subf %144, %147 : vector<2x8x8xf32>
    %149 = math.exp %148 : vector<2x8x8xf32>
    %cst_52 = arith.constant dense<0.000000e+00> : vector<2x8xf32>
    %150 = vector.multi_reduction <add>, %149, %cst_52 [2] : vector<2x8x8xf32> to vector<2x8xf32>
    %151 = vector.shape_cast %150 : vector<2x8xf32> to vector<2x8x1xf32>
    %152 = tpu.reciprocal %151 {approx = true} : vector<2x8x1xf32> -> vector<2x8x1xf32>
    %153 = vector.broadcast %152 : vector<2x8x1xf32> to vector<2x8x8xf32>
    %154 = arith.mulf %149, %153 : vector<2x8x8xf32>
    %155 = arith.truncf %154 : vector<2x8x8xf32> to vector<2x8x8xbf16>
    "tpu.trace_start"() <{level = 10 : i32, message = "bqk,bkd->bqd"}> : () -> ()
    %cst_53 = arith.constant dense<0.000000e+00> : vector<2x8x8xf32>
    %156 = tpu.matmul %155, %140, %cst_53 {dimension_numbers = #tpu.dot_dimension_numbers<[2], [1], [1], [2], [0, 0, 0, 1, 1, 2], [0], [0]>} : vector<2x8x8xbf16>, vector<2x8x8xbf16>, vector<2x8x8xf32> -> vector<2x8x8xf32>
    "tpu.trace_stop"() : () -> ()
    %157 = vector.shape_cast %156 : vector<2x8x8xf32> to vector<16x8xf32>
    %158 = arith.truncf %157 : vector<16x8xf32> to vector<16x8xbf16>
    %c3 = arith.constant 3 : index
    %c0_54 = arith.constant 0 : index
    %c0_55 = arith.constant 0 : index
    %159 = vector.load %arg10[%c3, %c0_54, %c0_55] : memref<4x8x32xbf16, #tpu.memory_space<vmem>>, vector<1x8x32xbf16>
    %160 = vector.shape_cast %159 : vector<1x8x32xbf16> to vector<8x32xbf16>
    %cst_56 = arith.constant dense<0.000000e+00> : vector<16x32xf32>
    %161 = tpu.matmul %158, %160, %cst_56 {dimension_numbers = #tpu.dot_dimension_numbers<[1], [0], [0], [1], [0, 0, 1, 1], [], []>} : vector<16x8xbf16>, vector<8x32xbf16>, vector<16x32xf32> -> vector<16x32xf32>
    %162 = arith.addf %137, %161 : vector<16x32xf32>
    %c0_57 = arith.constant 0 : index
    %c0_58 = arith.constant 0 : index
    %163 = vector.load %arg11[%c0_57, %c0_58] : memref<1x32xf32, #tpu.memory_space<vmem>>, vector<1x32xf32>
    %164 = vector.shape_cast %163 : vector<1x32xf32> to vector<32xf32>
    %165 = vector.shape_cast %164 : vector<32xf32> to vector<1x32xf32>
    %166 = vector.broadcast %165 : vector<1x32xf32> to vector<16x32xf32>
    %167 = arith.addf %162, %166 : vector<16x32xf32>
    %168 = arith.addf %1, %167 : vector<16x32xf32>
    %cst_59 = arith.constant dense<0.000000e+00> : vector<16xf32>
    %169 = vector.multi_reduction <add>, %168, %cst_59 [1] : vector<16x32xf32> to vector<16xf32>
    %170 = vector.shape_cast %169 : vector<16xf32> to vector<16x1xf32>
    %cst_60 = arith.constant 3.200000e+01 : f32
    %171 = vector.broadcast %cst_60 : f32 to vector<16x1xf32>
    %172 = arith.divf %170, %171 : vector<16x1xf32>
    %173 = vector.broadcast %172 : vector<16x1xf32> to vector<16x32xf32>
    %174 = arith.subf %168, %173 : vector<16x32xf32>
    %175 = arith.mulf %174, %174 : vector<16x32xf32>
    %cst_61 = arith.constant dense<0.000000e+00> : vector<16xf32>
    %176 = vector.multi_reduction <add>, %175, %cst_61 [1] : vector<16x32xf32> to vector<16xf32>
    %177 = vector.shape_cast %176 : vector<16xf32> to vector<16x1xf32>
    %cst_62 = arith.constant 3.200000e+01 : f32
    %178 = vector.broadcast %cst_62 : f32 to vector<16x1xf32>
    %179 = arith.divf %177, %178 : vector<16x1xf32>
    %cst_63 = arith.constant 9.99999974E-6 : f32
    %180 = vector.broadcast %cst_63 : f32 to vector<16x1xf32>
    %181 = arith.addf %179, %180 : vector<16x1xf32>
    %182 = math.rsqrt %181 : vector<16x1xf32>
    %183 = vector.broadcast %182 : vector<16x1xf32> to vector<16x32xf32>
    %184 = arith.mulf %174, %183 : vector<16x32xf32>
    %c0_64 = arith.constant 0 : index
    %c0_65 = arith.constant 0 : index
    %185 = vector.load %arg12[%c0_64, %c0_65] : memref<1x32xf32, #tpu.memory_space<vmem>>, vector<1x32xf32>
    %186 = vector.shape_cast %185 : vector<1x32xf32> to vector<32xf32>
    %187 = vector.shape_cast %186 : vector<32xf32> to vector<1x32xf32>
    %188 = vector.broadcast %187 : vector<1x32xf32> to vector<16x32xf32>
    %189 = arith.mulf %184, %188 : vector<16x32xf32>
    %c0_66 = arith.constant 0 : index
    %c0_67 = arith.constant 0 : index
    %190 = vector.load %arg13[%c0_66, %c0_67] : memref<1x32xf32, #tpu.memory_space<vmem>>, vector<1x32xf32>
    %191 = vector.shape_cast %190 : vector<1x32xf32> to vector<32xf32>
    %192 = vector.shape_cast %191 : vector<32xf32> to vector<1x32xf32>
    %193 = vector.broadcast %192 : vector<1x32xf32> to vector<16x32xf32>
    %194 = arith.addf %189, %193 : vector<16x32xf32>
    %195 = arith.truncf %194 : vector<16x32xf32> to vector<16x32xbf16>
    %c0_68 = arith.constant 0 : index
    %c0_69 = arith.constant 0 : index
    %196 = vector.load %arg15[%c0_68, %c0_69] : memref<1x128xf32, #tpu.memory_space<vmem>>, vector<1x128xf32>
    %197 = vector.shape_cast %196 : vector<1x128xf32> to vector<128xf32>
    %cst_70 = arith.constant 0.000000e+00 : f32
    %198 = vector.broadcast %cst_70 : f32 to vector<16x32xf32>
    %c0_71 = arith.constant 0 : index
    %c0_72 = arith.constant 0 : index
    %199 = vector.load %arg14[%c0_71, %c0_72] : memref<32x128xbf16, #tpu.memory_space<vmem>>, vector<32x128xbf16>
    %cst_73 = arith.constant dense<0.000000e+00> : vector<16x128xf32>
    %200 = tpu.matmul %195, %199, %cst_73 {dimension_numbers = #tpu.dot_dimension_numbers<[1], [0], [0], [1], [0, 0, 1, 1], [], []>} : vector<16x32xbf16>, vector<32x128xbf16>, vector<16x128xf32> -> vector<16x128xf32>
    %201 = vector.shape_cast %197 : vector<128xf32> to vector<1x128xf32>
    %202 = vector.broadcast %201 : vector<1x128xf32> to vector<16x128xf32>
    %203 = arith.addf %200, %202 : vector<16x128xf32>
    %cst_74 = arith.constant 1.702000e+00 : f32
    %204 = vector.broadcast %cst_74 : f32 to vector<16x128xf32>
    %205 = arith.mulf %204, %203 : vector<16x128xf32>
    %206 = arith.negf %205 : vector<16x128xf32>
    %207 = math.exp %206 : vector<16x128xf32>
    %cst_75 = arith.constant 1.000000e+00 : f32
    %208 = vector.broadcast %cst_75 : f32 to vector<16x128xf32>
    %209 = arith.addf %208, %207 : vector<16x128xf32>
    %210 = arith.divf %208, %209 : vector<16x128xf32>
    %211 = arith.mulf %203, %210 : vector<16x128xf32>
    %212 = arith.truncf %211 : vector<16x128xf32> to vector<16x128xbf16>
    %c0_76 = arith.constant 0 : index
    %c0_77 = arith.constant 0 : index
    %213 = vector.load %arg16[%c0_76, %c0_77] : memref<128x32xbf16, #tpu.memory_space<vmem>>, vector<128x32xbf16>
    %cst_78 = arith.constant dense<0.000000e+00> : vector<16x32xf32>
    %214 = tpu.matmul %212, %213, %cst_78 {dimension_numbers = #tpu.dot_dimension_numbers<[1], [0], [0], [1], [0, 0, 1, 1], [], []>} : vector<16x128xbf16>, vector<128x32xbf16>, vector<16x32xf32> -> vector<16x32xf32>
    %215 = arith.addf %198, %214 : vector<16x32xf32>
    %c0_79 = arith.constant 0 : index
    %c0_80 = arith.constant 0 : index
    %216 = vector.load %arg17[%c0_79, %c0_80] : memref<1x32xf32, #tpu.memory_space<vmem>>, vector<1x32xf32>
    %217 = vector.shape_cast %216 : vector<1x32xf32> to vector<32xf32>
    %218 = vector.shape_cast %217 : vector<32xf32> to vector<1x32xf32>
    %219 = vector.broadcast %218 : vector<1x32xf32> to vector<16x32xf32>
    %220 = arith.addf %215, %219 : vector<16x32xf32>
    %221 = arith.addf %168, %220 : vector<16x32xf32>
    %222 = vector.shape_cast %221 : vector<16x32xf32> to vector<2x8x32xf32>
    %c0_81 = arith.constant 0 : index
    %c0_82 = arith.constant 0 : index
    %c0_83 = arith.constant 0 : index
    %223 = vector.load %arg18[%c0_81, %c0_82, %c0_83] : memref<2x8x32xf32, #tpu.memory_space<vmem>>, vector<2x8x32xf32>
    tpu.vector_store %arg18[%c0_81, %c0_82, %c0_83], %222 {strides = array<i32>} : memref<2x8x32xf32, #tpu.memory_space<vmem>>, vector<2x8x32xf32>,
    return
  }
  func.func @transform_0(%arg0: i32) -> (i32, i32, i32) {
    %c0_i32 = arith.constant 0 : i32
    %c0_i32_0 = arith.constant 0 : i32
    %c0_i32_1 = arith.constant 0 : i32
    return %arg0, %c0_i32, %c0_i32_0 : i32, i32, i32
  }
  func.func @transform_1(%arg0: i32) -> (i32, i32) {
    %c0_i32 = arith.constant 0 : i32
    %c0_i32_0 = arith.constant 0 : i32
    %c0_i32_1 = arith.constant 0 : i32
    return %c0_i32, %c0_i32_0 : i32, i32
  }
  func.func @transform_2(%arg0: i32) -> (i32, i32) {
    %c0_i32 = arith.constant 0 : i32
    %c0_i32_0 = arith.constant 0 : i32
    %c0_i32_1 = arith.constant 0 : i32
    return %c0_i32, %c0_i32_0 : i32, i32
  }
  func.func @transform_3(%arg0: i32) -> (i32, i32) {
    %c0_i32 = arith.constant 0 : i32
    %c0_i32_0 = arith.constant 0 : i32
    %c0_i32_1 = arith.constant 0 : i32
    return %c0_i32, %c0_i32_0 : i32, i32
  }
  func.func @transform_4(%arg0: i32) -> (i32, i32) {
    %c0_i32 = arith.constant 0 : i32
    %c0_i32_0 = arith.constant 0 : i32
    %c0_i32_1 = arith.constant 0 : i32
    return %c0_i32, %c0_i32_0 : i32, i32
  }
  func.func @transform_5(%arg0: i32) -> (i32, i32) {
    %c0_i32 = arith.constant 0 : i32
    %c0_i32_0 = arith.constant 0 : i32
    %c0_i32_1 = arith.constant 0 : i32
    return %c0_i32, %c0_i32_0 : i32, i32
  }
  func.func @transform_6(%arg0: i32) -> (i32, i32) {
    %c0_i32 = arith.constant 0 : i32
    %c0_i32_0 = arith.constant 0 : i32
    %c0_i32_1 = arith.constant 0 : i32
    return %c0_i32, %c0_i32_0 : i32, i32
  }
  func.func @transform_7(%arg0: i32) -> (i32, i32) {
    %c0_i32 = arith.constant 0 : i32
    %c0_i32_0 = arith.constant 0 : i32
    %c0_i32_1 = arith.constant 0 : i32
    return %c0_i32, %c0_i32_0 : i32, i32
  }
  func.func @transform_8(%arg0: i32) -> (i32, i32) {
    %c0_i32 = arith.constant 0 : i32
    %c0_i32_0 = arith.constant 0 : i32
    %c0_i32_1 = arith.constant 0 : i32
    return %c0_i32, %c0_i32_0 : i32, i32
  }
  func.func @transform_9(%arg0: i32) -> (i32, i32, i32) {
    %c0_i32 = arith.constant 0 : i32
    %c0_i32_0 = arith.constant 0 : i32
    %c0_i32_1 = arith.constant 0 : i32
    %c0_i32_2 = arith.constant 0 : i32
    return %c0_i32, %c0_i32_0, %c0_i32_1 : i32, i32, i32
  }
  func.func @transform_10(%arg0: i32) -> (i32, i32) {
    %c0_i32 = arith.constant 0 : i32
    %c0_i32_0 = arith.constant 0 : i32
    %c0_i32_1 = arith.constant 0 : i32
    return %c0_i32, %c0_i32_0 : i32, i32
  }
  func.func @transform_11(%arg0: i32) -> (i32, i32) {
    %c0_i32 = arith.constant 0 : i32
    %c0_i32_0 = arith.constant 0 : i32
    %c0_i32_1 = arith.constant 0 : i32
    return %c0_i32, %c0_i32_0 : i32, i32
  }
  func.func @transform_12(%arg0: i32) -> (i32, i32) {
    %c0_i32 = arith.constant 0 : i32
    %c0_i32_0 = arith.constant 0 : i32
    %c0_i32_1 = arith.constant 0 : i32
    return %c0_i32, %c0_i32_0 : i32, i32
  }
  func.func @transform_13(%arg0: i32) -> (i32, i32) {
    %c0_i32 = arith.constant 0 : i32
    %c0_i32_0 = arith.constant 0 : i32
    %c0_i32_1 = arith.constant 0 : i32
    return %c0_i32, %c0_i32_0 : i32, i32
  }
  func.func @transform_14(%arg0: i32) -> (i32, i32) {
    %c0_i32 = arith.constant 0 : i32
    %c0_i32_0 = arith.constant 0 : i32
    %c0_i32_1 = arith.constant 0 : i32
    return %c0_i32, %c0_i32_0 : i32, i32
  }
  func.func @transform_15(%arg0: i32) -> (i32, i32) {
    %c0_i32 = arith.constant 0 : i32
    %c0_i32_0 = arith.constant 0 : i32
    %c0_i32_1 = arith.constant 0 : i32
    return %c0_i32, %c0_i32_0 : i32, i32
  }
  func.func @transform_16(%arg0: i32) -> (i32, i32) {
    %c0_i32 = arith.constant 0 : i32
    %c0_i32_0 = arith.constant 0 : i32
    %c0_i32_1 = arith.constant 0 : i32
    return %c0_i32, %c0_i32_0 : i32, i32
  }
  func.func @transform_17(%arg0: i32) -> (i32, i32, i32) {
    %c0_i32 = arith.constant 0 : i32
    %c0_i32_0 = arith.constant 0 : i32
    %c0_i32_1 = arith.constant 0 : i32
    return %arg0, %c0_i32, %c0_i32_0 : i32, i32, i32
  }
}

module attributes {stable_mosaic.version = 11 : i64} {
  func.func @clip_layer_kernel(%arg0: i32, %arg1: memref<2x8x32xf32, #tpu.memory_space<vmem>>, %arg2: memref<1x32xf32, #tpu.memory_space<vmem>>, %arg3: memref<1x32xf32, #tpu.memory_space<vmem>>, %arg4: memref<32x32xbf16, #tpu.memory_space<vmem>>, %arg5: memref<1x32xf32, #tpu.memory_space<vmem>>, %arg6: memref<32x32xbf16, #tpu.memory_space<vmem>>, %arg7: memref<1x32xf32, #tpu.memory_space<vmem>>, %arg8: memref<32x32xbf16, #tpu.memory_space<vmem>>, %arg9: memref<1x32xf32, #tpu.memory_space<vmem>>, %arg10: memref<4x8x32xbf16, #tpu.memory_space<vmem>>, %arg11: memref<1x32xf32, #tpu.memory_space<vmem>>, %arg12: memref<1x32xf32, #tpu.memory_space<vmem>>, %arg13: memref<1x32xf32, #tpu.memory_space<vmem>>, %arg14: memref<32x128xbf16, #tpu.memory_space<vmem>>, %arg15: memref<1x128xf32, #tpu.memory_space<vmem>>, %arg16: memref<128x32xbf16, #tpu.memory_space<vmem>>, %arg17: memref<1x32xf32, #tpu.memory_space<vmem>>, %arg18: memref<2x8x32xf32, #tpu.memory_space<vmem>>) attributes {dimension_semantics = [#tpu.dimension_semantics<parallel>], iteration_bounds = array<i64: 1>, scalar_prefetch = 0 : i64, scratch_operands = 0 : i64, tpu.core_type = #tpu.core_type<tc>, window_params = [{transform_indices = @transform_0, window_bounds = array<i64: 2, 8, 32>}, {pipeline_mode = #tpu.pipeline_mode<synchronous>, transform_indices = @transform_1, window_bounds = array<i64: 1, 32>}, {pipeline_mode = #tpu.pipeline_mode<synchronous>, transform_indices = @transform_2, window_bounds = array<i64: 1, 32>}, {pipeline_mode = #tpu.pipeline_mode<synchronous>, transform_indices = @transform_3, window_bounds = array<i64: 32, 32>}, {pipeline_mode = #tpu.pipeline_mode<synchronous>, transform_indices = @transform_4, window_bounds = array<i64: 1, 32>}, {pipeline_mode = #tpu.pipeline_mode<synchronous>, transform_indices = @transform_5, window_bounds = array<i64: 32, 32>}, {pipeline_mode = #tpu.pipeline_mode<synchronous>, transform_indices = @transform_6, window_bounds = array<i64: 1, 32>}, {pipeline_mode = #tpu.pipeline_mode<synchronous>, transform_indices = @transform_7, window_bounds = array<i64: 32, 32>}, {pipeline_mode = #tpu.pipeline_mode<synchronous>, transform_indices = @transform_8, window_bounds = array<i64: 1, 32>}, {pipeline_mode = #tpu.pipeline_mode<synchronous>, transform_indices = @transform_9, window_bounds = array<i64: 4, 8, 32>}, {pipeline_mode = #tpu.pipeline_mode<synchronous>, transform_indices = @transform_10, window_bounds = array<i64: 1, 32>}, {pipeline_mode = #tpu.pipeline_mode<synchronous>, transform_indices = @transform_11, window_bounds = array<i64: 1, 32>}, {pipeline_mode = #tpu.pipeline_mode<synchronous>, transform_indices = @transform_12, window_bounds = array<i64: 1, 32>}, {pipeline_mode = #tpu.pipeline_mode<synchronous>, transform_indices = @transform_13, window_bounds = array<i64: 32, 128>}, {pipeline_mode = #tpu.pipeline_mode<synchronous>, transform_indices = @transform_14, window_bounds = array<i64: 1, 128>}, {pipeline_mode = #tpu.pipeline_mode<synchronous>, transform_indices = @transform_15, window_bounds = array<i64: 128, 32>}, {pipeline_mode = #tpu.pipeline_mode<synchronous>, transform_indices = @transform_16, window_bounds = array<i64: 1, 32>}, {transform_indices = @transform_17, window_bounds = array<i64: 2, 8, 32>}]} {
    %c0 = arith.constant 0 : index
    %c0_0 = arith.constant 0 : index
    %c0_1 = arith.constant 0 : index
    %0 = vector.load %arg1[%c0, %c0_0, %c0_1] : memref<2x8x32xf32, #tpu.memory_space<vmem>>, vector<2x8x32xf32>
    %1 = vector.shape_cast %0 : vector<2x8x32xf32> to vector<16x32xf32>
    %cst = arith.constant dense<0.000000e+00> : vector<16xf32>
    %2 = vector.multi_reduction <add>, %1, %cst [1] : vector<16x32xf32> to vector<16xf32>
    %3 = vector.shape_cast %2 : vector<16xf32> to vector<16x1xf32>
    %cst_2 = arith.constant 3.200000e+01 : f32
    %4 = vector.broadcast %cst_2 : f32 to vector<16x1xf32>
    %5 = arith.divf %3, %4 : vector<16x1xf32>
    %6 = vector.broadcast %5 : vector<16x1xf32> to vector<16x32xf32>
    %7 = arith.subf %1, %6 : vector<16x32xf32>
    %8 = arith.mulf %7, %7 : vector<16x32xf32>
    %cst_3 = arith.constant dense<0.000000e+00> : vector<16xf32>
    %9 = vector.multi_reduction <add>, %8, %cst_3 [1] : vector<16x32xf32> to vector<16xf32>
    %10 = vector.shape_cast %9 : vector<16xf32> to vector<16x1xf32>
    %cst_4 = arith.constant 3.200000e+01 : f32
    %11 = vector.broadcast %cst_4 : f32 to vector<16x1xf32>
    %12 = arith.divf %10, %11 : vector<16x1xf32>
    %cst_5 = arith.constant 9.99999974E-6 : f32
    %13 = vector.broadcast %cst_5 : f32 to vector<16x1xf32>
    %14 = arith.addf %12, %13 : vector<16x1xf32>
    %15 = math.rsqrt %14 : vector<16x1xf32>
    %16 = vector.broadcast %15 : vector<16x1xf32> to vector<16x32xf32>
    %17 = arith.mulf %7, %16 : vector<16x32xf32>
    %c0_6 = arith.constant 0 : index
    %c0_7 = arith.constant 0 : index
    %18 = vector.load %arg2[%c0_6, %c0_7] : memref<1x32xf32, #tpu.memory_space<vmem>>, vector<1x32xf32>
    %19 = vector.shape_cast %18 : vector<1x32xf32> to vector<32xf32>
    %20 = vector.shape_cast %19 : vector<32xf32> to vector<1x32xf32>
    %21 = vector.broadcast %20 : vector<1x32xf32> to vector<16x32xf32>
    %22 = arith.mulf %17, %21 : vector<16x32xf32>
    %c0_8 = arith.constant 0 : index
    %c0_9 = arith.constant 0 : index
    %23 = vector.load %arg3[%c0_8, %c0_9] : memref<1x32xf32, #tpu.memory_space<vmem>>, vector<1x32xf32>
    %24 = vector.shape_cast %23 : vector<1x32xf32> to vector<32xf32>
    %25 = vector.shape_cast %24 : vector<32xf32> to vector<1x32xf32>
    %26 = vector.broadcast %25 : vector<1x32xf32> to vector<16x32xf32>
    %27 = arith.addf %22, %26 : vector<16x32xf32>
    %28 = arith.truncf %27 : vector<16x32xf32> to vector<16x32xbf16>
    %c0_10 = arith.constant 0 : index
    %c0_11 = arith.constant 0 : index
    %29 = vector.load %arg4[%c0_10, %c0_11] : memref<32x32xbf16, #tpu.memory_space<vmem>>, vector<32x32xbf16>
    %cst_12 = arith.constant dense<0.000000e+00> : vector<16x32xf32>
    %30 = tpu.matmul %28, %29, %cst_12 {dimension_numbers = #tpu.dot_dimension_numbers<[1], [0], [0], [1], [0, 0, 1, 1], [], []>} : vector<16x32xbf16>, vector<32x32xbf16>, vector<16x32xf32> -> vector<16x32xf32>
    %c0_13 = arith.constant 0 : index
    %c0_14 = arith.constant 0 : index
    %31 = vector.load %arg5[%c0_13, %c0_14] : memref<1x32xf32, #tpu.memory_space<vmem>>, vector<1x32xf32>
    %32 = vector.shape_cast %31 : vector<1x32xf32> to vector<32xf32>
    %33 = vector.shape_cast %32 : vector<32xf32> to vector<1x32xf32>
    %34 = vector.broadcast %33 : vector<1x32xf32> to vector<16x32xf32>
    %35 = arith.addf %30, %34 : vector<16x32xf32>
    %36 = arith.truncf %35 : vector<16x32xf32> to vector<16x32xbf16>
    %c0_15 = arith.constant 0 : index
    %c0_16 = arith.constant 0 : index
    %37 = vector.load %arg6[%c0_15, %c0_16] : memref<32x32xbf16, #tpu.memory_space<vmem>>, vector<32x32xbf16>
    %cst_17 = arith.constant dense<0.000000e+00> : vector<16x32xf32>
    %38 = tpu.matmul %28, %37, %cst_17 {dimension_numbers = #tpu.dot_dimension_numbers<[1], [0], [0], [1], [0, 0, 1, 1], [], []>} : vector<16x32xbf16>, vector<32x32xbf16>, vector<16x32xf32> -> vector<16x32xf32>
    %c0_18 = arith.constant 0 : index
    %c0_19 = arith.constant 0 : index
    %39 = vector.load %arg7[%c0_18, %c0_19] : memref<1x32xf32, #tpu.memory_space<vmem>>, vector<1x32xf32>
    %40 = vector.shape_cast %39 : vector<1x32xf32> to vector<32xf32>
    %41 = vector.shape_cast %40 : vector<32xf32> to vector<1x32xf32>
    %42 = vector.broadcast %41 : vector<1x32xf32> to vector<16x32xf32>
    %43 = arith.addf %38, %42 : vector<16x32xf32>
    %44 = arith.truncf %43 : vector<16x32xf32> to vector<16x32xbf16>
    %c0_20 = arith.constant 0 : index
    %c0_21 = arith.constant 0 : index
    %45 = vector.load %arg8[%c0_20, %c0_21] : memref<32x32xbf16, #tpu.memory_space<vmem>>, vector<32x32xbf16>
    %cst_22 = arith.constant dense<0.000000e+00> : vector<16x32xf32>
    %46 = tpu.matmul %28, %45, %cst_22 {dimension_numbers = #tpu.dot_dimension_numbers<[1], [0], [0], [1], [0, 0, 1, 1], [], []>} : vector<16x32xbf16>, vector<32x32xbf16>, vector<16x32xf32> -> vector<16x32xf32>
    %c0_23 = arith.constant 0 : index
    %c0_24 = arith.constant 0 : index
    %47 = vector.load %arg9[%c0_23, %c0_24] : memref<1x32xf32, #tpu.memory_space<vmem>>, vector<1x32xf32>
    %48 = vector.shape_cast %47 : vector<1x32xf32> to vector<32xf32>
    %49 = vector.shape_cast %48 : vector<32xf32> to vector<1x32xf32>
    %50 = vector.broadcast %49 : vector<1x32xf32> to vector<16x32xf32>
    %51 = arith.addf %46, %50 : vector<16x32xf32>
    %52 = arith.truncf %51 : vector<16x32xf32> to vector<16x32xbf16>
    %53 = vector.shape_cast %36 : vector<16x32xbf16> to vector<2x8x32xbf16>
    %54 = vector.shape_cast %44 : vector<16x32xbf16> to vector<2x8x32xbf16>
    %55 = vector.shape_cast %52 : vector<16x32xbf16> to vector<2x8x32xbf16>
    %56 = tpu.iota {dimensions = array<i32: 0>} : vector<8x8xi32>
    %57 = tpu.iota {dimensions = array<i32: 1>} : vector<8x8xi32>
    %58 = arith.cmpi sgt, %57, %56 : vector<8x8xi32>
    %cst_25 = arith.constant -1.000000e+30 : f32
    %cst_26 = arith.constant 0.000000e+00 : f32
    %59 = vector.broadcast %cst_25 : f32 to vector<8x8xf32>
    %60 = vector.broadcast %cst_26 : f32 to vector<8x8xf32>
    %61 = arith.select %58, %59, %60 : vector<8x8xi1>, vector<8x8xf32>
    %cst_27 = arith.constant 0.000000e+00 : f32
    %62 = vector.broadcast %cst_27 : f32 to vector<16x32xf32>
    %63 = vector.extract_strided_slice %53 {offsets = [0, 0, 0], sizes = [2, 8, 8], strides = [1, 1, 1]} : vector<2x8x32xbf16> to vector<2x8x8xbf16>
    %64 = vector.extract_strided_slice %54 {offsets = [0, 0, 0], sizes = [2, 8, 8], strides = [1, 1, 1]} : vector<2x8x32xbf16> to vector<2x8x8xbf16>
    %65 = vector.extract_strided_slice %55 {offsets = [0, 0, 0], sizes = [2, 8, 8], strides = [1, 1, 1]} : vector<2x8x32xbf16> to vector<2x8x8xbf16>
    "tpu.trace_start"() <{level = 10 : i32, message = "bqd,bkd->bqk"}> : () -> ()
    %cst_28 = arith.constant dense<0.000000e+00> : vector<2x8x8xf32>
    %66 = tpu.matmul %63, %64, %cst_28 {dimension_numbers = #tpu.dot_dimension_numbers<[2], [2], [1], [1], [0, 0, 0, 1, 1, 1], [0], [0]>} : vector<2x8x8xbf16>, vector<2x8x8xbf16>, vector<2x8x8xf32> -> vector<2x8x8xf32>
    "tpu.trace_stop"() : () -> ()
    %67 = vector.shape_cast %61 : vector<8x8xf32> to vector<1x8x8xf32>
    %68 = vector.broadcast %67 : vector<1x8x8xf32> to vector<2x8x8xf32>
    %69 = arith.addf %66, %68 : vector<2x8x8xf32>
    %cst_29 = arith.constant dense<0xFF800000> : vector<2x8xf32>
    %70 = vector.multi_reduction <maximumf>, %69, %cst_29 [2] : vector<2x8x8xf32> to vector<2x8xf32>
    %71 = vector.shape_cast %70 : vector<2x8xf32> to vector<2x8x1xf32>
    %72 = vector.broadcast %71 : vector<2x8x1xf32> to vector<2x8x8xf32>
    %73 = arith.subf %69, %72 : vector<2x8x8xf32>
    %74 = math.exp %73 : vector<2x8x8xf32>
    %cst_30 = arith.constant dense<0.000000e+00> : vector<2x8xf32>
    %75 = vector.multi_reduction <add>, %74, %cst_30 [2] : vector<2x8x8xf32> to vector<2x8xf32>
    %76 = vector.shape_cast %75 : vector<2x8xf32> to vector<2x8x1xf32>
    %77 = tpu.reciprocal %76 {approx = true} : vector<2x8x1xf32> -> vector<2x8x1xf32>
    %78 = vector.broadcast %77 : vector<2x8x1xf32> to vector<2x8x8xf32>
    %79 = arith.mulf %74, %78 : vector<2x8x8xf32>
    %80 = arith.truncf %79 : vector<2x8x8xf32> to vector<2x8x8xbf16>
    "tpu.trace_start"() <{level = 10 : i32, message = "bqk,bkd->bqd"}> : () -> ()
    %cst_31 = arith.constant dense<0.000000e+00> : vector<2x8x8xf32>
    %81 = tpu.matmul %80, %65, %cst_31 {dimension_numbers = #tpu.dot_dimension_numbers<[2], [1], [1], [2], [0, 0, 0, 1, 1, 2], [0], [0]>} : vector<2x8x8xbf16>, vector<2x8x8xbf16>, vector<2x8x8xf32> -> vector<2x8x8xf32>
    "tpu.trace_stop"() : () -> ()
    %82 = vector.shape_cast %81 : vector<2x8x8xf32> to vector<16x8xf32>
    %83 = arith.truncf %82 : vector<16x8xf32> to vector<16x8xbf16>
    %c0_32 = arith.constant 0 : index
    %c0_33 = arith.constant 0 : index
    %c0_34 = arith.constant 0 : index
    %84 = vector.load %arg10[%c0_32, %c0_33, %c0_34] : memref<4x8x32xbf16, #tpu.memory_space<vmem>>, vector<1x8x32xbf16>
    %85 = vector.shape_cast %84 : vector<1x8x32xbf16> to vector<8x32xbf16>
    %cst_35 = arith.constant dense<0.000000e+00> : vector<16x32xf32>
    %86 = tpu.matmul %83, %85, %cst_35 {dimension_numbers = #tpu.dot_dimension_numbers<[1], [0], [0], [1], [0, 0, 1, 1], [], []>} : vector<16x8xbf16>, vector<8x32xbf16>, vector<16x32xf32> -> vector<16x32xf32>
    %87 = arith.addf %62, %86 : vector<16x32xf32>
    %88 = vector.extract_strided_slice %53 {offsets = [0, 0, 8], sizes = [2, 8, 8], strides = [1, 1, 1]} : vector<2x8x32xbf16> to vector<2x8x8xbf16>
    %89 = vector.extract_strided_slice %54 {offsets = [0, 0, 8], sizes = [2, 8, 8], strides = [1, 1, 1]} : vector<2x8x32xbf16> to vector<2x8x8xbf16>
    %90 = vector.extract_strided_slice %55 {offsets = [0, 0, 8], sizes = [2, 8, 8], strides = [1, 1, 1]} : vector<2x8x32xbf16> to vector<2x8x8xbf16>
    "tpu.trace_start"() <{level = 10 : i32, message = "bqd,bkd->bqk"}> : () -> ()
    %cst_36 = arith.constant dense<0.000000e+00> : vector<2x8x8xf32>
    %91 = tpu.matmul %88, %89, %cst_36 {dimension_numbers = #tpu.dot_dimension_numbers<[2], [2], [1], [1], [0, 0, 0, 1, 1, 1], [0], [0]>} : vector<2x8x8xbf16>, vector<2x8x8xbf16>, vector<2x8x8xf32> -> vector<2x8x8xf32>
    "tpu.trace_stop"() : () -> ()
    %92 = vector.shape_cast %61 : vector<8x8xf32> to vector<1x8x8xf32>
    %93 = vector.broadcast %92 : vector<1x8x8xf32> to vector<2x8x8xf32>
    %94 = arith.addf %91, %93 : vector<2x8x8xf32>
    %cst_37 = arith.constant dense<0xFF800000> : vector<2x8xf32>
    %95 = vector.multi_reduction <maximumf>, %94, %cst_37 [2] : vector<2x8x8xf32> to vector<2x8xf32>
    %96 = vector.shape_cast %95 : vector<2x8xf32> to vector<2x8x1xf32>
    %97 = vector.broadcast %96 : vector<2x8x1xf32> to vector<2x8x8xf32>
    %98 = arith.subf %94, %97 : vector<2x8x8xf32>
    %99 = math.exp %98 : vector<2x8x8xf32>
    %cst_38 = arith.constant dense<0.000000e+00> : vector<2x8xf32>
    %100 = vector.multi_reduction <add>, %99, %cst_38 [2] : vector<2x8x8xf32> to vector<2x8xf32>
    %101 = vector.shape_cast %100 : vector<2x8xf32> to vector<2x8x1xf32>
    %102 = tpu.reciprocal %101 {approx = true} : vector<2x8x1xf32> -> vector<2x8x1xf32>
    %103 = vector.broadcast %102 : vector<2x8x1xf32> to vector<2x8x8xf32>
    %104 = arith.mulf %99, %103 : vector<2x8x8xf32>
    %105 = arith.truncf %104 : vector<2x8x8xf32> to vector<2x8x8xbf16>
    "tpu.trace_start"() <{level = 10 : i32, message = "bqk,bkd->bqd"}> : () -> ()
    %cst_39 = arith.constant dense<0.000000e+00> : vector<2x8x8xf32>
    %106 = tpu.matmul %105, %90, %cst_39 {dimension_numbers = #tpu.dot_dimension_numbers<[2], [1], [1], [2], [0, 0, 0, 1, 1, 2], [0], [0]>} : vector<2x8x8xbf16>, vector<2x8x8xbf16>, vector<2x8x8xf32> -> vector<2x8x8xf32>
    "tpu.trace_stop"() : () -> ()
    %107 = vector.shape_cast %106 : vector<2x8x8xf32> to vector<16x8xf32>
    %108 = arith.truncf %107 : vector<16x8xf32> to vector<16x8xbf16>
    %c1 = arith.constant 1 : index
    %c0_40 = arith.constant 0 : index
    %c0_41 = arith.constant 0 : index
    %109 = vector.load %arg10[%c1, %c0_40, %c0_41] : memref<4x8x32xbf16, #tpu.memory_space<vmem>>, vector<1x8x32xbf16>
    %110 = vector.shape_cast %109 : vector<1x8x32xbf16> to vector<8x32xbf16>
    %cst_42 = arith.constant dense<0.000000e+00> : vector<16x32xf32>
    %111 = tpu.matmul %108, %110, %cst_42 {dimension_numbers = #tpu.dot_dimension_numbers<[1], [0], [0], [1], [0, 0, 1, 1], [], []>} : vector<16x8xbf16>, vector<8x32xbf16>, vector<16x32xf32> -> vector<16x32xf32>
    %112 = arith.addf %87, %111 : vector<16x32xf32>
    %113 = vector.extract_strided_slice %53 {offsets = [0, 0, 16], sizes = [2, 8, 8], strides = [1, 1, 1]} : vector<2x8x32xbf16> to vector<2x8x8xbf16>
    %114 = vector.extract_strided_slice %54 {offsets = [0, 0, 16], sizes = [2, 8, 8], strides = [1, 1, 1]} : vector<2x8x32xbf16> to vector<2x8x8xbf16>
    %115 = vector.extract_strided_slice %55 {offsets = [0, 0, 16], sizes = [2, 8, 8], strides = [1, 1, 1]} : vector<2x8x32xbf16> to vector<2x8x8xbf16>
    "tpu.trace_start"() <{level = 10 : i32, message = "bqd,bkd->bqk"}> : () -> ()
    %cst_43 = arith.constant dense<0.000000e+00> : vector<2x8x8xf32>
    %116 = tpu.matmul %113, %114, %cst_43 {dimension_numbers = #tpu.dot_dimension_numbers<[2], [2], [1], [1], [0, 0, 0, 1, 1, 1], [0], [0]>} : vector<2x8x8xbf16>, vector<2x8x8xbf16>, vector<2x8x8xf32> -> vector<2x8x8xf32>
    "tpu.trace_stop"() : () -> ()
    %117 = vector.shape_cast %61 : vector<8x8xf32> to vector<1x8x8xf32>
    %118 = vector.broadcast %117 : vector<1x8x8xf32> to vector<2x8x8xf32>
    %119 = arith.addf %116, %118 : vector<2x8x8xf32>
    %cst_44 = arith.constant dense<0xFF800000> : vector<2x8xf32>
    %120 = vector.multi_reduction <maximumf>, %119, %cst_44 [2] : vector<2x8x8xf32> to vector<2x8xf32>
    %121 = vector.shape_cast %120 : vector<2x8xf32> to vector<2x8x1xf32>
    %122 = vector.broadcast %121 : vector<2x8x1xf32> to vector<2x8x8xf32>
    %123 = arith.subf %119, %122 : vector<2x8x8xf32>
    %124 = math.exp %123 : vector<2x8x8xf32>
    %cst_45 = arith.constant dense<0.000000e+00> : vector<2x8xf32>
    %125 = vector.multi_reduction <add>, %124, %cst_45 [2] : vector<2x8x8xf32> to vector<2x8xf32>
    %126 = vector.shape_cast %125 : vector<2x8xf32> to vector<2x8x1xf32>
    %127 = tpu.reciprocal %126 {approx = true} : vector<2x8x1xf32> -> vector<2x8x1xf32>
    %128 = vector.broadcast %127 : vector<2x8x1xf32> to vector<2x8x8xf32>
    %129 = arith.mulf %124, %128 : vector<2x8x8xf32>
    %130 = arith.truncf %129 : vector<2x8x8xf32> to vector<2x8x8xbf16>
    "tpu.trace_start"() <{level = 10 : i32, message = "bqk,bkd->bqd"}> : () -> ()
    %cst_46 = arith.constant dense<0.000000e+00> : vector<2x8x8xf32>
    %131 = tpu.matmul %130, %115, %cst_46 {dimension_numbers = #tpu.dot_dimension_numbers<[2], [1], [1], [2], [0, 0, 0, 1, 1, 2], [0], [0]>} : vector<2x8x8xbf16>, vector<2x8x8xbf16>, vector<2x8x8xf32> -> vector<2x8x8xf32>
    "tpu.trace_stop"() : () -> ()
    %132 = vector.shape_cast %131 : vector<2x8x8xf32> to vector<16x8xf32>
    %133 = arith.truncf %132 : vector<16x8xf32> to vector<16x8xbf16>
    %c2 = arith.constant 2 : index
    %c0_47 = arith.constant 0 : index
    %c0_48 = arith.constant 0 : index
    %134 = vector.load %arg10[%c2, %c0_47, %c0_48] : memref<4x8x32xbf16, #tpu.memory_space<vmem>>, vector<1x8x32xbf16>
    %135 = vector.shape_cast %134 : vector<1x8x32xbf16> to vector<8x32xbf16>
    %cst_49 = arith.constant dense<0.000000e+00> : vector<16x32xf32>
    %136 = tpu.matmul %133, %135, %cst_49 {dimension_numbers = #tpu.dot_dimension_numbers<[1], [0], [0], [1], [0, 0, 1, 1], [], []>} : vector<16x8xbf16>, vector<8x32xbf16>, vector<16x32xf32> -> vector<16x32xf32>
    %137 = arith.addf %112, %136 : vector<16x32xf32>
    %138 = vector.extract_strided_slice %53 {offsets = [0, 0, 24], sizes = [2, 8, 8], strides = [1, 1, 1]} : vector<2x8x32xbf16> to vector<2x8x8xbf16>
    %139 = vector.extract_strided_slice %54 {offsets = [0, 0, 24], sizes = [2, 8, 8], strides = [1, 1, 1]} : vector<2x8x32xbf16> to vector<2x8x8xbf16>
    %140 = vector.extract_strided_slice %55 {offsets = [0, 0, 24], sizes = [2, 8, 8], strides = [1, 1, 1]} : vector<2x8x32xbf16> to vector<2x8x8xbf16>
    "tpu.trace_start"() <{level = 10 : i32, message = "bqd,bkd->bqk"}> : () -> ()
    %cst_50 = arith.constant dense<0.000000e+00> : vector<2x8x8xf32>
    %141 = tpu.matmul %138, %139, %cst_50 {dimension_numbers = #tpu.dot_dimension_numbers<[2], [2], [1], [1], [0, 0, 0, 1, 1, 1], [0], [0]>} : vector<2x8x8xbf16>, vector<2x8x8xbf16>, vector<2x8x8xf32> -> vector<2x8x8xf32>
    "tpu.trace_stop"() : () -> ()
    %142 = vector.shape_cast %61 : vector<8x8xf32> to vector<1x8x8xf32>
    %143 = vector.broadcast %142 : vector<1x8x8xf32> to vector<2x8x8xf32>
    %144 = arith.addf %141, %143 : vector<2x8x8xf32>
    %cst_51 = arith.constant dense<0xFF800000> : vector<2x8xf32>
    %145 = vector.multi_reduction <maximumf>, %144, %cst_51 [2] : vector<2x8x8xf32> to vector<2x8xf32>
    %146 = vector.shape_cast %145 : vector<2x8xf32> to vector<2x8x1xf32>
    %147 = vector.broadcast %146 : vector<2x8x1xf32> to vector<2x8x8xf32>
    %148 = arith.subf %144, %147 : vector<2x8x8xf32>
    %149 = math.exp %148 : vector<2x8x8xf32>
    %cst_52 = arith.constant dense<0.000000e+00> : vector<2x8xf32>
    %150 = vector.multi_reduction <add>, %149, %cst_52 [2] : vector<2x8x8xf32> to vector<2x8xf32>
    %151 = vector.shape_cast %150 : vector<2x8xf32> to vector<2x8x1xf32>
    %152 = tpu.reciprocal %151 {approx = true} : vector<2x8x1xf32> -> vector<2x8x1xf32>
    %153 = vector.broadcast %152 : vector<2x8x1xf32> to vector<2x8x8xf32>
    %154 = arith.mulf %149, %153 : vector<2x8x8xf32>
    %155 = arith.truncf %154 : vector<2x8x8xf32> to vector<2x8x8xbf16>
    "tpu.trace_start"() <{level = 10 : i32, message = "bqk,bkd->bqd"}> : () -> ()
    %cst_53 = arith.constant dense<0.000000e+00> : vector<2x8x8xf32>
    %156 = tpu.matmul %155, %140, %cst_53 {dimension_numbers = #tpu.dot_dimension_numbers<[2], [1], [1], [2], [0, 0, 0, 1, 1, 2], [0], [0]>} : vector<2x8x8xbf16>, vector<2x8x8xbf16>, vector<2x8x8xf32> -> vector<2x8x8xf32>
    "tpu.trace_stop"() : () -> ()
    %157 = vector.shape_cast %156 : vector<2x8x8xf32> to vector<16x8xf32>
    %158 = arith.truncf %157 : vector<16x8xf32> to vector<16x8xbf16>
    %c3 = arith.constant 3 : index
    %c0_54 = arith.constant 0 : index
    %c0_55 = arith.constant 0 : index
    %159 = vector.load %arg10[%c3, %c0_54, %c0_55] : memref<4x8x32xbf16, #tpu.memory_space<vmem>>, vector<1x8x32xbf16>
    %160 = vector.shape_cast %159 : vector<1x8x32xbf16> to vector<8x32xbf16>
    %cst_56 = arith.constant dense<0.000000e+00> : vector<16x32xf32>
    %161 = tpu.matmul %158, %160, %cst_56 {dimension_numbers = #tpu.dot_dimension_numbers<[1], [0], [0], [1], [0, 0, 1, 1], [], []>} : vector<16x8xbf16>, vector<8x32xbf16>, vector<16x32xf32> -> vector<16x32xf32>
    %162 = arith.addf %137, %161 : vector<16x32xf32>
    %c0_57 = arith.constant 0 : index
    %c0_58 = arith.constant 0 : index
    %163 = vector.load %arg11[%c0_57, %c0_58] : memref<1x32xf32, #tpu.memory_space<vmem>>, vector<1x32xf32>
    %164 = vector.shape_cast %163 : vector<1x32xf32> to vector<32xf32>
    %165 = vector.shape_cast %164 : vector<32xf32> to vector<1x32xf32>
    %166 = vector.broadcast %165 : vector<1x32xf32> to vector<16x32xf32>
    %167 = arith.addf %162, %166 : vector<16x32xf32>
    %168 = arith.addf %1, %167 : vector<16x32xf32>
    %cst_59 = arith.constant dense<0.000000e+00> : vector<16xf32>
    %169 = vector.multi_reduction <add>, %168, %cst_59 [1] : vector<16x32xf32> to vector<16xf32>
    %170 = vector.shape_cast %169 : vector<16xf32> to vector<16x1xf32>
    %cst_60 = arith.constant 3.200000e+01 : f32
    %171 = vector.broadcast %cst_60 : f32 to vector<16x1xf32>
    %172 = arith.divf %170, %171 : vector<16x1xf32>
    %173 = vector.broadcast %172 : vector<16x1xf32> to vector<16x32xf32>
    %174 = arith.subf %168, %173 : vector<16x32xf32>
    %175 = arith.mulf %174, %174 : vector<16x32xf32>
    %cst_61 = arith.constant dense<0.000000e+00> : vector<16xf32>
    %176 = vector.multi_reduction <add>, %175, %cst_61 [1] : vector<16x32xf32> to vector<16xf32>
    %177 = vector.shape_cast %176 : vector<16xf32> to vector<16x1xf32>
    %cst_62 = arith.constant 3.200000e+01 : f32
    %178 = vector.broadcast %cst_62 : f32 to vector<16x1xf32>
    %179 = arith.divf %177, %178 : vector<16x1xf32>
    %cst_63 = arith.constant 9.99999974E-6 : f32
    %180 = vector.broadcast %cst_63 : f32 to vector<16x1xf32>
    %181 = arith.addf %179, %180 : vector<16x1xf32>
    %182 = math.rsqrt %181 : vector<16x1xf32>
    %183 = vector.broadcast %182 : vector<16x1xf32> to vector<16x32xf32>
    %184 = arith.mulf %174, %183 : vector<16x32xf32>
    %c0_64 = arith.constant 0 : index
    %c0_65 = arith.constant 0 : index
    %185 = vector.load %arg12[%c0_64, %c0_65] : memref<1x32xf32, #tpu.memory_space<vmem>>, vector<1x32xf32>
    %186 = vector.shape_cast %185 : vector<1x32xf32> to vector<32xf32>
    %187 = vector.shape_cast %186 : vector<32xf32> to vector<1x32xf32>
    %188 = vector.broadcast %187 : vector<1x32xf32> to vector<16x32xf32>
    %189 = arith.mulf %184, %188 : vector<16x32xf32>
    %c0_66 = arith.constant 0 : index
    %c0_67 = arith.constant 0 : index
    %190 = vector.load %arg13[%c0_66, %c0_67] : memref<1x32xf32, #tpu.memory_space<vmem>>, vector<1x32xf32>
    %191 = vector.shape_cast %190 : vector<1x32xf32> to vector<32xf32>
    %192 = vector.shape_cast %191 : vector<32xf32> to vector<1x32xf32>
    %193 = vector.broadcast %192 : vector<1x32xf32> to vector<16x32xf32>
    %194 = arith.addf %189, %193 : vector<16x32xf32>
    %195 = arith.truncf %194 : vector<16x32xf32> to vector<16x32xbf16>
    %c0_68 = arith.constant 0 : index
    %c0_69 = arith.constant 0 : index
    %196 = vector.load %arg15[%c0_68, %c0_69] : memref<1x128xf32, #tpu.memory_space<vmem>>, vector<1x128xf32>
    %197 = vector.shape_cast %196 : vector<1x128xf32> to vector<128xf32>
    %cst_70 = arith.constant 0.000000e+00 : f32
    %198 = vector.broadcast %cst_70 : f32 to vector<16x32xf32>
    %c0_71 = arith.constant 0 : index
    %c0_72 = arith.constant 0 : index
    %199 = vector.load %arg14[%c0_71, %c0_72] : memref<32x128xbf16, #tpu.memory_space<vmem>>, vector<32x128xbf16>
    %cst_73 = arith.constant dense<0.000000e+00> : vector<16x128xf32>
    %200 = tpu.matmul %195, %199, %cst_73 {dimension_numbers = #tpu.dot_dimension_numbers<[1], [0], [0], [1], [0, 0, 1, 1], [], []>} : vector<16x32xbf16>, vector<32x128xbf16>, vector<16x128xf32> -> vector<16x128xf32>
    %201 = vector.shape_cast %197 : vector<128xf32> to vector<1x128xf32>
    %202 = vector.broadcast %201 : vector<1x128xf32> to vector<16x128xf32>
    %203 = arith.addf %200, %202 : vector<16x128xf32>
    %cst_74 = arith.constant 1.702000e+00 : f32
    %204 = vector.broadcast %cst_74 : f32 to vector<16x128xf32>
    %205 = arith.mulf %204, %203 : vector<16x128xf32>
    %206 = arith.negf %205 : vector<16x128xf32>
    %207 = math.exp %206 : vector<16x128xf32>
    %cst_75 = arith.constant 1.000000e+00 : f32
    %208 = vector.broadcast %cst_75 : f32 to vector<16x128xf32>
    %209 = arith.addf %208, %207 : vector<16x128xf32>
    %210 = arith.divf %208, %209 : vector<16x128xf32>
    %211 = arith.mulf %203, %210 : vector<16x128xf32>
    %212 = arith.truncf %211 : vector<16x128xf32> to vector<16x128xbf16>
    %c0_76 = arith.constant 0 : index
    %c0_77 = arith.constant 0 : index
    %213 = vector.load %arg16[%c0_76, %c0_77] : memref<128x32xbf16, #tpu.memory_space<vmem>>, vector<128x32xbf16>
    %cst_78 = arith.constant dense<0.000000e+00> : vector<16x32xf32>
    %214 = tpu.matmul %212, %213, %cst_78 {dimension_numbers = #tpu.dot_dimension_numbers<[1], [0], [0], [1], [0, 0, 1, 1], [], []>} : vector<16x128xbf16>, vector<128x32xbf16>, vector<16x32xf32> -> vector<16x32xf32>
    %215 = arith.addf %198, %214 : vector<16x32xf32>
    %c0_79 = arith.constant 0 : index
    %c0_80 = arith.constant 0 : index
    %216 = vector.load %arg17[%c0_79, %c0_80] : memref<1x32xf32, #tpu.memory_space<vmem>>, vector<1x32xf32>
    %217 = vector.shape_cast %216 : vector<1x32xf32> to vector<32xf32>
    %218 = vector.shape_cast %217 : vector<32xf32> to vector<1x32xf32>
    %219 = vector.broadcast %218 : vector<1x32xf32> to vector<16x32xf32>
    %220 = arith.addf %215, %219 : vector<16x32xf32>
    %221 = arith.addf %168, %220 : vector<16x32xf32>
    %222 = vector.shape_cast %221 : vector<16x32xf32> to vector<2x8x32xf32>
    %c0_81 = arith.constant 0 : index
    %c0_82 = arith.constant 0 : index
    %c0_83 = arith.constant 0 : index
    %223 = vector.load %arg18[%c0_81, %c0_82, %c0_83] : memref<2x8x32xf32, #tpu.memory_space<vmem>>, vector<2x8x32xf32>
    tpu.vector_store %arg18[%c0_81, %c0_82, %c0_83], %222 {strides = array<i32>} : memref<2x8x32xf32, #tpu.memory_space<vmem>>, vector<2x8x32xf32>,
    return
  }
  func.func @transform_0(%arg0: i32) -> (i32, i32, i32) {
    %c0_i32 = arith.constant 0 : i32
    %c0_i32_0 = arith.constant 0 : i32
    %c0_i32_1 = arith.constant 0 : i32
    return %arg0, %c0_i32, %c0_i32_0 : i32, i32, i32
  }
  func.func @transform_1(%arg0: i32) -> (i32, i32) {
    %c0_i32 = arith.constant 0 : i32
    %c0_i32_0 = arith.constant 0 : i32
    %c0_i32_1 = arith.constant 0 : i32
    return %c0_i32, %c0_i32_0 : i32, i32
  }
  func.func @transform_2(%arg0: i32) -> (i32, i32) {
    %c0_i32 = arith.constant 0 : i32
    %c0_i32_0 = arith.constant 0 : i32
    %c0_i32_1 = arith.constant 0 : i32
    return %c0_i32, %c0_i32_0 : i32, i32
  }
  func.func @transform_3(%arg0: i32) -> (i32, i32) {
    %c0_i32 = arith.constant 0 : i32
    %c0_i32_0 = arith.constant 0 : i32
    %c0_i32_1 = arith.constant 0 : i32
    return %c0_i32, %c0_i32_0 : i32, i32
  }
  func.func @transform_4(%arg0: i32) -> (i32, i32) {
    %c0_i32 = arith.constant 0 : i32
    %c0_i32_0 = arith.constant 0 : i32
    %c0_i32_1 = arith.constant 0 : i32
    return %c0_i32, %c0_i32_0 : i32, i32
  }
  func.func @transform_5(%arg0: i32) -> (i32, i32) {
    %c0_i32 = arith.constant 0 : i32
    %c0_i32_0 = arith.constant 0 : i32
    %c0_i32_1 = arith.constant 0 : i32
    return %c0_i32, %c0_i32_0 : i32, i32
  }
  func.func @transform_6(%arg0: i32) -> (i32, i32) {
    %c0_i32 = arith.constant 0 : i32
    %c0_i32_0 = arith.constant 0 : i32
    %c0_i32_1 = arith.constant 0 : i32
    return %c0_i32, %c0_i32_0 : i32, i32
  }
  func.func @transform_7(%arg0: i32) -> (i32, i32) {
    %c0_i32 = arith.constant 0 : i32
    %c0_i32_0 = arith.constant 0 : i32
    %c0_i32_1 = arith.constant 0 : i32
    return %c0_i32, %c0_i32_0 : i32, i32
  }
  func.func @transform_8(%arg0: i32) -> (i32, i32) {
    %c0_i32 = arith.constant 0 : i32
    %c0_i32_0 = arith.constant 0 : i32
    %c0_i32_1 = arith.constant 0 : i32
    return %c0_i32, %c0_i32_0 : i32, i32
  }
  func.func @transform_9(%arg0: i32) -> (i32, i32, i32) {
    %c0_i32 = arith.constant 0 : i32
    %c0_i32_0 = arith.constant 0 : i32
    %c0_i32_1 = arith.constant 0 : i32
    %c0_i32_2 = arith.constant 0 : i32
    return %c0_i32, %c0_i32_0, %c0_i32_1 : i32, i32, i32
  }
  func.func @transform_10(%arg0: i32) -> (i32, i32) {
    %c0_i32 = arith.constant 0 : i32
    %c0_i32_0 = arith.constant 0 : i32
    %c0_i32_1 = arith.constant 0 : i32
    return %c0_i32, %c0_i32_0 : i32, i32
  }
  func.func @transform_11(%arg0: i32) -> (i32, i32) {
    %c0_i32 = arith.constant 0 : i32
    %c0_i32_0 = arith.constant 0 : i32
    %c0_i32_1 = arith.constant 0 : i32
    return %c0_i32, %c0_i32_0 : i32, i32
  }
  func.func @transform_12(%arg0: i32) -> (i32, i32) {
    %c0_i32 = arith.constant 0 : i32
    %c0_i32_0 = arith.constant 0 : i32
    %c0_i32_1 = arith.constant 0 : i32
    return %c0_i32, %c0_i32_0 : i32, i32
  }
  func.func @transform_13(%arg0: i32) -> (i32, i32) {
    %c0_i32 = arith.constant 0 : i32
    %c0_i32_0 = arith.constant 0 : i32
    %c0_i32_1 = arith.constant 0 : i32
    return %c0_i32, %c0_i32_0 : i32, i32
  }
  func.func @transform_14(%arg0: i32) -> (i32, i32) {
    %c0_i32 = arith.constant 0 : i32
    %c0_i32_0 = arith.constant 0 : i32
    %c0_i32_1 = arith.constant 0 : i32
    return %c0_i32, %c0_i32_0 : i32, i32
  }
  func.func @transform_15(%arg0: i32) -> (i32, i32) {
    %c0_i32 = arith.constant 0 : i32
    %c0_i32_0 = arith.constant 0 : i32
    %c0_i32_1 = arith.constant 0 : i32
    return %c0_i32, %c0_i32_0 : i32, i32
  }
  func.func @transform_16(%arg0: i32) -> (i32, i32) {
    %c0_i32 = arith.constant 0 : i32
    %c0_i32_0 = arith.constant 0 : i32
    %c0_i32_1 = arith.constant 0 : i32
    return %c0_i32, %c0_i32_0 : i32, i32
  }
  func.func @transform_17(%arg0: i32) -> (i32, i32, i32) {
    %c0_i32 = arith.constant 0 : i32
    %c0_i32_0 = arith.constant 0 : i32
    %c0_i32_1 = arith.constant 0 : i32
    return %arg0, %c0_i32, %c0_i32_0 : i32, i32, i32
  }
}

</mosaic_0001>

<llo_original>
// kernel: tpu_custom_call.1
$region0: #{tpu_custom_call.1}
  #allocation0 [shape = 'u32[]', space=smem, size = 0x4, offset = 0x4, fixed_abs, tag = 'smem constant byte address 0x4 - core index']
  #allocation1 [shape = 'u32[144,128]{1,0:T(1,128)}', space=vmem, size = 0x12000, scoped, tag = 'internal scratch']
  %s0 = inlined_call_operand.vmem [shape: f32[2,8,32], index: 0, kind: input, shape index: {}]
  %s1 = inlined_call_operand.vmem [shape: f32[1,32], index: 1, kind: input, shape index: {}]
  %s2 = inlined_call_operand.vmem [shape: f32[1,32], index: 2, kind: input, shape index: {}]
  %s3 = inlined_call_operand.vmem [shape: bf16[32,32], index: 3, kind: input, shape index: {}]
  %s4 = inlined_call_operand.hbm [shape: f32[1,32], index: 4, kind: input, shape index: {}]
  %s5 = inlined_call_operand.vmem [shape: bf16[32,32], index: 5, kind: input, shape index: {}]
  %s6 = inlined_call_operand.hbm [shape: f32[1,32], index: 6, kind: input, shape index: {}]
  %s7 = inlined_call_operand.vmem [shape: bf16[32,32], index: 7, kind: input, shape index: {}]
  %s8 = inlined_call_operand.hbm [shape: f32[1,32], index: 8, kind: input, shape index: {}]
  %s9 = inlined_call_operand.vmem [shape: bf16[4,8,32], index: 9, kind: input, shape index: {}]
  %s10 = inlined_call_operand.vmem [shape: f32[1,32], index: 10, kind: input, shape index: {}]
  %s11 = inlined_call_operand.vmem [shape: f32[1,32], index: 11, kind: input, shape index: {}]
  %s12 = inlined_call_operand.vmem [shape: f32[1,32], index: 12, kind: input, shape index: {}]
  %s13 = inlined_call_operand.vmem [shape: bf16[32,128], index: 13, kind: input, shape index: {}]
  %s14 = inlined_call_operand.vmem [shape: f32[1,128], index: 14, kind: input, shape index: {}]
  %s15 = inlined_call_operand.vmem [shape: bf16[128,32], index: 15, kind: input, shape index: {}]
  %s16 = inlined_call_operand.vmem [shape: f32[1,32], index: 16, kind: input, shape index: {}]
  %s17 = inlined_call_operand.hbm [shape: f32[2,8,32], index: 17, kind: output, shape index: {}]
  %s18 = sld [smem:[#allocation0]]
  $region90: #{tpu_custom_call.1} parent=0
    _
  %s20 = ssub.s32 1, %s18
  %s21 = scalar_select 0, %s20, %s18
  $region1: #{tpu_custom_call.1} parent=0
    #allocation2 [shape = 'u8[512]{0}', space=vmem, size = 0x400, scoped, tag = 'input window, operand 4, single buffered']
    #allocation3 [shape = 's32[1]{0}', space=sflag, size = 0x4, scoped, tag = 'scoped memory for tpu_custom_call.1']
    #allocation4 [shape = 's32[1]{0}', space=sflag, size = 0x4, scoped, tag = 'scoped memory for tpu_custom_call.1']
    #allocation5 [shape = 'u8[512]{0}', space=vmem, size = 0x400, scoped, tag = 'input window, operand 6, single buffered']
    #allocation6 [shape = 's32[1]{0}', space=sflag, size = 0x4, scoped, tag = 'scoped memory for tpu_custom_call.1']
    #allocation7 [shape = 'u8[512]{0}', space=vmem, size = 0x400, scoped, tag = 'input window, operand 8, single buffered']
    #allocation8 [shape = 'u8[8192]{0}', space=vmem, size = 0x2000, scoped, tag = 'output window, operand 0, single buffered']
    %22 = vsyncpa [#allocation3], 0
    %23 = vsyncpa [#allocation6], 0
    %24 = vsyncpa [#allocation4], 0
    // Predicated region
    $region2: #{tpu_custom_call.1} parent=1 // pred_check
      _
    $region3: #{tpu_custom_call.1} parent=1 // pred_check_branch
      %26 = sbr.rel (0) target = $region5
    $region4: #{tpu_custom_call.1} parent=1 // pred_region
      _
    $region5: #{tpu_custom_call.1} parent=1 // pred_fallthru
      _
    // Predicated region
    $region6: #{tpu_custom_call.1} parent=1 // pred_check
      _
    $region7: #{tpu_custom_call.1} parent=1 // pred_check_branch
      %28 = sbr.rel (0) target = $region9
    $region8: #{tpu_custom_call.1} parent=1 // pred_region
      _
    $region9: #{tpu_custom_call.1} parent=1 // pred_fallthru
      _
    // Predicated region
    $region10: #{tpu_custom_call.1} parent=1 // pred_check
      _
    $region11: #{tpu_custom_call.1} parent=1 // pred_check_branch
      %30 = sbr.rel (0) target = $region13
    $region12: #{tpu_custom_call.1} parent=1 // pred_region
      _
    $region13: #{tpu_custom_call.1} parent=1 // pred_fallthru
      _
    // Predicated region
    $region14: #{tpu_custom_call.1} parent=1 // pred_check
      _
    $region15: #{tpu_custom_call.1} parent=1 // pred_check_branch
      %32 = sbr.rel (0) target = $region17
    $region16: #{tpu_custom_call.1} parent=1 // pred_region
      _
    $region17: #{tpu_custom_call.1} parent=1 // pred_fallthru
      _
    // Predicated region
    $region18: #{tpu_custom_call.1} parent=1 // pred_check
      _
    $region19: #{tpu_custom_call.1} parent=1 // pred_check_branch
      %34 = sbr.rel (0) target = $region21
    $region20: #{tpu_custom_call.1} parent=1 // pred_region
      %s36 = ssub.s32 16, 16
      %37 = vsyncadd [#allocation3], %s36
      %s39 = sshll.u32 [#allocation2], 4
      %s40 = int_to_ptr.vmem [resolvable:$true] %s39
      %42 = dma.hbm_to_vmem [thread:$0]  %s4, 16, %s40, [#allocation3]
    $region21: #{tpu_custom_call.1} parent=1 // pred_fallthru
      _
    // Predicated region
    $region22: #{tpu_custom_call.1} parent=1 // pred_check
      _
    $region23: #{tpu_custom_call.1} parent=1 // pred_check_branch
      %44 = sbr.rel (0) target = $region25
    $region24: #{tpu_custom_call.1} parent=1 // pred_region
      _
    $region25: #{tpu_custom_call.1} parent=1 // pred_fallthru
      _
    // Predicated region
    $region26: #{tpu_custom_call.1} parent=1 // pred_check
      _
    $region27: #{tpu_custom_call.1} parent=1 // pred_check_branch
      %46 = sbr.rel (0) target = $region29
    $region28: #{tpu_custom_call.1} parent=1 // pred_region
      %s48 = ssub.s32 16, 16
      %49 = vsyncadd [#allocation6], %s48
      %s51 = sshll.u32 [#allocation5], 4
      %s52 = int_to_ptr.vmem [resolvable:$true] %s51
      %54 = dma.hbm_to_vmem [thread:$0]  %s6, 16, %s52, [#allocation6]
    $region29: #{tpu_custom_call.1} parent=1 // pred_fallthru
      _
    // Predicated region
    $region30: #{tpu_custom_call.1} parent=1 // pred_check
      _
    $region31: #{tpu_custom_call.1} parent=1 // pred_check_branch
      %56 = sbr.rel (0) target = $region33
    $region32: #{tpu_custom_call.1} parent=1 // pred_region
      _
    $region33: #{tpu_custom_call.1} parent=1 // pred_fallthru
      _
    // Predicated region
    $region34: #{tpu_custom_call.1} parent=1 // pred_check
      _
    $region35: #{tpu_custom_call.1} parent=1 // pred_check_branch
      %58 = sbr.rel (0) target = $region37
    $region36: #{tpu_custom_call.1} parent=1 // pred_region
      %s60 = ssub.s32 16, 16
      %61 = vsyncadd [#allocation6], %s60
      %s63 = sshll.u32 [#allocation7], 4
      %s64 = int_to_ptr.vmem [resolvable:$true] %s63
      %66 = dma.hbm_to_vmem [thread:$0]  %s8, 16, %s64, [#allocation6]
    $region37: #{tpu_custom_call.1} parent=1 // pred_fallthru
      _
    // Predicated region
    $region38: #{tpu_custom_call.1} parent=1 // pred_check
      _
    $region39: #{tpu_custom_call.1} parent=1 // pred_check_branch
      %68 = sbr.rel (0) target = $region41
    $region40: #{tpu_custom_call.1} parent=1 // pred_region
      _
    $region41: #{tpu_custom_call.1} parent=1 // pred_fallthru
      _
    // Predicated region
    $region42: #{tpu_custom_call.1} parent=1 // pred_check
      _
    $region43: #{tpu_custom_call.1} parent=1 // pred_check_branch
      %70 = sbr.rel (0) target = $region45
    $region44: #{tpu_custom_call.1} parent=1 // pred_region
      _
    $region45: #{tpu_custom_call.1} parent=1 // pred_fallthru
      _
    // Predicated region
    $region46: #{tpu_custom_call.1} parent=1 // pred_check
      _
    $region47: #{tpu_custom_call.1} parent=1 // pred_check_branch
      %72 = sbr.rel (0) target = $region49
    $region48: #{tpu_custom_call.1} parent=1 // pred_region
      _
    $region49: #{tpu_custom_call.1} parent=1 // pred_fallthru
      _
    // Predicated region
    $region50: #{tpu_custom_call.1} parent=1 // pred_check
      _
    $region51: #{tpu_custom_call.1} parent=1 // pred_check_branch
      %74 = sbr.rel (0) target = $region53
    $region52: #{tpu_custom_call.1} parent=1 // pred_region
      _
    $region53: #{tpu_custom_call.1} parent=1 // pred_fallthru
      _
    // Predicated region
    $region54: #{tpu_custom_call.1} parent=1 // pred_check
      _
    $region55: #{tpu_custom_call.1} parent=1 // pred_check_branch
      %76 = sbr.rel (0) target = $region57
    $region56: #{tpu_custom_call.1} parent=1 // pred_region
      _
    $region57: #{tpu_custom_call.1} parent=1 // pred_fallthru
      _
    // Predicated region
    $region58: #{tpu_custom_call.1} parent=1 // pred_check
      _
    $region59: #{tpu_custom_call.1} parent=1 // pred_check_branch
      %78 = sbr.rel (0) target = $region61
    $region60: #{tpu_custom_call.1} parent=1 // pred_region
      _
    $region61: #{tpu_custom_call.1} parent=1 // pred_fallthru
      _
    // Predicated region
    $region62: #{tpu_custom_call.1} parent=1 // pred_check
      _
    $region63: #{tpu_custom_call.1} parent=1 // pred_check_branch
      %80 = sbr.rel (0) target = $region65
    $region64: #{tpu_custom_call.1} parent=1 // pred_region
      _
    $region65: #{tpu_custom_call.1} parent=1 // pred_fallthru
      _
    // Predicated region
    $region66: #{tpu_custom_call.1} parent=1 // pred_check
      _
    $region67: #{tpu_custom_call.1} parent=1 // pred_check_branch
      %82 = sbr.rel (0) target = $region69
    $region68: #{tpu_custom_call.1} parent=1 // pred_region
      _
    $region69: #{tpu_custom_call.1} parent=1 // pred_fallthru
      _
    // Predicated region
    $region70: #{tpu_custom_call.1} parent=1 // pred_check
      _
    $region71: #{tpu_custom_call.1} parent=1 // pred_check_branch
      %84 = sbr.rel (0) target = $region73
    $region72: #{tpu_custom_call.1} parent=1 // pred_region
      %85 = dma.done [#allocation3], 16
    $region73: #{tpu_custom_call.1} parent=1 // pred_fallthru
      _
    // Predicated region
    $region74: #{tpu_custom_call.1} parent=1 // pred_check
      _
    $region75: #{tpu_custom_call.1} parent=1 // pred_check_branch
      %87 = sbr.rel (0) target = $region77
    $region76: #{tpu_custom_call.1} parent=1 // pred_region
      %88 = dma.done [#allocation6], 16
    $region77: #{tpu_custom_call.1} parent=1 // pred_fallthru
      _
    // Predicated region
    $region78: #{tpu_custom_call.1} parent=1 // pred_check
      _
    $region79: #{tpu_custom_call.1} parent=1 // pred_check_branch
      %90 = sbr.rel (0) target = $region81
    $region80: #{tpu_custom_call.1} parent=1 // pred_region
      %91 = dma.done [#allocation6], 16
    $region81: #{tpu_custom_call.1} parent=1 // pred_fallthru
      _
    %v93 = vld [vmem:[%s0] sm:$0xff]
    %v94 = vld [vmem:[%s0 + $0x8] sm:$0xff]
    %vm95 = vcmask 261120
    %v96 = vsel %vm95, %v93, 0.0
    %97 = vadd.xlane.f32.xlu0 %v96
    %v98 = vpop.xlane.xlu0 %97
    %v99 = vsel %vm95, %v94, 0.0
    %100 = vadd.xlane.f32.xlu0 %v99
    %v101 = vpop.xlane.xlu0 %100
    %v102 = vrcp.pop 32.0
    %v103 = vmul.f32 %v98, %v102
    %v104 = vmul.f32 %v101, %v102
    %v105 = vsub.f32 %v93, %v103
    %v106 = vsub.f32 %v94, %v104
    %v107 = vmul.f32 %v105, %v105
    %v108 = vmul.f32 %v106, %v106
    %v109 = vsel %vm95, %v107, 0.0
    %110 = vadd.xlane.f32.xlu0 %v109
    %v111 = vpop.xlane.xlu0 %110
    %v112 = vsel %vm95, %v108, 0.0
    %113 = vadd.xlane.f32.xlu0 %v112
    %v114 = vpop.xlane.xlu0 %113
    %v115 = vmul.f32 %v111, %v102
    %v116 = vmul.f32 %v114, %v102
    %v117 = vadd.f32 %v115, 1e-05
    %v118 = vadd.f32 %v116, 1e-05
    %v119 = vrsqrt.pop %v117
    %v120 = vrsqrt.pop %v118
    %v121 = vmul.f32 %v105, %v119
    %v122 = vmul.f32 %v106, %v120
    %v123 = vld [vmem:[%s1] sm:$0x1]
    %v125 = vlaneseq
    %v126 = vshrl.u32 %v125, 7
    %v127 = vsub.s32 0, %v126
    %v128 = vrot.slane %v123, %v127
    %v130 = vmul.f32 %v121, %v128
    %v131 = vmul.f32 %v122, %v128
    %v132 = vld [vmem:[%s2] sm:$0x1]
    %v134 = vlaneseq
    %v135 = vshrl.u32 %v134, 7
    %v136 = vsub.s32 0, %v135
    %v137 = vrot.slane %v132, %v136
    %v139 = vadd.f32 %v130, %v137
    %v140 = vadd.f32 %v131, %v137
    %v141 = vpack.c.bf16 %v140, %v139
    %v142 = vld [vmem:[%s3] sm:$0xf]
    %v143 = vld [vmem:[%s3 + $0x4] sm:$0xf]
    %v144 = vld [vmem:[%s3 + $0x8] sm:$0xf]
    %v145 = vld [vmem:[%s3 + $0xc] sm:$0xf]
    %v146 = vld [vmem:[#allocation2] sm:$0x1]
    %v148 = vlaneseq
    %v149 = vshrl.u32 %v148, 7
    %v150 = vsub.s32 0, %v149
    %v151 = vrot.slane %v146, %v150
    %v157 = vunpack.c.l.b16 %v142
    %v158 = vunpack.c.l.b16 %v143
    %v159 = vunpack.c.l.b16 %v144
    %v160 = vunpack.c.l.b16 %v145
    %v161 = vpack.c.b16 %v158, %v157
    %v162 = vpack.c.b16 %v160, %v159
    %v166 = vsel %vm95, %v141, 0
    %168 = vmatprep.subr.bf16.mxu0 0
    %169 = vmatpush1.bf16.msra.mxu0 %v161
    %170 = vmatprep.subr.bf16.mxu0 0
    %171 = vmatpush1.bf16.msra.mxu0 %v162
    %172 = vmatprep.subr.bf16.mxu0 0
    %173 = vmatpush1.bf16.msra.mxu0 0
    %174 = vmatprep.subr.bf16.mxu0 0
    %175 = vmatpush1.bf16.msra.mxu0 0
    %176 = vmatprep.subr.bf16.mxu0 0
    %177 = vmatpush1.bf16.msra.mxu0 0
    %178 = vmatprep.subr.bf16.mxu0 0
    %179 = vmatpush1.bf16.msra.mxu0 0
    %180 = vmatprep.subr.bf16.mxu0 0
    %181 = vmatpush1.bf16.msra.mxu0 0
    %182 = vmatprep.subr.bf16.mxu0 0
    %183 = vmatpush1.bf16.msra.mxu0 0
    %184 = vmatprep.subr.bf16.mxu0 0
    %185 = vmatpush1.bf16.msra.mxu0 0
    %186 = vmatprep.subr.bf16.mxu0 0
    %187 = vmatpush1.bf16.msra.mxu0 0
    %188 = vmatprep.subr.bf16.mxu0 0
    %189 = vmatpush1.bf16.msra.mxu0 0
    %190 = vmatprep.subr.bf16.mxu0 0
    %191 = vmatpush1.bf16.msra.mxu0 0
    %192 = vmatprep.subr.bf16.mxu0 0
    %193 = vmatpush1.bf16.msra.mxu0 0
    %194 = vmatprep.subr.bf16.mxu0 0
    %195 = vmatpush1.bf16.msra.mxu0 0
    %196 = vmatprep.subr.bf16.mxu0 0
    %197 = vmatpush1.bf16.msra.mxu0 0
    %198 = vmatprep.subr.bf16.mxu0 0
    %199 = vmatpush1.bf16.msra.mxu0 0
    %200 = vmatprep.mubr.bf16.mxu0 0
    %201 = vmatmul.mubr.bf16.gmra.mrb[0].mxu0 %v166
    %v202 = vpop.f32.mrb[0].mxu0
    %v203 = vadd.f32 %v151, %v202
    %v204 = vpop.f32.mrb[0].mxu0
    %v205 = vpop.f32.mrb[0].mxu0
    %v206 = vadd.f32 %v151, %v205
    %v207 = vpop.f32.mrb[0].mxu0
    %208 = vdwg.mxu0
    %v209 = vpack.c.bf16 %v206, %v203
    %v210 = vld [vmem:[%s5] sm:$0xf]
    %v211 = vld [vmem:[%s5 + $0x4] sm:$0xf]
    %v212 = vld [vmem:[%s5 + $0x8] sm:$0xf]
    %v213 = vld [vmem:[%s5 + $0xc] sm:$0xf]
    %v214 = vld [vmem:[#allocation5] sm:$0x1]
    %v216 = vlaneseq
    %v217 = vshrl.u32 %v216, 7
    %v218 = vsub.s32 0, %v217
    %v219 = vrot.slane %v214, %v218
    %v225 = vunpack.c.l.b16 %v210
    %v226 = vunpack.c.l.b16 %v211
    %v227 = vunpack.c.l.b16 %v212
    %v228 = vunpack.c.l.b16 %v213
    %v229 = vpack.c.b16 %v226, %v225
    %v230 = vpack.c.b16 %v228, %v227
    %233 = vmatprep.subr.bf16.mxu0 0
    %234 = vmatpush1.bf16.msra.mxu0 %v229
    %235 = vmatprep.subr.bf16.mxu0 0
    %236 = vmatpush1.bf16.msra.mxu0 %v230
    %237 = vmatprep.subr.bf16.mxu0 0
    %238 = vmatpush1.bf16.msra.mxu0 0
    %239 = vmatprep.subr.bf16.mxu0 0
    %240 = vmatpush1.bf16.msra.mxu0 0
    %241 = vmatprep.subr.bf16.mxu0 0
    %242 = vmatpush1.bf16.msra.mxu0 0
    %243 = vmatprep.subr.bf16.mxu0 0
    %244 = vmatpush1.bf16.msra.mxu0 0
    %245 = vmatprep.subr.bf16.mxu0 0
    %246 = vmatpush1.bf16.msra.mxu0 0
    %247 = vmatprep.subr.bf16.mxu0 0
    %248 = vmatpush1.bf16.msra.mxu0 0
    %249 = vmatprep.subr.bf16.mxu0 0
    %250 = vmatpush1.bf16.msra.mxu0 0
    %251 = vmatprep.subr.bf16.mxu0 0
    %252 = vmatpush1.bf16.msra.mxu0 0
    %253 = vmatprep.subr.bf16.mxu0 0
    %254 = vmatpush1.bf16.msra.mxu0 0
    %255 = vmatprep.subr.bf16.mxu0 0
    %256 = vmatpush1.bf16.msra.mxu0 0
    %257 = vmatprep.subr.bf16.mxu0 0
    %258 = vmatpush1.bf16.msra.mxu0 0
    %259 = vmatprep.subr.bf16.mxu0 0
    %260 = vmatpush1.bf16.msra.mxu0 0
    %261 = vmatprep.subr.bf16.mxu0 0
    %262 = vmatpush1.bf16.msra.mxu0 0
    %263 = vmatprep.subr.bf16.mxu0 0
    %264 = vmatpush1.bf16.msra.mxu0 0
    %265 = vmatprep.mubr.bf16.mxu0 0
    %266 = vmatmul.mubr.bf16.gmra.mrb[0].mxu0 %v166
    %v267 = vpop.f32.mrb[0].mxu0
    %v268 = vadd.f32 %v219, %v267
    %v269 = vpop.f32.mrb[0].mxu0
    %v270 = vpop.f32.mrb[0].mxu0
    %v271 = vadd.f32 %v219, %v270
    %v272 = vpop.f32.mrb[0].mxu0
    %273 = vdwg.mxu0
    %v274 = vpack.c.bf16 %v271, %v268
    %v275 = vld [vmem:[%s7] sm:$0xf]
    %v276 = vld [vmem:[%s7 + $0x4] sm:$0xf]
    %v277 = vld [vmem:[%s7 + $0x8] sm:$0xf]
    %v278 = vld [vmem:[%s7 + $0xc] sm:$0xf]
    %v279 = vld [vmem:[#allocation7] sm:$0x1]
    %v281 = vlaneseq
    %v282 = vshrl.u32 %v281, 7
    %v283 = vsub.s32 0, %v282
    %v284 = vrot.slane %v279, %v283
    %v290 = vunpack.c.l.b16 %v275
    %v291 = vunpack.c.l.b16 %v276
    %v292 = vunpack.c.l.b16 %v277
    %v293 = vunpack.c.l.b16 %v278
    %v294 = vpack.c.b16 %v291, %v290
    %v295 = vpack.c.b16 %v293, %v292
    %298 = vmatprep.subr.bf16.mxu0 0
    %299 = vmatpush1.bf16.msra.mxu0 %v294
    %300 = vmatprep.subr.bf16.mxu0 0
    %301 = vmatpush1.bf16.msra.mxu0 %v295
    %302 = vmatprep.subr.bf16.mxu0 0
    %303 = vmatpush1.bf16.msra.mxu0 0
    %304 = vmatprep.subr.bf16.mxu0 0
    %305 = vmatpush1.bf16.msra.mxu0 0
    %306 = vmatprep.subr.bf16.mxu0 0
    %307 = vmatpush1.bf16.msra.mxu0 0
    %308 = vmatprep.subr.bf16.mxu0 0
    %309 = vmatpush1.bf16.msra.mxu0 0
    %310 = vmatprep.subr.bf16.mxu0 0
    %311 = vmatpush1.bf16.msra.mxu0 0
    %312 = vmatprep.subr.bf16.mxu0 0
    %313 = vmatpush1.bf16.msra.mxu0 0
    %314 = vmatprep.subr.bf16.mxu0 0
    %315 = vmatpush1.bf16.msra.mxu0 0
    %316 = vmatprep.subr.bf16.mxu0 0
    %317 = vmatpush1.bf16.msra.mxu0 0
    %318 = vmatprep.subr.bf16.mxu0 0
    %319 = vmatpush1.bf16.msra.mxu0 0
    %320 = vmatprep.subr.bf16.mxu0 0
    %321 = vmatpush1.bf16.msra.mxu0 0
    %322 = vmatprep.subr.bf16.mxu0 0
    %323 = vmatpush1.bf16.msra.mxu0 0
    %324 = vmatprep.subr.bf16.mxu0 0
    %325 = vmatpush1.bf16.msra.mxu0 0
    %326 = vmatprep.subr.bf16.mxu0 0
    %327 = vmatpush1.bf16.msra.mxu0 0
    %328 = vmatprep.subr.bf16.mxu0 0
    %329 = vmatpush1.bf16.msra.mxu0 0
    %330 = vmatprep.mubr.bf16.mxu0 0
    %331 = vmatmul.mubr.bf16.gmra.mrb[0].mxu0 %v166
    %v332 = vpop.f32.mrb[0].mxu0
    %v333 = vadd.f32 %v284, %v332
    %v334 = vpop.f32.mrb[0].mxu0
    %v335 = vpop.f32.mrb[0].mxu0
    %v336 = vadd.f32 %v284, %v335
    %v337 = vpop.f32.mrb[0].mxu0
    %338 = vdwg.mxu0
    %v339 = vpack.c.bf16 %v336, %v333
    %v341 = vunpack.c.l.b16 %v209
    %v342 = vunpack.c.h.b16 %v209
    %v343 = vpack.c.b16 %v341, %v341
    %v344 = vpack.c.b16 %v342, %v342
    %v346 = vunpack.c.l.b16 %v274
    %v347 = vunpack.c.h.b16 %v274
    %v348 = vpack.c.b16 %v346, %v346
    %v349 = vpack.c.b16 %v347, %v347
    %v351 = vunpack.c.l.b16 %v339
    %v352 = vunpack.c.h.b16 %v339
    %v353 = vpack.c.b16 %v351, %v351
    %v354 = vpack.c.b16 %v352, %v352
    %v355 = vlaneseq
    %v356 = vshrl.u32 %v355, 7
    %v357 = vlaneseq
    %v358 = vand.u32 %v357, 127
    %vm359 = vcmp.gt.s32.totalorder %v358, %v356
    %v360 = vsel %vm359, -1e+30, 0.0
    %vm361 = vcmask 64512
    %v363 = vsel %vm361, %v343, 0
    %v366 = vsel %vm361, %v348, 0
    %368 = vmatprep.subr.bf16.mxu0 0
    %369 = vmatpush1.bf16.xpose.msra.mxu0 %v366
    %370 = vmatprep.subr.bf16.mxu0 0
    %371 = vmatpush1.bf16.xpose.msra.mxu0 0
    %372 = vmatprep.subr.bf16.mxu0 0
    %373 = vmatpush1.bf16.xpose.msra.mxu0 0
    %374 = vmatprep.subr.bf16.mxu0 0
    %375 = vmatpush1.bf16.xpose.msra.mxu0 0
    %376 = vmatprep.subr.bf16.mxu0 0
    %377 = vmatpush1.bf16.xpose.msra.mxu0 0
    %378 = vmatprep.subr.bf16.mxu0 0
    %379 = vmatpush1.bf16.xpose.msra.mxu0 0
    %380 = vmatprep.subr.bf16.mxu0 0
    %381 = vmatpush1.bf16.xpose.msra.mxu0 0
    %382 = vmatprep.subr.bf16.mxu0 0
    %383 = vmatpush1.bf16.xpose.msra.mxu0 0
    %384 = vmatprep.subr.bf16.mxu0 0
    %385 = vmatpush1.bf16.xpose.msra.mxu0 0
    %386 = vmatprep.subr.bf16.mxu0 0
    %387 = vmatpush1.bf16.xpose.msra.mxu0 0
    %388 = vmatprep.subr.bf16.mxu0 0
    %389 = vmatpush1.bf16.xpose.msra.mxu0 0
    %390 = vmatprep.subr.bf16.mxu0 0
    %391 = vmatpush1.bf16.xpose.msra.mxu0 0
    %392 = vmatprep.subr.bf16.mxu0 0
    %393 = vmatpush1.bf16.xpose.msra.mxu0 0
    %394 = vmatprep.subr.bf16.mxu0 0
    %395 = vmatpush1.bf16.xpose.msra.mxu0 0
    %396 = vmatprep.subr.bf16.mxu0 0
    %397 = vmatpush1.bf16.xpose.msra.mxu0 0
    %398 = vmatprep.subr.bf16.mxu0 0
    %399 = vmatpush1.bf16.xpose.msra.mxu0 0
    %400 = vmatprep.mubr.bf16.mxu0 0
    %401 = vmatmul.mubr.bf16.gmra.mrb[0].mxu0 %v363
    %v402 = vpop.f32.mrb[0].mxu0
    %v403 = vadd.f32 %v360, %v402
    %v404 = vpop.f32.mrb[0].mxu0
    %v405 = vpop.f32.mrb[0].mxu0
    %v406 = vpop.f32.mrb[0].mxu0
    %407 = vdwg.mxu0
    %v409 = vsel %vm361, %v344, 0
    %v412 = vsel %vm361, %v349, 0
    %414 = vmatprep.subr.bf16.mxu0 0
    %415 = vmatpush1.bf16.xpose.msra.mxu0 %v412
    %416 = vmatprep.subr.bf16.mxu0 0
    %417 = vmatpush1.bf16.xpose.msra.mxu0 0
    %418 = vmatprep.subr.bf16.mxu0 0
    %419 = vmatpush1.bf16.xpose.msra.mxu0 0
    %420 = vmatprep.subr.bf16.mxu0 0
    %421 = vmatpush1.bf16.xpose.msra.mxu0 0
    %422 = vmatprep.subr.bf16.mxu0 0
    %423 = vmatpush1.bf16.xpose.msra.mxu0 0
    %424 = vmatprep.subr.bf16.mxu0 0
    %425 = vmatpush1.bf16.xpose.msra.mxu0 0
    %426 = vmatprep.subr.bf16.mxu0 0
    %427 = vmatpush1.bf16.xpose.msra.mxu0 0
    %428 = vmatprep.subr.bf16.mxu0 0
    %429 = vmatpush1.bf16.xpose.msra.mxu0 0
    %430 = vmatprep.subr.bf16.mxu0 0
    %431 = vmatpush1.bf16.xpose.msra.mxu0 0
    %432 = vmatprep.subr.bf16.mxu0 0
    %433 = vmatpush1.bf16.xpose.msra.mxu0 0
    %434 = vmatprep.subr.bf16.mxu0 0
    %435 = vmatpush1.bf16.xpose.msra.mxu0 0
    %436 = vmatprep.subr.bf16.mxu0 0
    %437 = vmatpush1.bf16.xpose.msra.mxu0 0
    %438 = vmatprep.subr.bf16.mxu0 0
    %439 = vmatpush1.bf16.xpose.msra.mxu0 0
    %440 = vmatprep.subr.bf16.mxu0 0
    %441 = vmatpush1.bf16.xpose.msra.mxu0 0
    %442 = vmatprep.subr.bf16.mxu0 0
    %443 = vmatpush1.bf16.xpose.msra.mxu0 0
    %444 = vmatprep.subr.bf16.mxu0 0
    %445 = vmatpush1.bf16.xpose.msra.mxu0 0
    %446 = vmatprep.mubr.bf16.mxu0 0
    %447 = vmatmul.mubr.bf16.gmra.mrb[0].mxu0 %v409
    %v448 = vpop.f32.mrb[0].mxu0
    %v449 = vadd.f32 %v360, %v448
    %v450 = vpop.f32.mrb[0].mxu0
    %v451 = vpop.f32.mrb[0].mxu0
    %v452 = vpop.f32.mrb[0].mxu0
    %453 = vdwg.mxu0
    %v454 = vsel %vm361, %v403, -inf
    %455 = vmax.xlane.f32.xlu0 %v454
    %v456 = vpop.xlane.xlu0 %455
    %v457 = vsel %vm361, %v449, -inf
    %458 = vmax.xlane.f32.xlu0 %v457
    %v459 = vpop.xlane.xlu0 %458
    %v460 = vsub.f32 %v403, %v456
    %v461 = vsub.f32 %v449, %v459
    %v462 = vmul.f32 %v460, 1.442695
    %v463 = vpow.pop %v462
    %v464 = vmul.f32 %v461, 1.442695
    %v465 = vpow.pop %v464
    %v466 = vsel %vm361, %v463, 0.0
    %467 = vadd.xlane.f32.xlu0 %v466
    %v468 = vpop.xlane.xlu0 %467
    %v469 = vsel %vm361, %v465, 0.0
    %470 = vadd.xlane.f32.xlu0 %v469
    %v471 = vpop.xlane.xlu0 %470
    %v472 = vrcp.pop %v468
    %v473 = vrcp.pop %v471
    %v474 = vmul.f32 %v463, %v472
    %v475 = vmul.f32 %v465, %v473
    %v476 = vpack.c.bf16 %v474, %v474
    %v477 = vpack.c.bf16 %v475, %v475
    %v479 = vsel %vm361, %v476, 0
    %vm481 = vcmask 1043456
    %v483 = vsel %vm481, %v353, 0
    %485 = vmatprep.subr.bf16.mxu0 0
    %486 = vmatpush1.bf16.msra.mxu0 %v483
    %487 = vmatprep.subr.bf16.mxu0 0
    %488 = vmatpush1.bf16.msra.mxu0 0
    %489 = vmatprep.subr.bf16.mxu0 0
    %490 = vmatpush1.bf16.msra.mxu0 0
    %491 = vmatprep.subr.bf16.mxu0 0
    %492 = vmatpush1.bf16.msra.mxu0 0
    %493 = vmatprep.subr.bf16.mxu0 0
    %494 = vmatpush1.bf16.msra.mxu0 0
    %495 = vmatprep.subr.bf16.mxu0 0
    %496 = vmatpush1.bf16.msra.mxu0 0
    %497 = vmatprep.subr.bf16.mxu0 0
    %498 = vmatpush1.bf16.msra.mxu0 0
    %499 = vmatprep.subr.bf16.mxu0 0
    %500 = vmatpush1.bf16.msra.mxu0 0
    %501 = vmatprep.subr.bf16.mxu0 0
    %502 = vmatpush1.bf16.msra.mxu0 0
    %503 = vmatprep.subr.bf16.mxu0 0
    %504 = vmatpush1.bf16.msra.mxu0 0
    %505 = vmatprep.subr.bf16.mxu0 0
    %506 = vmatpush1.bf16.msra.mxu0 0
    %507 = vmatprep.subr.bf16.mxu0 0
    %508 = vmatpush1.bf16.msra.mxu0 0
    %509 = vmatprep.subr.bf16.mxu0 0
    %510 = vmatpush1.bf16.msra.mxu0 0
    %511 = vmatprep.subr.bf16.mxu0 0
    %512 = vmatpush1.bf16.msra.mxu0 0
    %513 = vmatprep.subr.bf16.mxu0 0
    %514 = vmatpush1.bf16.msra.mxu0 0
    %515 = vmatprep.subr.bf16.mxu0 0
    %516 = vmatpush1.bf16.msra.mxu0 0
    %517 = vmatprep.mubr.bf16.mxu0 0
    %518 = vmatmul.mubr.bf16.gmra.mrb[0].mxu0 %v479
    %v519 = vpop.f32.mrb[0].mxu0
    %v520 = vadd.f32 0.0, %v519
    %v521 = vpop.f32.mrb[0].mxu0
    %v522 = vpop.f32.mrb[0].mxu0
    %v523 = vpop.f32.mrb[0].mxu0
    %524 = vdwg.mxu0
    %v526 = vsel %vm361, %v477, 0
    %v529 = vsel %vm481, %v354, 0
    %531 = vmatprep.subr.bf16.mxu0 0
    %532 = vmatpush1.bf16.msra.mxu0 %v529
    %533 = vmatprep.subr.bf16.mxu0 0
    %534 = vmatpush1.bf16.msra.mxu0 0
    %535 = vmatprep.subr.bf16.mxu0 0
    %536 = vmatpush1.bf16.msra.mxu0 0
    %537 = vmatprep.subr.bf16.mxu0 0
    %538 = vmatpush1.bf16.msra.mxu0 0
    %539 = vmatprep.subr.bf16.mxu0 0
    %540 = vmatpush1.bf16.msra.mxu0 0
    %541 = vmatprep.subr.bf16.mxu0 0
    %542 = vmatpush1.bf16.msra.mxu0 0
    %543 = vmatprep.subr.bf16.mxu0 0
    %544 = vmatpush1.bf16.msra.mxu0 0
    %545 = vmatprep.subr.bf16.mxu0 0
    %546 = vmatpush1.bf16.msra.mxu0 0
    %547 = vmatprep.subr.bf16.mxu0 0
    %548 = vmatpush1.bf16.msra.mxu0 0
    %549 = vmatprep.subr.bf16.mxu0 0
    %550 = vmatpush1.bf16.msra.mxu0 0
    %551 = vmatprep.subr.bf16.mxu0 0
    %552 = vmatpush1.bf16.msra.mxu0 0
    %553 = vmatprep.subr.bf16.mxu0 0
    %554 = vmatpush1.bf16.msra.mxu0 0
    %555 = vmatprep.subr.bf16.mxu0 0
    %556 = vmatpush1.bf16.msra.mxu0 0
    %557 = vmatprep.subr.bf16.mxu0 0
    %558 = vmatpush1.bf16.msra.mxu0 0
    %559 = vmatprep.subr.bf16.mxu0 0
    %560 = vmatpush1.bf16.msra.mxu0 0
    %561 = vmatprep.subr.bf16.mxu0 0
    %562 = vmatpush1.bf16.msra.mxu0 0
    %563 = vmatprep.mubr.bf16.mxu0 0
    %564 = vmatmul.mubr.bf16.gmra.mrb[0].mxu0 %v526
    %v565 = vpop.f32.mrb[0].mxu0
    %v566 = vadd.f32 0.0, %v565
    %v567 = vpop.f32.mrb[0].mxu0
    %v568 = vpop.f32.mrb[0].mxu0
    %v569 = vpop.f32.mrb[0].mxu0
    %570 = vdwg.mxu0
    %v571 = vpack.c.bf16 %v566, %v520
    %v572 = vld [vmem:[%s9] sm:$0xf]
    %573 = vrot.lane.b32.xlu0 %v343, 120
    %v574 = vpop.permute.xlu0 %573
    %575 = vrot.lane.b32.xlu0 %v348, 120
    %v576 = vpop.permute.xlu0 %575
    %v578 = vsel %vm361, %v574, 0
    %v581 = vsel %vm361, %v576, 0
    %583 = vmatprep.subr.bf16.mxu0 0
    %584 = vmatpush1.bf16.xpose.msra.mxu0 %v581
    %585 = vmatprep.subr.bf16.mxu0 0
    %586 = vmatpush1.bf16.xpose.msra.mxu0 0
    %587 = vmatprep.subr.bf16.mxu0 0
    %588 = vmatpush1.bf16.xpose.msra.mxu0 0
    %589 = vmatprep.subr.bf16.mxu0 0
    %590 = vmatpush1.bf16.xpose.msra.mxu0 0
    %591 = vmatprep.subr.bf16.mxu0 0
    %592 = vmatpush1.bf16.xpose.msra.mxu0 0
    %593 = vmatprep.subr.bf16.mxu0 0
    %594 = vmatpush1.bf16.xpose.msra.mxu0 0
    %595 = vmatprep.subr.bf16.mxu0 0
    %596 = vmatpush1.bf16.xpose.msra.mxu0 0
    %597 = vmatprep.subr.bf16.mxu0 0
    %598 = vmatpush1.bf16.xpose.msra.mxu0 0
    %599 = vmatprep.subr.bf16.mxu0 0
    %600 = vmatpush1.bf16.xpose.msra.mxu0 0
    %601 = vmatprep.subr.bf16.mxu0 0
    %602 = vmatpush1.bf16.xpose.msra.mxu0 0
    %603 = vmatprep.subr.bf16.mxu0 0
    %604 = vmatpush1.bf16.xpose.msra.mxu0 0
    %605 = vmatprep.subr.bf16.mxu0 0
    %606 = vmatpush1.bf16.xpose.msra.mxu0 0
    %607 = vmatprep.subr.bf16.mxu0 0
    %608 = vmatpush1.bf16.xpose.msra.mxu0 0
    %609 = vmatprep.subr.bf16.mxu0 0
    %610 = vmatpush1.bf16.xpose.msra.mxu0 0
    %611 = vmatprep.subr.bf16.mxu0 0
    %612 = vmatpush1.bf16.xpose.msra.mxu0 0
    %613 = vmatprep.subr.bf16.mxu0 0
    %614 = vmatpush1.bf16.xpose.msra.mxu0 0
    %615 = vmatprep.mubr.bf16.mxu0 0
    %616 = vmatmul.mubr.bf16.gmra.mrb[0].mxu0 %v578
    %v617 = vpop.f32.mrb[0].mxu0
    %v618 = vadd.f32 %v360, %v617
    %v619 = vpop.f32.mrb[0].mxu0
    %v620 = vpop.f32.mrb[0].mxu0
    %v621 = vpop.f32.mrb[0].mxu0
    %622 = vdwg.mxu0
    %623 = vrot.lane.b32.xlu0 %v344, 120
    %v624 = vpop.permute.xlu0 %623
    %625 = vrot.lane.b32.xlu0 %v349, 120
    %v626 = vpop.permute.xlu0 %625
    %v628 = vsel %vm361, %v624, 0
    %v631 = vsel %vm361, %v626, 0
    %633 = vmatprep.subr.bf16.mxu0 0
    %634 = vmatpush1.bf16.xpose.msra.mxu0 %v631
    %635 = vmatprep.subr.bf16.mxu0 0
    %636 = vmatpush1.bf16.xpose.msra.mxu0 0
    %637 = vmatprep.subr.bf16.mxu0 0
    %638 = vmatpush1.bf16.xpose.msra.mxu0 0
    %639 = vmatprep.subr.bf16.mxu0 0
    %640 = vmatpush1.bf16.xpose.msra.mxu0 0
    %641 = vmatprep.subr.bf16.mxu0 0
    %642 = vmatpush1.bf16.xpose.msra.mxu0 0
    %643 = vmatprep.subr.bf16.mxu0 0
    %644 = vmatpush1.bf16.xpose.msra.mxu0 0
    %645 = vmatprep.subr.bf16.mxu0 0
    %646 = vmatpush1.bf16.xpose.msra.mxu0 0
    %647 = vmatprep.subr.bf16.mxu0 0
    %648 = vmatpush1.bf16.xpose.msra.mxu0 0
    %649 = vmatprep.subr.bf16.mxu0 0
    %650 = vmatpush1.bf16.xpose.msra.mxu0 0
    %651 = vmatprep.subr.bf16.mxu0 0
    %652 = vmatpush1.bf16.xpose.msra.mxu0 0
    %653 = vmatprep.subr.bf16.mxu0 0
    %654 = vmatpush1.bf16.xpose.msra.mxu0 0
    %655 = vmatprep.subr.bf16.mxu0 0
    %656 = vmatpush1.bf16.xpose.msra.mxu0 0
    %657 = vmatprep.subr.bf16.mxu0 0
    %658 = vmatpush1.bf16.xpose.msra.mxu0 0
    %659 = vmatprep.subr.bf16.mxu0 0
    %660 = vmatpush1.bf16.xpose.msra.mxu0 0
    %661 = vmatprep.subr.bf16.mxu0 0
    %662 = vmatpush1.bf16.xpose.msra.mxu0 0
    %663 = vmatprep.subr.bf16.mxu0 0
    %664 = vmatpush1.bf16.xpose.msra.mxu0 0
    %665 = vmatprep.mubr.bf16.mxu0 0
    %666 = vmatmul.mubr.bf16.gmra.mrb[0].mxu0 %v628
    %v667 = vpop.f32.mrb[0].mxu0
    %v668 = vadd.f32 %v360, %v667
    %v669 = vpop.f32.mrb[0].mxu0
    %v670 = vpop.f32.mrb[0].mxu0
    %v671 = vpop.f32.mrb[0].mxu0
    %672 = vdwg.mxu0
    %v673 = vsel %vm361, %v618, -inf
    %674 = vmax.xlane.f32.xlu0 %v673
    %v675 = vpop.xlane.xlu0 %674
    %v676 = vsel %vm361, %v668, -inf
    %677 = vmax.xlane.f32.xlu0 %v676
    %v678 = vpop.xlane.xlu0 %677
    %v679 = vsub.f32 %v618, %v675
    %v680 = vsub.f32 %v668, %v678
    %v681 = vmul.f32 %v679, 1.442695
    %v682 = vpow.pop %v681
    %v683 = vmul.f32 %v680, 1.442695
    %v684 = vpow.pop %v683
    %v685 = vsel %vm361, %v682, 0.0
    %686 = vadd.xlane.f32.xlu0 %v685
    %v687 = vpop.xlane.xlu0 %686
    %v688 = vsel %vm361, %v684, 0.0
    %689 = vadd.xlane.f32.xlu0 %v688
    %v690 = vpop.xlane.xlu0 %689
    %v691 = vrcp.pop %v687
    %v692 = vrcp.pop %v690
    %v693 = vmul.f32 %v682, %v691
    %v694 = vmul.f32 %v684, %v692
    %v695 = vpack.c.bf16 %v693, %v693
    %v696 = vpack.c.bf16 %v694, %v694
    %697 = vrot.lane.b32.xlu0 %v353, 120
    %v698 = vpop.permute.xlu0 %697
    %v700 = vsel %vm361, %v695, 0
    %v703 = vsel %vm481, %v698, 0
    %705 = vmatprep.subr.bf16.mxu0 0
    %706 = vmatpush1.bf16.msra.mxu0 %v703
    %707 = vmatprep.subr.bf16.mxu0 0
    %708 = vmatpush1.bf16.msra.mxu0 0
    %709 = vmatprep.subr.bf16.mxu0 0
    %710 = vmatpush1.bf16.msra.mxu0 0
    %711 = vmatprep.subr.bf16.mxu0 0
    %712 = vmatpush1.bf16.msra.mxu0 0
    %713 = vmatprep.subr.bf16.mxu0 0
    %714 = vmatpush1.bf16.msra.mxu0 0
    %715 = vmatprep.subr.bf16.mxu0 0
    %716 = vmatpush1.bf16.msra.mxu0 0
    %717 = vmatprep.subr.bf16.mxu0 0
    %718 = vmatpush1.bf16.msra.mxu0 0
    %719 = vmatprep.subr.bf16.mxu0 0
    %720 = vmatpush1.bf16.msra.mxu0 0
    %721 = vmatprep.subr.bf16.mxu0 0
    %722 = vmatpush1.bf16.msra.mxu0 0
    %723 = vmatprep.subr.bf16.mxu0 0
    %724 = vmatpush1.bf16.msra.mxu0 0
    %725 = vmatprep.subr.bf16.mxu0 0
    %726 = vmatpush1.bf16.msra.mxu0 0
    %727 = vmatprep.subr.bf16.mxu0 0
    %728 = vmatpush1.bf16.msra.mxu0 0
    %729 = vmatprep.subr.bf16.mxu0 0
    %730 = vmatpush1.bf16.msra.mxu0 0
    %731 = vmatprep.subr.bf16.mxu0 0
    %732 = vmatpush1.bf16.msra.mxu0 0
    %733 = vmatprep.subr.bf16.mxu0 0
    %734 = vmatpush1.bf16.msra.mxu0 0
    %735 = vmatprep.subr.bf16.mxu0 0
    %736 = vmatpush1.bf16.msra.mxu0 0
    %737 = vmatprep.mubr.bf16.mxu0 0
    %738 = vmatmul.mubr.bf16.gmra.mrb[0].mxu0 %v700
    %v739 = vpop.f32.mrb[0].mxu0
    %v740 = vadd.f32 0.0, %v739
    %v741 = vpop.f32.mrb[0].mxu0
    %v742 = vpop.f32.mrb[0].mxu0
    %v743 = vpop.f32.mrb[0].mxu0
    %744 = vdwg.mxu0
    %745 = vrot.lane.b32.xlu0 %v354, 120
    %v746 = vpop.permute.xlu0 %745
    %v748 = vsel %vm361, %v696, 0
    %v751 = vsel %vm481, %v746, 0
    %753 = vmatprep.subr.bf16.mxu0 0
    %754 = vmatpush1.bf16.msra.mxu0 %v751
    %755 = vmatprep.subr.bf16.mxu0 0
    %756 = vmatpush1.bf16.msra.mxu0 0
    %757 = vmatprep.subr.bf16.mxu0 0
    %758 = vmatpush1.bf16.msra.mxu0 0
    %759 = vmatprep.subr.bf16.mxu0 0
    %760 = vmatpush1.bf16.msra.mxu0 0
    %761 = vmatprep.subr.bf16.mxu0 0
    %762 = vmatpush1.bf16.msra.mxu0 0
    %763 = vmatprep.subr.bf16.mxu0 0
    %764 = vmatpush1.bf16.msra.mxu0 0
    %765 = vmatprep.subr.bf16.mxu0 0
    %766 = vmatpush1.bf16.msra.mxu0 0
    %767 = vmatprep.subr.bf16.mxu0 0
    %768 = vmatpush1.bf16.msra.mxu0 0
    %769 = vmatprep.subr.bf16.mxu0 0
    %770 = vmatpush1.bf16.msra.mxu0 0
    %771 = vmatprep.subr.bf16.mxu0 0
    %772 = vmatpush1.bf16.msra.mxu0 0
    %773 = vmatprep.subr.bf16.mxu0 0
    %774 = vmatpush1.bf16.msra.mxu0 0
    %775 = vmatprep.subr.bf16.mxu0 0
    %776 = vmatpush1.bf16.msra.mxu0 0
    %777 = vmatprep.subr.bf16.mxu0 0
    %778 = vmatpush1.bf16.msra.mxu0 0
    %779 = vmatprep.subr.bf16.mxu0 0
    %780 = vmatpush1.bf16.msra.mxu0 0
    %781 = vmatprep.subr.bf16.mxu0 0
    %782 = vmatpush1.bf16.msra.mxu0 0
    %783 = vmatprep.subr.bf16.mxu0 0
    %784 = vmatpush1.bf16.msra.mxu0 0
    %785 = vmatprep.mubr.bf16.mxu0 0
    %786 = vmatmul.mubr.bf16.gmra.mrb[0].mxu0 %v748
    %v787 = vpop.f32.mrb[0].mxu0
    %v788 = vadd.f32 0.0, %v787
    %v789 = vpop.f32.mrb[0].mxu0
    %v790 = vpop.f32.mrb[0].mxu0
    %v791 = vpop.f32.mrb[0].mxu0
    %792 = vdwg.mxu0
    %v793 = vpack.c.bf16 %v788, %v740
    %s794 = scalar_lea.vmem %s9, 4
    %v795 = vld [vmem:[%s794] sm:$0xf]
    %v797 = vsel %vm361, %v793, 0
    %v800 = vsel %vm481, %v795, 0
    %802 = vmatprep.subr.bf16.mxu0 0
    %803 = vmatpush1.bf16.msra.mxu0 %v800
    %804 = vmatprep.subr.bf16.mxu0 0
    %805 = vmatpush1.bf16.msra.mxu0 0
    %806 = vmatprep.subr.bf16.mxu0 0
    %807 = vmatpush1.bf16.msra.mxu0 0
    %808 = vmatprep.subr.bf16.mxu0 0
    %809 = vmatpush1.bf16.msra.mxu0 0
    %810 = vmatprep.subr.bf16.mxu0 0
    %811 = vmatpush1.bf16.msra.mxu0 0
    %812 = vmatprep.subr.bf16.mxu0 0
    %813 = vmatpush1.bf16.msra.mxu0 0
    %814 = vmatprep.subr.bf16.mxu0 0
    %815 = vmatpush1.bf16.msra.mxu0 0
    %816 = vmatprep.subr.bf16.mxu0 0
    %817 = vmatpush1.bf16.msra.mxu0 0
    %818 = vmatprep.subr.bf16.mxu0 0
    %819 = vmatpush1.bf16.msra.mxu0 0
    %820 = vmatprep.subr.bf16.mxu0 0
    %821 = vmatpush1.bf16.msra.mxu0 0
    %822 = vmatprep.subr.bf16.mxu0 0
    %823 = vmatpush1.bf16.msra.mxu0 0
    %824 = vmatprep.subr.bf16.mxu0 0
    %825 = vmatpush1.bf16.msra.mxu0 0
    %826 = vmatprep.subr.bf16.mxu0 0
    %827 = vmatpush1.bf16.msra.mxu0 0
    %828 = vmatprep.subr.bf16.mxu0 0
    %829 = vmatpush1.bf16.msra.mxu0 0
    %830 = vmatprep.subr.bf16.mxu0 0
    %831 = vmatpush1.bf16.msra.mxu0 0
    %832 = vmatprep.subr.bf16.mxu0 0
    %833 = vmatpush1.bf16.msra.mxu0 0
    %834 = vmatprep.mubr.bf16.mxu0 0
    %835 = vmatmul.mubr.bf16.gmra.mrb[0].mxu0 %v797
    %v836 = vpop.f32.mrb[0].mxu0
    %v837 = vadd.f32 0.0, %v836
    %v838 = vpop.f32.mrb[0].mxu0
    %v839 = vpop.f32.mrb[0].mxu0
    %v840 = vadd.f32 0.0, %v839
    %v841 = vpop.f32.mrb[0].mxu0
    %842 = vdwg.mxu0
    %v844 = vsel %vm361, %v571, 0
    %v847 = vsel %vm481, %v572, 0
    %849 = vmatprep.subr.bf16.mxu0 0
    %850 = vmatpush1.bf16.msra.mxu0 %v847
    %851 = vmatprep.subr.bf16.mxu0 0
    %852 = vmatpush1.bf16.msra.mxu0 0
    %853 = vmatprep.subr.bf16.mxu0 0
    %854 = vmatpush1.bf16.msra.mxu0 0
    %855 = vmatprep.subr.bf16.mxu0 0
    %856 = vmatpush1.bf16.msra.mxu0 0
    %857 = vmatprep.subr.bf16.mxu0 0
    %858 = vmatpush1.bf16.msra.mxu0 0
    %859 = vmatprep.subr.bf16.mxu0 0
    %860 = vmatpush1.bf16.msra.mxu0 0
    %861 = vmatprep.subr.bf16.mxu0 0
    %862 = vmatpush1.bf16.msra.mxu0 0
    %863 = vmatprep.subr.bf16.mxu0 0
    %864 = vmatpush1.bf16.msra.mxu0 0
    %865 = vmatprep.subr.bf16.mxu0 0
    %866 = vmatpush1.bf16.msra.mxu0 0
    %867 = vmatprep.subr.bf16.mxu0 0
    %868 = vmatpush1.bf16.msra.mxu0 0
    %869 = vmatprep.subr.bf16.mxu0 0
    %870 = vmatpush1.bf16.msra.mxu0 0
    %871 = vmatprep.subr.bf16.mxu0 0
    %872 = vmatpush1.bf16.msra.mxu0 0
    %873 = vmatprep.subr.bf16.mxu0 0
    %874 = vmatpush1.bf16.msra.mxu0 0
    %875 = vmatprep.subr.bf16.mxu0 0
    %876 = vmatpush1.bf16.msra.mxu0 0
    %877 = vmatprep.subr.bf16.mxu0 0
    %878 = vmatpush1.bf16.msra.mxu0 0
    %879 = vmatprep.subr.bf16.mxu0 0
    %880 = vmatpush1.bf16.msra.mxu0 0
    %881 = vmatprep.mubr.bf16.mxu0 0
    %882 = vmatmul.mubr.bf16.gmra.mrb[0].mxu0 %v844
    %v883 = vpop.f32.mrb[0].mxu0
    %v884 = vadd.f32 %v837, %v883
    %v885 = vpop.f32.mrb[0].mxu0
    %v886 = vpop.f32.mrb[0].mxu0
    %v887 = vadd.f32 %v840, %v886
    %v888 = vpop.f32.mrb[0].mxu0
    %889 = vdwg.mxu0
    %890 = vrot.lane.b32.xlu0 %v343, 112
    %v891 = vpop.permute.xlu0 %890
    %892 = vrot.lane.b32.xlu0 %v348, 112
    %v893 = vpop.permute.xlu0 %892
    %v895 = vsel %vm361, %v891, 0
    %v898 = vsel %vm361, %v893, 0
    %900 = vmatprep.subr.bf16.mxu0 0
    %901 = vmatpush1.bf16.xpose.msra.mxu0 %v898
    %902 = vmatprep.subr.bf16.mxu0 0
    %903 = vmatpush1.bf16.xpose.msra.mxu0 0
    %904 = vmatprep.subr.bf16.mxu0 0
    %905 = vmatpush1.bf16.xpose.msra.mxu0 0
    %906 = vmatprep.subr.bf16.mxu0 0
    %907 = vmatpush1.bf16.xpose.msra.mxu0 0
    %908 = vmatprep.subr.bf16.mxu0 0
    %909 = vmatpush1.bf16.xpose.msra.mxu0 0
    %910 = vmatprep.subr.bf16.mxu0 0
    %911 = vmatpush1.bf16.xpose.msra.mxu0 0
    %912 = vmatprep.subr.bf16.mxu0 0
    %913 = vmatpush1.bf16.xpose.msra.mxu0 0
    %914 = vmatprep.subr.bf16.mxu0 0
    %915 = vmatpush1.bf16.xpose.msra.mxu0 0
    %916 = vmatprep.subr.bf16.mxu0 0
    %917 = vmatpush1.bf16.xpose.msra.mxu0 0
    %918 = vmatprep.subr.bf16.mxu0 0
    %919 = vmatpush1.bf16.xpose.msra.mxu0 0
    %920 = vmatprep.subr.bf16.mxu0 0
    %921 = vmatpush1.bf16.xpose.msra.mxu0 0
    %922 = vmatprep.subr.bf16.mxu0 0
    %923 = vmatpush1.bf16.xpose.msra.mxu0 0
    %924 = vmatprep.subr.bf16.mxu0 0
    %925 = vmatpush1.bf16.xpose.msra.mxu0 0
    %926 = vmatprep.subr.bf16.mxu0 0
    %927 = vmatpush1.bf16.xpose.msra.mxu0 0
    %928 = vmatprep.subr.bf16.mxu0 0
    %929 = vmatpush1.bf16.xpose.msra.mxu0 0
    %930 = vmatprep.subr.bf16.mxu0 0
    %931 = vmatpush1.bf16.xpose.msra.mxu0 0
    %932 = vmatprep.mubr.bf16.mxu0 0
    %933 = vmatmul.mubr.bf16.gmra.mrb[0].mxu0 %v895
    %v934 = vpop.f32.mrb[0].mxu0
    %v935 = vadd.f32 %v360, %v934
    %v936 = vpop.f32.mrb[0].mxu0
    %v937 = vpop.f32.mrb[0].mxu0
    %v938 = vpop.f32.mrb[0].mxu0
    %939 = vdwg.mxu0
    %940 = vrot.lane.b32.xlu0 %v344, 112
    %v941 = vpop.permute.xlu0 %940
    %942 = vrot.lane.b32.xlu0 %v349, 112
    %v943 = vpop.permute.xlu0 %942
    %v945 = vsel %vm361, %v941, 0
    %v948 = vsel %vm361, %v943, 0
    %950 = vmatprep.subr.bf16.mxu0 0
    %951 = vmatpush1.bf16.xpose.msra.mxu0 %v948
    %952 = vmatprep.subr.bf16.mxu0 0
    %953 = vmatpush1.bf16.xpose.msra.mxu0 0
    %954 = vmatprep.subr.bf16.mxu0 0
    %955 = vmatpush1.bf16.xpose.msra.mxu0 0
    %956 = vmatprep.subr.bf16.mxu0 0
    %957 = vmatpush1.bf16.xpose.msra.mxu0 0
    %958 = vmatprep.subr.bf16.mxu0 0
    %959 = vmatpush1.bf16.xpose.msra.mxu0 0
    %960 = vmatprep.subr.bf16.mxu0 0
    %961 = vmatpush1.bf16.xpose.msra.mxu0 0
    %962 = vmatprep.subr.bf16.mxu0 0
    %963 = vmatpush1.bf16.xpose.msra.mxu0 0
    %964 = vmatprep.subr.bf16.mxu0 0
    %965 = vmatpush1.bf16.xpose.msra.mxu0 0
    %966 = vmatprep.subr.bf16.mxu0 0
    %967 = vmatpush1.bf16.xpose.msra.mxu0 0
    %968 = vmatprep.subr.bf16.mxu0 0
    %969 = vmatpush1.bf16.xpose.msra.mxu0 0
    %970 = vmatprep.subr.bf16.mxu0 0
    %971 = vmatpush1.bf16.xpose.msra.mxu0 0
    %972 = vmatprep.subr.bf16.mxu0 0
    %973 = vmatpush1.bf16.xpose.msra.mxu0 0
    %974 = vmatprep.subr.bf16.mxu0 0
    %975 = vmatpush1.bf16.xpose.msra.mxu0 0
    %976 = vmatprep.subr.bf16.mxu0 0
    %977 = vmatpush1.bf16.xpose.msra.mxu0 0
    %978 = vmatprep.subr.bf16.mxu0 0
    %979 = vmatpush1.bf16.xpose.msra.mxu0 0
    %980 = vmatprep.subr.bf16.mxu0 0
    %981 = vmatpush1.bf16.xpose.msra.mxu0 0
    %982 = vmatprep.mubr.bf16.mxu0 0
    %983 = vmatmul.mubr.bf16.gmra.mrb[0].mxu0 %v945
    %v984 = vpop.f32.mrb[0].mxu0
    %v985 = vadd.f32 %v360, %v984
    %v986 = vpop.f32.mrb[0].mxu0
    %v987 = vpop.f32.mrb[0].mxu0
    %v988 = vpop.f32.mrb[0].mxu0
    %989 = vdwg.mxu0
    %v990 = vsel %vm361, %v935, -inf
    %991 = vmax.xlane.f32.xlu0 %v990
    %v992 = vpop.xlane.xlu0 %991
    %v993 = vsel %vm361, %v985, -inf
    %994 = vmax.xlane.f32.xlu0 %v993
    %v995 = vpop.xlane.xlu0 %994
    %v996 = vsub.f32 %v935, %v992
    %v997 = vsub.f32 %v985, %v995
    %v998 = vmul.f32 %v996, 1.442695
    %v999 = vpow.pop %v998
    %v1000 = vmul.f32 %v997, 1.442695
    %v1001 = vpow.pop %v1000
    %v1002 = vsel %vm361, %v999, 0.0
    %1003 = vadd.xlane.f32.xlu0 %v1002
    %v1004 = vpop.xlane.xlu0 %1003
    %v1005 = vsel %vm361, %v1001, 0.0
    %1006 = vadd.xlane.f32.xlu0 %v1005
    %v1007 = vpop.xlane.xlu0 %1006
    %v1008 = vrcp.pop %v1004
    %v1009 = vrcp.pop %v1007
    %v1010 = vmul.f32 %v999, %v1008
    %v1011 = vmul.f32 %v1001, %v1009
    %v1012 = vpack.c.bf16 %v1010, %v1010
    %v1013 = vpack.c.bf16 %v1011, %v1011
    %1014 = vrot.lane.b32.xlu0 %v353, 112
    %v1015 = vpop.permute.xlu0 %1014
    %v1017 = vsel %vm361, %v1012, 0
    %v1020 = vsel %vm481, %v1015, 0
    %1022 = vmatprep.subr.bf16.mxu0 0
    %1023 = vmatpush1.bf16.msra.mxu0 %v1020
    %1024 = vmatprep.subr.bf16.mxu0 0
    %1025 = vmatpush1.bf16.msra.mxu0 0
    %1026 = vmatprep.subr.bf16.mxu0 0
    %1027 = vmatpush1.bf16.msra.mxu0 0
    %1028 = vmatprep.subr.bf16.mxu0 0
    %1029 = vmatpush1.bf16.msra.mxu0 0
    %1030 = vmatprep.subr.bf16.mxu0 0
    %1031 = vmatpush1.bf16.msra.mxu0 0
    %1032 = vmatprep.subr.bf16.mxu0 0
    %1033 = vmatpush1.bf16.msra.mxu0 0
    %1034 = vmatprep.subr.bf16.mxu0 0
    %1035 = vmatpush1.bf16.msra.mxu0 0
    %1036 = vmatprep.subr.bf16.mxu0 0
    %1037 = vmatpush1.bf16.msra.mxu0 0
    %1038 = vmatprep.subr.bf16.mxu0 0
    %1039 = vmatpush1.bf16.msra.mxu0 0
    %1040 = vmatprep.subr.bf16.mxu0 0
    %1041 = vmatpush1.bf16.msra.mxu0 0
    %1042 = vmatprep.subr.bf16.mxu0 0
    %1043 = vmatpush1.bf16.msra.mxu0 0
    %1044 = vmatprep.subr.bf16.mxu0 0
    %1045 = vmatpush1.bf16.msra.mxu0 0
    %1046 = vmatprep.subr.bf16.mxu0 0
    %1047 = vmatpush1.bf16.msra.mxu0 0
    %1048 = vmatprep.subr.bf16.mxu0 0
    %1049 = vmatpush1.bf16.msra.mxu0 0
    %1050 = vmatprep.subr.bf16.mxu0 0
    %1051 = vmatpush1.bf16.msra.mxu0 0
    %1052 = vmatprep.subr.bf16.mxu0 0
    %1053 = vmatpush1.bf16.msra.mxu0 0
    %1054 = vmatprep.mubr.bf16.mxu0 0
    %1055 = vmatmul.mubr.bf16.gmra.mrb[0].mxu0 %v1017
    %v1056 = vpop.f32.mrb[0].mxu0
    %v1057 = vadd.f32 0.0, %v1056
    %v1058 = vpop.f32.mrb[0].mxu0
    %v1059 = vpop.f32.mrb[0].mxu0
    %v1060 = vpop.f32.mrb[0].mxu0
    %1061 = vdwg.mxu0
    %1062 = vrot.lane.b32.xlu0 %v354, 112
    %v1063 = vpop.permute.xlu0 %1062
    %v1065 = vsel %vm361, %v1013, 0
    %v1068 = vsel %vm481, %v1063, 0
    %1070 = vmatprep.subr.bf16.mxu0 0
    %1071 = vmatpush1.bf16.msra.mxu0 %v1068
    %1072 = vmatprep.subr.bf16.mxu0 0
    %1073 = vmatpush1.bf16.msra.mxu0 0
    %1074 = vmatprep.subr.bf16.mxu0 0
    %1075 = vmatpush1.bf16.msra.mxu0 0
    %1076 = vmatprep.subr.bf16.mxu0 0
    %1077 = vmatpush1.bf16.msra.mxu0 0
    %1078 = vmatprep.subr.bf16.mxu0 0
    %1079 = vmatpush1.bf16.msra.mxu0 0
    %1080 = vmatprep.subr.bf16.mxu0 0
    %1081 = vmatpush1.bf16.msra.mxu0 0
    %1082 = vmatprep.subr.bf16.mxu0 0
    %1083 = vmatpush1.bf16.msra.mxu0 0
    %1084 = vmatprep.subr.bf16.mxu0 0
    %1085 = vmatpush1.bf16.msra.mxu0 0
    %1086 = vmatprep.subr.bf16.mxu0 0
    %1087 = vmatpush1.bf16.msra.mxu0 0
    %1088 = vmatprep.subr.bf16.mxu0 0
    %1089 = vmatpush1.bf16.msra.mxu0 0
    %1090 = vmatprep.subr.bf16.mxu0 0
    %1091 = vmatpush1.bf16.msra.mxu0 0
    %1092 = vmatprep.subr.bf16.mxu0 0
    %1093 = vmatpush1.bf16.msra.mxu0 0
    %1094 = vmatprep.subr.bf16.mxu0 0
    %1095 = vmatpush1.bf16.msra.mxu0 0
    %1096 = vmatprep.subr.bf16.mxu0 0
    %1097 = vmatpush1.bf16.msra.mxu0 0
    %1098 = vmatprep.subr.bf16.mxu0 0
    %1099 = vmatpush1.bf16.msra.mxu0 0
    %1100 = vmatprep.subr.bf16.mxu0 0
    %1101 = vmatpush1.bf16.msra.mxu0 0
    %1102 = vmatprep.mubr.bf16.mxu0 0
    %1103 = vmatmul.mubr.bf16.gmra.mrb[0].mxu0 %v1065
    %v1104 = vpop.f32.mrb[0].mxu0
    %v1105 = vadd.f32 0.0, %v1104
    %v1106 = vpop.f32.mrb[0].mxu0
    %v1107 = vpop.f32.mrb[0].mxu0
    %v1108 = vpop.f32.mrb[0].mxu0
    %1109 = vdwg.mxu0
    %v1110 = vpack.c.bf16 %v1105, %v1057
    %s1111 = scalar_lea.vmem %s9, 8
    %v1112 = vld [vmem:[%s1111] sm:$0xf]
    %v1114 = vsel %vm361, %v1110, 0
    %v1117 = vsel %vm481, %v1112, 0
    %1119 = vmatprep.subr.bf16.mxu0 0
    %1120 = vmatpush1.bf16.msra.mxu0 %v1117
    %1121 = vmatprep.subr.bf16.mxu0 0
    %1122 = vmatpush1.bf16.msra.mxu0 0
    %1123 = vmatprep.subr.bf16.mxu0 0
    %1124 = vmatpush1.bf16.msra.mxu0 0
    %1125 = vmatprep.subr.bf16.mxu0 0
    %1126 = vmatpush1.bf16.msra.mxu0 0
    %1127 = vmatprep.subr.bf16.mxu0 0
    %1128 = vmatpush1.bf16.msra.mxu0 0
    %1129 = vmatprep.subr.bf16.mxu0 0
    %1130 = vmatpush1.bf16.msra.mxu0 0
    %1131 = vmatprep.subr.bf16.mxu0 0
    %1132 = vmatpush1.bf16.msra.mxu0 0
    %1133 = vmatprep.subr.bf16.mxu0 0
    %1134 = vmatpush1.bf16.msra.mxu0 0
    %1135 = vmatprep.subr.bf16.mxu0 0
    %1136 = vmatpush1.bf16.msra.mxu0 0
    %1137 = vmatprep.subr.bf16.mxu0 0
    %1138 = vmatpush1.bf16.msra.mxu0 0
    %1139 = vmatprep.subr.bf16.mxu0 0
    %1140 = vmatpush1.bf16.msra.mxu0 0
    %1141 = vmatprep.subr.bf16.mxu0 0
    %1142 = vmatpush1.bf16.msra.mxu0 0
    %1143 = vmatprep.subr.bf16.mxu0 0
    %1144 = vmatpush1.bf16.msra.mxu0 0
    %1145 = vmatprep.subr.bf16.mxu0 0
    %1146 = vmatpush1.bf16.msra.mxu0 0
    %1147 = vmatprep.subr.bf16.mxu0 0
    %1148 = vmatpush1.bf16.msra.mxu0 0
    %1149 = vmatprep.subr.bf16.mxu0 0
    %1150 = vmatpush1.bf16.msra.mxu0 0
    %1151 = vmatprep.mubr.bf16.mxu0 0
    %1152 = vmatmul.mubr.bf16.gmra.mrb[0].mxu0 %v1114
    %v1153 = vpop.f32.mrb[0].mxu0
    %v1154 = vadd.f32 0.0, %v1153
    %v1155 = vpop.f32.mrb[0].mxu0
    %v1156 = vpop.f32.mrb[0].mxu0
    %v1157 = vadd.f32 0.0, %v1156
    %v1158 = vpop.f32.mrb[0].mxu0
    %1159 = vdwg.mxu0
    %v1160 = vadd.f32 %v884, %v1154
    %v1161 = vadd.f32 %v887, %v1157
    %1162 = vrot.lane.b32.xlu0 %v343, 104
    %v1163 = vpop.permute.xlu0 %1162
    %1164 = vrot.lane.b32.xlu0 %v348, 104
    %v1165 = vpop.permute.xlu0 %1164
    %v1167 = vsel %vm361, %v1163, 0
    %v1170 = vsel %vm361, %v1165, 0
    %1172 = vmatprep.subr.bf16.mxu0 0
    %1173 = vmatpush1.bf16.xpose.msra.mxu0 %v1170
    %1174 = vmatprep.subr.bf16.mxu0 0
    %1175 = vmatpush1.bf16.xpose.msra.mxu0 0
    %1176 = vmatprep.subr.bf16.mxu0 0
    %1177 = vmatpush1.bf16.xpose.msra.mxu0 0
    %1178 = vmatprep.subr.bf16.mxu0 0
    %1179 = vmatpush1.bf16.xpose.msra.mxu0 0
    %1180 = vmatprep.subr.bf16.mxu0 0
    %1181 = vmatpush1.bf16.xpose.msra.mxu0 0
    %1182 = vmatprep.subr.bf16.mxu0 0
    %1183 = vmatpush1.bf16.xpose.msra.mxu0 0
    %1184 = vmatprep.subr.bf16.mxu0 0
    %1185 = vmatpush1.bf16.xpose.msra.mxu0 0
    %1186 = vmatprep.subr.bf16.mxu0 0
    %1187 = vmatpush1.bf16.xpose.msra.mxu0 0
    %1188 = vmatprep.subr.bf16.mxu0 0
    %1189 = vmatpush1.bf16.xpose.msra.mxu0 0
    %1190 = vmatprep.subr.bf16.mxu0 0
    %1191 = vmatpush1.bf16.xpose.msra.mxu0 0
    %1192 = vmatprep.subr.bf16.mxu0 0
    %1193 = vmatpush1.bf16.xpose.msra.mxu0 0
    %1194 = vmatprep.subr.bf16.mxu0 0
    %1195 = vmatpush1.bf16.xpose.msra.mxu0 0
    %1196 = vmatprep.subr.bf16.mxu0 0
    %1197 = vmatpush1.bf16.xpose.msra.mxu0 0
    %1198 = vmatprep.subr.bf16.mxu0 0
    %1199 = vmatpush1.bf16.xpose.msra.mxu0 0
    %1200 = vmatprep.subr.bf16.mxu0 0
    %1201 = vmatpush1.bf16.xpose.msra.mxu0 0
    %1202 = vmatprep.subr.bf16.mxu0 0
    %1203 = vmatpush1.bf16.xpose.msra.mxu0 0
    %1204 = vmatprep.mubr.bf16.mxu0 0
    %1205 = vmatmul.mubr.bf16.gmra.mrb[0].mxu0 %v1167
    %v1206 = vpop.f32.mrb[0].mxu0
    %v1207 = vadd.f32 %v360, %v1206
    %v1208 = vpop.f32.mrb[0].mxu0
    %v1209 = vpop.f32.mrb[0].mxu0
    %v1210 = vpop.f32.mrb[0].mxu0
    %1211 = vdwg.mxu0
    %1212 = vrot.lane.b32.xlu0 %v344, 104
    %v1213 = vpop.permute.xlu0 %1212
    %1214 = vrot.lane.b32.xlu0 %v349, 104
    %v1215 = vpop.permute.xlu0 %1214
    %v1217 = vsel %vm361, %v1213, 0
    %v1220 = vsel %vm361, %v1215, 0
    %1222 = vmatprep.subr.bf16.mxu0 0
    %1223 = vmatpush1.bf16.xpose.msra.mxu0 %v1220
    %1224 = vmatprep.subr.bf16.mxu0 0
    %1225 = vmatpush1.bf16.xpose.msra.mxu0 0
    %1226 = vmatprep.subr.bf16.mxu0 0
    %1227 = vmatpush1.bf16.xpose.msra.mxu0 0
    %1228 = vmatprep.subr.bf16.mxu0 0
    %1229 = vmatpush1.bf16.xpose.msra.mxu0 0
    %1230 = vmatprep.subr.bf16.mxu0 0
    %1231 = vmatpush1.bf16.xpose.msra.mxu0 0
    %1232 = vmatprep.subr.bf16.mxu0 0
    %1233 = vmatpush1.bf16.xpose.msra.mxu0 0
    %1234 = vmatprep.subr.bf16.mxu0 0
    %1235 = vmatpush1.bf16.xpose.msra.mxu0 0
    %1236 = vmatprep.subr.bf16.mxu0 0
    %1237 = vmatpush1.bf16.xpose.msra.mxu0 0
    %1238 = vmatprep.subr.bf16.mxu0 0
    %1239 = vmatpush1.bf16.xpose.msra.mxu0 0
    %1240 = vmatprep.subr.bf16.mxu0 0
    %1241 = vmatpush1.bf16.xpose.msra.mxu0 0
    %1242 = vmatprep.subr.bf16.mxu0 0
    %1243 = vmatpush1.bf16.xpose.msra.mxu0 0
    %1244 = vmatprep.subr.bf16.mxu0 0
    %1245 = vmatpush1.bf16.xpose.msra.mxu0 0
    %1246 = vmatprep.subr.bf16.mxu0 0
    %1247 = vmatpush1.bf16.xpose.msra.mxu0 0
    %1248 = vmatprep.subr.bf16.mxu0 0
    %1249 = vmatpush1.bf16.xpose.msra.mxu0 0
    %1250 = vmatprep.subr.bf16.mxu0 0
    %1251 = vmatpush1.bf16.xpose.msra.mxu0 0
    %1252 = vmatprep.subr.bf16.mxu0 0
    %1253 = vmatpush1.bf16.xpose.msra.mxu0 0
    %1254 = vmatprep.mubr.bf16.mxu0 0
    %1255 = vmatmul.mubr.bf16.gmra.mrb[0].mxu0 %v1217
    %v1256 = vpop.f32.mrb[0].mxu0
    %v1257 = vadd.f32 %v360, %v1256
    %v1258 = vpop.f32.mrb[0].mxu0
    %v1259 = vpop.f32.mrb[0].mxu0
    %v1260 = vpop.f32.mrb[0].mxu0
    %1261 = vdwg.mxu0
    %v1262 = vsel %vm361, %v1207, -inf
    %1263 = vmax.xlane.f32.xlu0 %v1262
    %v1264 = vpop.xlane.xlu0 %1263
    %v1265 = vsel %vm361, %v1257, -inf
    %1266 = vmax.xlane.f32.xlu0 %v1265
    %v1267 = vpop.xlane.xlu0 %1266
    %v1268 = vsub.f32 %v1207, %v1264
    %v1269 = vsub.f32 %v1257, %v1267
    %v1270 = vmul.f32 %v1268, 1.442695
    %v1271 = vpow.pop %v1270
    %v1272 = vmul.f32 %v1269, 1.442695
    %v1273 = vpow.pop %v1272
    %v1274 = vsel %vm361, %v1271, 0.0
    %1275 = vadd.xlane.f32.xlu0 %v1274
    %v1276 = vpop.xlane.xlu0 %1275
    %v1277 = vsel %vm361, %v1273, 0.0
    %1278 = vadd.xlane.f32.xlu0 %v1277
    %v1279 = vpop.xlane.xlu0 %1278
    %v1280 = vrcp.pop %v1276
    %v1281 = vrcp.pop %v1279
    %v1282 = vmul.f32 %v1271, %v1280
    %v1283 = vmul.f32 %v1273, %v1281
    %v1284 = vpack.c.bf16 %v1282, %v1282
    %v1285 = vpack.c.bf16 %v1283, %v1283
    %1286 = vrot.lane.b32.xlu0 %v353, 104
    %v1287 = vpop.permute.xlu0 %1286
    %v1289 = vsel %vm361, %v1284, 0
    %v1292 = vsel %vm481, %v1287, 0
    %1294 = vmatprep.subr.bf16.mxu0 0
    %1295 = vmatpush1.bf16.msra.mxu0 %v1292
    %1296 = vmatprep.subr.bf16.mxu0 0
    %1297 = vmatpush1.bf16.msra.mxu0 0
    %1298 = vmatprep.subr.bf16.mxu0 0
    %1299 = vmatpush1.bf16.msra.mxu0 0
    %1300 = vmatprep.subr.bf16.mxu0 0
    %1301 = vmatpush1.bf16.msra.mxu0 0
    %1302 = vmatprep.subr.bf16.mxu0 0
    %1303 = vmatpush1.bf16.msra.mxu0 0
    %1304 = vmatprep.subr.bf16.mxu0 0
    %1305 = vmatpush1.bf16.msra.mxu0 0
    %1306 = vmatprep.subr.bf16.mxu0 0
    %1307 = vmatpush1.bf16.msra.mxu0 0
    %1308 = vmatprep.subr.bf16.mxu0 0
    %1309 = vmatpush1.bf16.msra.mxu0 0
    %1310 = vmatprep.subr.bf16.mxu0 0
    %1311 = vmatpush1.bf16.msra.mxu0 0
    %1312 = vmatprep.subr.bf16.mxu0 0
    %1313 = vmatpush1.bf16.msra.mxu0 0
    %1314 = vmatprep.subr.bf16.mxu0 0
    %1315 = vmatpush1.bf16.msra.mxu0 0
    %1316 = vmatprep.subr.bf16.mxu0 0
    %1317 = vmatpush1.bf16.msra.mxu0 0
    %1318 = vmatprep.subr.bf16.mxu0 0
    %1319 = vmatpush1.bf16.msra.mxu0 0
    %1320 = vmatprep.subr.bf16.mxu0 0
    %1321 = vmatpush1.bf16.msra.mxu0 0
    %1322 = vmatprep.subr.bf16.mxu0 0
    %1323 = vmatpush1.bf16.msra.mxu0 0
    %1324 = vmatprep.subr.bf16.mxu0 0
    %1325 = vmatpush1.bf16.msra.mxu0 0
    %1326 = vmatprep.mubr.bf16.mxu0 0
    %1327 = vmatmul.mubr.bf16.gmra.mrb[0].mxu0 %v1289
    %v1328 = vpop.f32.mrb[0].mxu0
    %v1329 = vadd.f32 0.0, %v1328
    %v1330 = vpop.f32.mrb[0].mxu0
    %v1331 = vpop.f32.mrb[0].mxu0
    %v1332 = vpop.f32.mrb[0].mxu0
    %1333 = vdwg.mxu0
    %1334 = vrot.lane.b32.xlu0 %v354, 104
    %v1335 = vpop.permute.xlu0 %1334
    %v1337 = vsel %vm361, %v1285, 0
    %v1340 = vsel %vm481, %v1335, 0
    %1342 = vmatprep.subr.bf16.mxu0 0
    %1343 = vmatpush1.bf16.msra.mxu0 %v1340
    %1344 = vmatprep.subr.bf16.mxu0 0
    %1345 = vmatpush1.bf16.msra.mxu0 0
    %1346 = vmatprep.subr.bf16.mxu0 0
    %1347 = vmatpush1.bf16.msra.mxu0 0
    %1348 = vmatprep.subr.bf16.mxu0 0
    %1349 = vmatpush1.bf16.msra.mxu0 0
    %1350 = vmatprep.subr.bf16.mxu0 0
    %1351 = vmatpush1.bf16.msra.mxu0 0
    %1352 = vmatprep.subr.bf16.mxu0 0
    %1353 = vmatpush1.bf16.msra.mxu0 0
    %1354 = vmatprep.subr.bf16.mxu0 0
    %1355 = vmatpush1.bf16.msra.mxu0 0
    %1356 = vmatprep.subr.bf16.mxu0 0
    %1357 = vmatpush1.bf16.msra.mxu0 0
    %1358 = vmatprep.subr.bf16.mxu0 0
    %1359 = vmatpush1.bf16.msra.mxu0 0
    %1360 = vmatprep.subr.bf16.mxu0 0
    %1361 = vmatpush1.bf16.msra.mxu0 0
    %1362 = vmatprep.subr.bf16.mxu0 0
    %1363 = vmatpush1.bf16.msra.mxu0 0
    %1364 = vmatprep.subr.bf16.mxu0 0
    %1365 = vmatpush1.bf16.msra.mxu0 0
    %1366 = vmatprep.subr.bf16.mxu0 0
    %1367 = vmatpush1.bf16.msra.mxu0 0
    %1368 = vmatprep.subr.bf16.mxu0 0
    %1369 = vmatpush1.bf16.msra.mxu0 0
    %1370 = vmatprep.subr.bf16.mxu0 0
    %1371 = vmatpush1.bf16.msra.mxu0 0
    %1372 = vmatprep.subr.bf16.mxu0 0
    %1373 = vmatpush1.bf16.msra.mxu0 0
    %1374 = vmatprep.mubr.bf16.mxu0 0
    %1375 = vmatmul.mubr.bf16.gmra.mrb[0].mxu0 %v1337
    %v1376 = vpop.f32.mrb[0].mxu0
    %v1377 = vadd.f32 0.0, %v1376
    %v1378 = vpop.f32.mrb[0].mxu0
    %v1379 = vpop.f32.mrb[0].mxu0
    %v1380 = vpop.f32.mrb[0].mxu0
    %1381 = vdwg.mxu0
    %v1382 = vpack.c.bf16 %v1377, %v1329
    %s1383 = scalar_lea.vmem %s9, 12
    %v1384 = vld [vmem:[%s1383] sm:$0xf]
    %v1386 = vsel %vm361, %v1382, 0
    %v1389 = vsel %vm481, %v1384, 0
    %1391 = vmatprep.subr.bf16.mxu0 0
    %1392 = vmatpush1.bf16.msra.mxu0 %v1389
    %1393 = vmatprep.subr.bf16.mxu0 0
    %1394 = vmatpush1.bf16.msra.mxu0 0
    %1395 = vmatprep.subr.bf16.mxu0 0
    %1396 = vmatpush1.bf16.msra.mxu0 0
    %1397 = vmatprep.subr.bf16.mxu0 0
    %1398 = vmatpush1.bf16.msra.mxu0 0
    %1399 = vmatprep.subr.bf16.mxu0 0
    %1400 = vmatpush1.bf16.msra.mxu0 0
    %1401 = vmatprep.subr.bf16.mxu0 0
    %1402 = vmatpush1.bf16.msra.mxu0 0
    %1403 = vmatprep.subr.bf16.mxu0 0
    %1404 = vmatpush1.bf16.msra.mxu0 0
    %1405 = vmatprep.subr.bf16.mxu0 0
    %1406 = vmatpush1.bf16.msra.mxu0 0
    %1407 = vmatprep.subr.bf16.mxu0 0
    %1408 = vmatpush1.bf16.msra.mxu0 0
    %1409 = vmatprep.subr.bf16.mxu0 0
    %1410 = vmatpush1.bf16.msra.mxu0 0
    %1411 = vmatprep.subr.bf16.mxu0 0
    %1412 = vmatpush1.bf16.msra.mxu0 0
    %1413 = vmatprep.subr.bf16.mxu0 0
    %1414 = vmatpush1.bf16.msra.mxu0 0
    %1415 = vmatprep.subr.bf16.mxu0 0
    %1416 = vmatpush1.bf16.msra.mxu0 0
    %1417 = vmatprep.subr.bf16.mxu0 0
    %1418 = vmatpush1.bf16.msra.mxu0 0
    %1419 = vmatprep.subr.bf16.mxu0 0
    %1420 = vmatpush1.bf16.msra.mxu0 0
    %1421 = vmatprep.subr.bf16.mxu0 0
    %1422 = vmatpush1.bf16.msra.mxu0 0
    %1423 = vmatprep.mubr.bf16.mxu0 0
    %1424 = vmatmul.mubr.bf16.gmra.mrb[0].mxu0 %v1386
    %v1425 = vpop.f32.mrb[0].mxu0
    %v1426 = vadd.f32 0.0, %v1425
    %v1427 = vpop.f32.mrb[0].mxu0
    %v1428 = vpop.f32.mrb[0].mxu0
    %v1429 = vadd.f32 0.0, %v1428
    %v1430 = vpop.f32.mrb[0].mxu0
    %1431 = vdwg.mxu0
    %v1432 = vadd.f32 %v1160, %v1426
    %v1433 = vadd.f32 %v1161, %v1429
    %v1434 = vld [vmem:[%s10] sm:$0x1]
    %v1436 = vlaneseq
    %v1437 = vshrl.u32 %v1436, 7
    %v1438 = vsub.s32 0, %v1437
    %v1439 = vrot.slane %v1434, %v1438
    %v1441 = vadd.f32 %v1432, %v1439
    %v1442 = vadd.f32 %v1433, %v1439
    %v1443 = vadd.f32 %v93, %v1441
    %v1444 = vadd.f32 %v94, %v1442
    %v1445 = vsel %vm95, %v1443, 0.0
    %1446 = vadd.xlane.f32.xlu0 %v1445
    %v1447 = vpop.xlane.xlu0 %1446
    %v1448 = vsel %vm95, %v1444, 0.0
    %1449 = vadd.xlane.f32.xlu0 %v1448
    %v1450 = vpop.xlane.xlu0 %1449
    %v1451 = vmul.f32 %v1447, %v102
    %v1452 = vmul.f32 %v1450, %v102
    %v1453 = vsub.f32 %v1443, %v1451
    %v1454 = vsub.f32 %v1444, %v1452
    %v1455 = vmul.f32 %v1453, %v1453
    %v1456 = vmul.f32 %v1454, %v1454
    %v1457 = vsel %vm95, %v1455, 0.0
    %1458 = vadd.xlane.f32.xlu0 %v1457
    %v1459 = vpop.xlane.xlu0 %1458
    %v1460 = vsel %vm95, %v1456, 0.0
    %1461 = vadd.xlane.f32.xlu0 %v1460
    %v1462 = vpop.xlane.xlu0 %1461
    %v1463 = vmul.f32 %v1459, %v102
    %v1464 = vmul.f32 %v1462, %v102
    %v1465 = vadd.f32 %v1463, 1e-05
    %v1466 = vadd.f32 %v1464, 1e-05
    %v1467 = vrsqrt.pop %v1465
    %v1468 = vrsqrt.pop %v1466
    %v1469 = vmul.f32 %v1453, %v1467
    %v1470 = vmul.f32 %v1454, %v1468
    %v1471 = vld [vmem:[%s11] sm:$0x1]
    %v1473 = vlaneseq
    %v1474 = vshrl.u32 %v1473, 7
    %v1475 = vsub.s32 0, %v1474
    %v1476 = vrot.slane %v1471, %v1475
    %v1478 = vmul.f32 %v1469, %v1476
    %v1479 = vmul.f32 %v1470, %v1476
    %v1480 = vld [vmem:[%s12] sm:$0x1]
    %v1482 = vlaneseq
    %v1483 = vshrl.u32 %v1482, 7
    %v1484 = vsub.s32 0, %v1483
    %v1485 = vrot.slane %v1480, %v1484
    %v1487 = vadd.f32 %v1478, %v1485
    %v1488 = vadd.f32 %v1479, %v1485
    %v1489 = vpack.c.bf16 %v1488, %v1487
    %v1490 = vld [vmem:[%s14] sm:$0x1]
    %v1491 = vld [vmem:[%s13] sm:$0xf]
    %v1492 = vld [vmem:[%s13 + $0x4] sm:$0xf]
    %v1493 = vld [vmem:[%s13 + $0x8] sm:$0xf]
    %v1494 = vld [vmem:[%s13 + $0xc] sm:$0xf]
    %v1496 = vlaneseq
    %v1497 = vshrl.u32 %v1496, 7
    %v1498 = vsub.s32 0, %v1497
    %v1499 = vrot.slane %v1490, %v1498
    %v1505 = vunpack.c.l.b16 %v1491
    %v1506 = vunpack.c.l.b16 %v1492
    %v1507 = vunpack.c.l.b16 %v1493
    %v1508 = vunpack.c.l.b16 %v1494
    %v1509 = vpack.c.b16 %v1506, %v1505
    %v1510 = vpack.c.b16 %v1508, %v1507
    %v1514 = vsel %vm95, %v1489, 0
    %1516 = vmatprep.subr.bf16.mxu0 0
    %1517 = vmatpush1.bf16.msra.mxu0 %v1509
    %1518 = vmatprep.subr.bf16.mxu0 0
    %1519 = vmatpush1.bf16.msra.mxu0 %v1510
    %1520 = vmatprep.subr.bf16.mxu0 0
    %1521 = vmatpush1.bf16.msra.mxu0 0
    %1522 = vmatprep.subr.bf16.mxu0 0
    %1523 = vmatpush1.bf16.msra.mxu0 0
    %1524 = vmatprep.subr.bf16.mxu0 0
    %1525 = vmatpush1.bf16.msra.mxu0 0
    %1526 = vmatprep.subr.bf16.mxu0 0
    %1527 = vmatpush1.bf16.msra.mxu0 0
    %1528 = vmatprep.subr.bf16.mxu0 0
    %1529 = vmatpush1.bf16.msra.mxu0 0
    %1530 = vmatprep.subr.bf16.mxu0 0
    %1531 = vmatpush1.bf16.msra.mxu0 0
    %1532 = vmatprep.subr.bf16.mxu0 0
    %1533 = vmatpush1.bf16.msra.mxu0 0
    %1534 = vmatprep.subr.bf16.mxu0 0
    %1535 = vmatpush1.bf16.msra.mxu0 0
    %1536 = vmatprep.subr.bf16.mxu0 0
    %1537 = vmatpush1.bf16.msra.mxu0 0
    %1538 = vmatprep.subr.bf16.mxu0 0
    %1539 = vmatpush1.bf16.msra.mxu0 0
    %1540 = vmatprep.subr.bf16.mxu0 0
    %1541 = vmatpush1.bf16.msra.mxu0 0
    %1542 = vmatprep.subr.bf16.mxu0 0
    %1543 = vmatpush1.bf16.msra.mxu0 0
    %1544 = vmatprep.subr.bf16.mxu0 0
    %1545 = vmatpush1.bf16.msra.mxu0 0
    %1546 = vmatprep.subr.bf16.mxu0 0
    %1547 = vmatpush1.bf16.msra.mxu0 0
    %1548 = vmatprep.mubr.bf16.mxu0 0
    %1549 = vmatmul.mubr.bf16.gmra.mrb[0].mxu0 %v1514
    %v1550 = vpop.f32.mrb[0].mxu0
    %v1551 = vadd.f32 %v1499, %v1550
    %v1552 = vpop.f32.mrb[0].mxu0
    %v1553 = vpop.f32.mrb[0].mxu0
    %v1554 = vadd.f32 %v1499, %v1553
    %v1555 = vpop.f32.mrb[0].mxu0
    %1556 = vdwg.mxu0
    %v1557 = vmul.f32 %v1551, 1.702
    %v1558 = vmul.f32 %v1554, 1.702
    %v1559 = vxor.u32 %v1557, 2147483648
    %v1560 = vxor.u32 %v1558, 2147483648
    %v1561 = vmul.f32 %v1559, 1.442695
    %v1562 = vpow.pop %v1561
    %v1563 = vmul.f32 %v1560, 1.442695
    %v1564 = vpow.pop %v1563
    %v1565 = vadd.f32 %v1562, 1.0
    %v1566 = vadd.f32 %v1564, 1.0
    %v1567 = vrcp.pop %v1565
    %v1568 = vmul.f32 1.0, %v1567
    %v1569 = vrcp.pop %v1566
    %v1570 = vmul.f32 1.0, %v1569
    %v1571 = vmul.f32 %v1551, %v1568
    %v1572 = vmul.f32 %v1554, %v1570
    %v1573 = vpack.c.bf16 %v1572, %v1571
    %v1574 = vld [vmem:[%s15] sm:$0xf]
    %v1575 = vld [vmem:[%s15 + $0x4] sm:$0xf]
    %v1576 = vld [vmem:[%s15 + $0x8] sm:$0xf]
    %v1577 = vld [vmem:[%s15 + $0xc] sm:$0xf]
    %v1578 = vld [vmem:[%s15 + $0x10] sm:$0xf]
    %v1579 = vld [vmem:[%s15 + $0x14] sm:$0xf]
    %v1580 = vld [vmem:[%s15 + $0x18] sm:$0xf]
    %v1581 = vld [vmem:[%s15 + $0x1c] sm:$0xf]
    %v1582 = vld [vmem:[%s15 + $0x20] sm:$0xf]
    %v1583 = vld [vmem:[%s15 + $0x24] sm:$0xf]
    %v1584 = vld [vmem:[%s15 + $0x28] sm:$0xf]
    %v1585 = vld [vmem:[%s15 + $0x2c] sm:$0xf]
    %v1586 = vld [vmem:[%s15 + $0x30] sm:$0xf]
    %v1587 = vld [vmem:[%s15 + $0x34] sm:$0xf]
    %v1588 = vld [vmem:[%s15 + $0x38] sm:$0xf]
    %v1589 = vld [vmem:[%s15 + $0x3c] sm:$0xf]
    %v1590 = vld [vmem:[%s16] sm:$0x1]
    %v1592 = vlaneseq
    %v1593 = vshrl.u32 %v1592, 7
    %v1594 = vsub.s32 0, %v1593
    %v1595 = vrot.slane %v1590, %v1594
    %v1613 = vunpack.c.l.b16 %v1574
    %v1614 = vunpack.c.l.b16 %v1575
    %v1615 = vunpack.c.l.b16 %v1576
    %v1616 = vunpack.c.l.b16 %v1577
    %v1617 = vunpack.c.l.b16 %v1578
    %v1618 = vunpack.c.l.b16 %v1579
    %v1619 = vunpack.c.l.b16 %v1580
    %v1620 = vunpack.c.l.b16 %v1581
    %v1621 = vunpack.c.l.b16 %v1582
    %v1622 = vunpack.c.l.b16 %v1583
    %v1623 = vunpack.c.l.b16 %v1584
    %v1624 = vunpack.c.l.b16 %v1585
    %v1625 = vunpack.c.l.b16 %v1586
    %v1626 = vunpack.c.l.b16 %v1587
    %v1627 = vunpack.c.l.b16 %v1588
    %v1628 = vunpack.c.l.b16 %v1589
    %v1629 = vpack.c.b16 %v1614, %v1613
    %v1630 = vpack.c.b16 %v1616, %v1615
    %v1631 = vpack.c.b16 %v1618, %v1617
    %v1632 = vpack.c.b16 %v1620, %v1619
    %v1633 = vpack.c.b16 %v1622, %v1621
    %v1634 = vpack.c.b16 %v1624, %v1623
    %v1635 = vpack.c.b16 %v1626, %v1625
    %v1636 = vpack.c.b16 %v1628, %v1627
    %1645 = vmatprep.subr.bf16.mxu0 0
    %1646 = vmatpush1.bf16.msra.mxu0 %v1629
    %1647 = vmatprep.subr.bf16.mxu0 0
    %1648 = vmatpush1.bf16.msra.mxu0 %v1630
    %1649 = vmatprep.subr.bf16.mxu0 0
    %1650 = vmatpush1.bf16.msra.mxu0 %v1631
    %1651 = vmatprep.subr.bf16.mxu0 0
    %1652 = vmatpush1.bf16.msra.mxu0 %v1632
    %1653 = vmatprep.subr.bf16.mxu0 0
    %1654 = vmatpush1.bf16.msra.mxu0 %v1633
    %1655 = vmatprep.subr.bf16.mxu0 0
    %1656 = vmatpush1.bf16.msra.mxu0 %v1634
    %1657 = vmatprep.subr.bf16.mxu0 0
    %1658 = vmatpush1.bf16.msra.mxu0 %v1635
    %1659 = vmatprep.subr.bf16.mxu0 0
    %1660 = vmatpush1.bf16.msra.mxu0 %v1636
    %1661 = vmatprep.subr.bf16.mxu0 0
    %1662 = vmatpush1.bf16.msra.mxu0 0
    %1663 = vmatprep.subr.bf16.mxu0 0
    %1664 = vmatpush1.bf16.msra.mxu0 0
    %1665 = vmatprep.subr.bf16.mxu0 0
    %1666 = vmatpush1.bf16.msra.mxu0 0
    %1667 = vmatprep.subr.bf16.mxu0 0
    %1668 = vmatpush1.bf16.msra.mxu0 0
    %1669 = vmatprep.subr.bf16.mxu0 0
    %1670 = vmatpush1.bf16.msra.mxu0 0
    %1671 = vmatprep.subr.bf16.mxu0 0
    %1672 = vmatpush1.bf16.msra.mxu0 0
    %1673 = vmatprep.subr.bf16.mxu0 0
    %1674 = vmatpush1.bf16.msra.mxu0 0
    %1675 = vmatprep.subr.bf16.mxu0 0
    %1676 = vmatpush1.bf16.msra.mxu0 0
    %1677 = vmatprep.mubr.bf16.mxu0 0
    %1678 = vmatmul.mubr.bf16.gmra.mrb[0].mxu0 %v1573
    %v1679 = vpop.f32.mrb[0].mxu0
    %v1680 = vadd.f32 %v1595, %v1679
    %v1681 = vpop.f32.mrb[0].mxu0
    %v1682 = vpop.f32.mrb[0].mxu0
    %v1683 = vadd.f32 %v1595, %v1682
    %v1684 = vpop.f32.mrb[0].mxu0
    %1685 = vdwg.mxu0
    %v1686 = vadd.f32 %v1443, %v1680
    %v1687 = vadd.f32 %v1444, %v1683
    %1688 = vst.msk [vmem:[#allocation8] sm:$0xff] %vm95, %v1686
    %1689 = vst.msk [vmem:[#allocation8 + $0x8] sm:$0xff] %vm95, %v1687
    // Predicated region
    $region82: #{tpu_custom_call.1} parent=1 // pred_check
      _
    $region83: #{tpu_custom_call.1} parent=1 // pred_check_branch
      %1691 = sbr.rel (0) target = $region85
    $region84: #{tpu_custom_call.1} parent=1 // pred_region
      %s1693 = ssub.s32 256, 256
      %1694 = vsyncadd [#allocation4], %s1693
      %s1695 = sshll.u32 [#allocation8], 4
      %s1696 = int_to_ptr.vmem [resolvable:$true] %s1695
      %1701 = dma.vmem_to_hbm [thread:$0]  %s1696, 256, %s17, [#allocation4], 128, 128, 8
    $region85: #{tpu_custom_call.1} parent=1 // pred_fallthru
      _
    // Predicated region
    $region86: #{tpu_custom_call.1} parent=1 // pred_check
      _
    $region87: #{tpu_custom_call.1} parent=1 // pred_check_branch
      %1703 = sbr.rel (0) target = $region89
    $region88: #{tpu_custom_call.1} parent=1 // pred_region
      %1704 = dma.done [#allocation4], 256
    $region89: #{tpu_custom_call.1} parent=1 // pred_fallthru
      _
    %1705 = vsyncpa [#allocation3], 1
    %1706 = vsyncpa [#allocation6], 1
    %1707 = vsyncpa [#allocation4], 1

// kernel: tpu_custom_call.1
$region0: #{tpu_custom_call.1}
  #allocation0 [shape = 'u32[]', space=smem, size = 0x4, offset = 0x4, fixed_abs, tag = 'smem constant byte address 0x4 - core index']
  #allocation1 [shape = 'u32[144,128]{1,0:T(1,128)}', space=vmem, size = 0x12000, scoped, tag = 'internal scratch']
  %s0 = inlined_call_operand.vmem [shape: f32[2,8,32], index: 0, kind: input, shape index: {}]
  %s1 = inlined_call_operand.vmem [shape: f32[1,32], index: 1, kind: input, shape index: {}]
  %s2 = inlined_call_operand.vmem [shape: f32[1,32], index: 2, kind: input, shape index: {}]
  %s3 = inlined_call_operand.vmem [shape: bf16[32,32], index: 3, kind: input, shape index: {}]
  %s4 = inlined_call_operand.hbm [shape: f32[1,32], index: 4, kind: input, shape index: {}]
  %s5 = inlined_call_operand.vmem [shape: bf16[32,32], index: 5, kind: input, shape index: {}]
  %s6 = inlined_call_operand.hbm [shape: f32[1,32], index: 6, kind: input, shape index: {}]
  %s7 = inlined_call_operand.vmem [shape: bf16[32,32], index: 7, kind: input, shape index: {}]
  %s8 = inlined_call_operand.hbm [shape: f32[1,32], index: 8, kind: input, shape index: {}]
  %s9 = inlined_call_operand.vmem [shape: bf16[4,8,32], index: 9, kind: input, shape index: {}]
  %s10 = inlined_call_operand.vmem [shape: f32[1,32], index: 10, kind: input, shape index: {}]
  %s11 = inlined_call_operand.vmem [shape: f32[1,32], index: 11, kind: input, shape index: {}]
  %s12 = inlined_call_operand.vmem [shape: f32[1,32], index: 12, kind: input, shape index: {}]
  %s13 = inlined_call_operand.vmem [shape: bf16[32,128], index: 13, kind: input, shape index: {}]
  %s14 = inlined_call_operand.vmem [shape: f32[1,128], index: 14, kind: input, shape index: {}]
  %s15 = inlined_call_operand.vmem [shape: bf16[128,32], index: 15, kind: input, shape index: {}]
  %s16 = inlined_call_operand.vmem [shape: f32[1,32], index: 16, kind: input, shape index: {}]
  %s17 = inlined_call_operand.hbm [shape: f32[2,8,32], index: 17, kind: output, shape index: {}]
  %s18 = sld [smem:[#allocation0]]
  $region90: #{tpu_custom_call.1} parent=0
    _
  %s20 = ssub.s32 1, %s18
  %s21 = scalar_select 0, %s20, %s18
  $region1: #{tpu_custom_call.1} parent=0
    #allocation2 [shape = 'u8[512]{0}', space=vmem, size = 0x400, scoped, tag = 'input window, operand 4, single buffered']
    #allocation3 [shape = 's32[1]{0}', space=sflag, size = 0x4, scoped, tag = 'scoped memory for tpu_custom_call.1']
    #allocation4 [shape = 's32[1]{0}', space=sflag, size = 0x4, scoped, tag = 'scoped memory for tpu_custom_call.1']
    #allocation5 [shape = 'u8[512]{0}', space=vmem, size = 0x400, scoped, tag = 'input window, operand 6, single buffered']
    #allocation6 [shape = 's32[1]{0}', space=sflag, size = 0x4, scoped, tag = 'scoped memory for tpu_custom_call.1']
    #allocation7 [shape = 'u8[512]{0}', space=vmem, size = 0x400, scoped, tag = 'input window, operand 8, single buffered']
    #allocation8 [shape = 'u8[8192]{0}', space=vmem, size = 0x2000, scoped, tag = 'output window, operand 0, single buffered']
    %22 = vsyncpa [#allocation3], 0
    %23 = vsyncpa [#allocation6], 0
    %24 = vsyncpa [#allocation4], 0
    // Predicated region
    $region2: #{tpu_custom_call.1} parent=1 // pred_check
      _
    $region3: #{tpu_custom_call.1} parent=1 // pred_check_branch
      %26 = sbr.rel (0) target = $region5
    $region4: #{tpu_custom_call.1} parent=1 // pred_region
      _
    $region5: #{tpu_custom_call.1} parent=1 // pred_fallthru
      _
    // Predicated region
    $region6: #{tpu_custom_call.1} parent=1 // pred_check
      _
    $region7: #{tpu_custom_call.1} parent=1 // pred_check_branch
      %28 = sbr.rel (0) target = $region9
    $region8: #{tpu_custom_call.1} parent=1 // pred_region
      _
    $region9: #{tpu_custom_call.1} parent=1 // pred_fallthru
      _
    // Predicated region
    $region10: #{tpu_custom_call.1} parent=1 // pred_check
      _
    $region11: #{tpu_custom_call.1} parent=1 // pred_check_branch
      %30 = sbr.rel (0) target = $region13
    $region12: #{tpu_custom_call.1} parent=1 // pred_region
      _
    $region13: #{tpu_custom_call.1} parent=1 // pred_fallthru
      _
    // Predicated region
    $region14: #{tpu_custom_call.1} parent=1 // pred_check
      _
    $region15: #{tpu_custom_call.1} parent=1 // pred_check_branch
      %32 = sbr.rel (0) target = $region17
    $region16: #{tpu_custom_call.1} parent=1 // pred_region
      _
    $region17: #{tpu_custom_call.1} parent=1 // pred_fallthru
      _
    // Predicated region
    $region18: #{tpu_custom_call.1} parent=1 // pred_check
      _
    $region19: #{tpu_custom_call.1} parent=1 // pred_check_branch
      %34 = sbr.rel (0) target = $region21
    $region20: #{tpu_custom_call.1} parent=1 // pred_region
      %s36 = ssub.s32 16, 16
      %37 = vsyncadd [#allocation3], %s36
      %s39 = sshll.u32 [#allocation2], 4
      %s40 = int_to_ptr.vmem [resolvable:$true] %s39
      %42 = dma.hbm_to_vmem [thread:$0]  %s4, 16, %s40, [#allocation3]
    $region21: #{tpu_custom_call.1} parent=1 // pred_fallthru
      _
    // Predicated region
    $region22: #{tpu_custom_call.1} parent=1 // pred_check
      _
    $region23: #{tpu_custom_call.1} parent=1 // pred_check_branch
      %44 = sbr.rel (0) target = $region25
    $region24: #{tpu_custom_call.1} parent=1 // pred_region
      _
    $region25: #{tpu_custom_call.1} parent=1 // pred_fallthru
      _
    // Predicated region
    $region26: #{tpu_custom_call.1} parent=1 // pred_check
      _
    $region27: #{tpu_custom_call.1} parent=1 // pred_check_branch
      %46 = sbr.rel (0) target = $region29
    $region28: #{tpu_custom_call.1} parent=1 // pred_region
      %s48 = ssub.s32 16, 16
      %49 = vsyncadd [#allocation6], %s48
      %s51 = sshll.u32 [#allocation5], 4
      %s52 = int_to_ptr.vmem [resolvable:$true] %s51
      %54 = dma.hbm_to_vmem [thread:$0]  %s6, 16, %s52, [#allocation6]
    $region29: #{tpu_custom_call.1} parent=1 // pred_fallthru
      _
    // Predicated region
    $region30: #{tpu_custom_call.1} parent=1 // pred_check
      _
    $region31: #{tpu_custom_call.1} parent=1 // pred_check_branch
      %56 = sbr.rel (0) target = $region33
    $region32: #{tpu_custom_call.1} parent=1 // pred_region
      _
    $region33: #{tpu_custom_call.1} parent=1 // pred_fallthru
      _
    // Predicated region
    $region34: #{tpu_custom_call.1} parent=1 // pred_check
      _
    $region35: #{tpu_custom_call.1} parent=1 // pred_check_branch
      %58 = sbr.rel (0) target = $region37
    $region36: #{tpu_custom_call.1} parent=1 // pred_region
      %s60 = ssub.s32 16, 16
      %61 = vsyncadd [#allocation6], %s60
      %s63 = sshll.u32 [#allocation7], 4
      %s64 = int_to_ptr.vmem [resolvable:$true] %s63
      %66 = dma.hbm_to_vmem [thread:$0]  %s8, 16, %s64, [#allocation6]
    $region37: #{tpu_custom_call.1} parent=1 // pred_fallthru
      _
    // Predicated region
    $region38: #{tpu_custom_call.1} parent=1 // pred_check
      _
    $region39: #{tpu_custom_call.1} parent=1 // pred_check_branch
      %68 = sbr.rel (0) target = $region41
    $region40: #{tpu_custom_call.1} parent=1 // pred_region
      _
    $region41: #{tpu_custom_call.1} parent=1 // pred_fallthru
      _
    // Predicated region
    $region42: #{tpu_custom_call.1} parent=1 // pred_check
      _
    $region43: #{tpu_custom_call.1} parent=1 // pred_check_branch
      %70 = sbr.rel (0) target = $region45
    $region44: #{tpu_custom_call.1} parent=1 // pred_region
      _
    $region45: #{tpu_custom_call.1} parent=1 // pred_fallthru
      _
    // Predicated region
    $region46: #{tpu_custom_call.1} parent=1 // pred_check
      _
    $region47: #{tpu_custom_call.1} parent=1 // pred_check_branch
      %72 = sbr.rel (0) target = $region49
    $region48: #{tpu_custom_call.1} parent=1 // pred_region
      _
    $region49: #{tpu_custom_call.1} parent=1 // pred_fallthru
      _
    // Predicated region
    $region50: #{tpu_custom_call.1} parent=1 // pred_check
      _
    $region51: #{tpu_custom_call.1} parent=1 // pred_check_branch
      %74 = sbr.rel (0) target = $region53
    $region52: #{tpu_custom_call.1} parent=1 // pred_region
      _
    $region53: #{tpu_custom_call.1} parent=1 // pred_fallthru
      _
    // Predicated region
    $region54: #{tpu_custom_call.1} parent=1 // pred_check
      _
    $region55: #{tpu_custom_call.1} parent=1 // pred_check_branch
      %76 = sbr.rel (0) target = $region57
    $region56: #{tpu_custom_call.1} parent=1 // pred_region
      _
    $region57: #{tpu_custom_call.1} parent=1 // pred_fallthru
      _
    // Predicated region
    $region58: #{tpu_custom_call.1} parent=1 // pred_check
      _
    $region59: #{tpu_custom_call.1} parent=1 // pred_check_branch
      %78 = sbr.rel (0) target = $region61
    $region60: #{tpu_custom_call.1} parent=1 // pred_region
      _
    $region61: #{tpu_custom_call.1} parent=1 // pred_fallthru
      _
    // Predicated region
    $region62: #{tpu_custom_call.1} parent=1 // pred_check
      _
    $region63: #{tpu_custom_call.1} parent=1 // pred_check_branch
      %80 = sbr.rel (0) target = $region65
    $region64: #{tpu_custom_call.1} parent=1 // pred_region
      _
    $region65: #{tpu_custom_call.1} parent=1 // pred_fallthru
      _
    // Predicated region
    $region66: #{tpu_custom_call.1} parent=1 // pred_check
      _
    $region67: #{tpu_custom_call.1} parent=1 // pred_check_branch
      %82 = sbr.rel (0) target = $region69
    $region68: #{tpu_custom_call.1} parent=1 // pred_region
      _
    $region69: #{tpu_custom_call.1} parent=1 // pred_fallthru
      _
    // Predicated region
    $region70: #{tpu_custom_call.1} parent=1 // pred_check
      _
    $region71: #{tpu_custom_call.1} parent=1 // pred_check_branch
      %84 = sbr.rel (0) target = $region73
    $region72: #{tpu_custom_call.1} parent=1 // pred_region
      %85 = dma.done [#allocation3], 16
    $region73: #{tpu_custom_call.1} parent=1 // pred_fallthru
      _
    // Predicated region
    $region74: #{tpu_custom_call.1} parent=1 // pred_check
      _
    $region75: #{tpu_custom_call.1} parent=1 // pred_check_branch
      %87 = sbr.rel (0) target = $region77
    $region76: #{tpu_custom_call.1} parent=1 // pred_region
      %88 = dma.done [#allocation6], 16
    $region77: #{tpu_custom_call.1} parent=1 // pred_fallthru
      _
    // Predicated region
    $region78: #{tpu_custom_call.1} parent=1 // pred_check
      _
    $region79: #{tpu_custom_call.1} parent=1 // pred_check_branch
      %90 = sbr.rel (0) target = $region81
    $region80: #{tpu_custom_call.1} parent=1 // pred_region
      %91 = dma.done [#allocation6], 16
    $region81: #{tpu_custom_call.1} parent=1 // pred_fallthru
      _
    %v93 = vld [vmem:[%s0] sm:$0xff]
    %v94 = vld [vmem:[%s0 + $0x8] sm:$0xff]
    %vm95 = vcmask 261120
    %v96 = vsel %vm95, %v93, 0.0
    %97 = vadd.xlane.f32.xlu0 %v96
    %v98 = vpop.xlane.xlu0 %97
    %v99 = vsel %vm95, %v94, 0.0
    %100 = vadd.xlane.f32.xlu0 %v99
    %v101 = vpop.xlane.xlu0 %100
    %v102 = vrcp.pop 32.0
    %v103 = vmul.f32 %v98, %v102
    %v104 = vmul.f32 %v101, %v102
    %v105 = vsub.f32 %v93, %v103
    %v106 = vsub.f32 %v94, %v104
    %v107 = vmul.f32 %v105, %v105
    %v108 = vmul.f32 %v106, %v106
    %v109 = vsel %vm95, %v107, 0.0
    %110 = vadd.xlane.f32.xlu0 %v109
    %v111 = vpop.xlane.xlu0 %110
    %v112 = vsel %vm95, %v108, 0.0
    %113 = vadd.xlane.f32.xlu0 %v112
    %v114 = vpop.xlane.xlu0 %113
    %v115 = vmul.f32 %v111, %v102
    %v116 = vmul.f32 %v114, %v102
    %v117 = vadd.f32 %v115, 1e-05
    %v118 = vadd.f32 %v116, 1e-05
    %v119 = vrsqrt.pop %v117
    %v120 = vrsqrt.pop %v118
    %v121 = vmul.f32 %v105, %v119
    %v122 = vmul.f32 %v106, %v120
    %v123 = vld [vmem:[%s1] sm:$0x1]
    %v125 = vlaneseq
    %v126 = vshrl.u32 %v125, 7
    %v127 = vsub.s32 0, %v126
    %v128 = vrot.slane %v123, %v127
    %v130 = vmul.f32 %v121, %v128
    %v131 = vmul.f32 %v122, %v128
    %v132 = vld [vmem:[%s2] sm:$0x1]
    %v134 = vlaneseq
    %v135 = vshrl.u32 %v134, 7
    %v136 = vsub.s32 0, %v135
    %v137 = vrot.slane %v132, %v136
    %v139 = vadd.f32 %v130, %v137
    %v140 = vadd.f32 %v131, %v137
    %v141 = vpack.c.bf16 %v140, %v139
    %v142 = vld [vmem:[%s3] sm:$0xf]
    %v143 = vld [vmem:[%s3 + $0x4] sm:$0xf]
    %v144 = vld [vmem:[%s3 + $0x8] sm:$0xf]
    %v145 = vld [vmem:[%s3 + $0xc] sm:$0xf]
    %v146 = vld [vmem:[#allocation2] sm:$0x1]
    %v148 = vlaneseq
    %v149 = vshrl.u32 %v148, 7
    %v150 = vsub.s32 0, %v149
    %v151 = vrot.slane %v146, %v150
    %v157 = vunpack.c.l.b16 %v142
    %v158 = vunpack.c.l.b16 %v143
    %v159 = vunpack.c.l.b16 %v144
    %v160 = vunpack.c.l.b16 %v145
    %v161 = vpack.c.b16 %v158, %v157
    %v162 = vpack.c.b16 %v160, %v159
    %v166 = vsel %vm95, %v141, 0
    %168 = vmatprep.subr.bf16.mxu0 0
    %169 = vmatpush1.bf16.msra.mxu0 %v161
    %170 = vmatprep.subr.bf16.mxu0 0
    %171 = vmatpush1.bf16.msra.mxu0 %v162
    %172 = vmatprep.subr.bf16.mxu0 0
    %173 = vmatpush1.bf16.msra.mxu0 0
    %174 = vmatprep.subr.bf16.mxu0 0
    %175 = vmatpush1.bf16.msra.mxu0 0
    %176 = vmatprep.subr.bf16.mxu0 0
    %177 = vmatpush1.bf16.msra.mxu0 0
    %178 = vmatprep.subr.bf16.mxu0 0
    %179 = vmatpush1.bf16.msra.mxu0 0
    %180 = vmatprep.subr.bf16.mxu0 0
    %181 = vmatpush1.bf16.msra.mxu0 0
    %182 = vmatprep.subr.bf16.mxu0 0
    %183 = vmatpush1.bf16.msra.mxu0 0
    %184 = vmatprep.subr.bf16.mxu0 0
    %185 = vmatpush1.bf16.msra.mxu0 0
    %186 = vmatprep.subr.bf16.mxu0 0
    %187 = vmatpush1.bf16.msra.mxu0 0
    %188 = vmatprep.subr.bf16.mxu0 0
    %189 = vmatpush1.bf16.msra.mxu0 0
    %190 = vmatprep.subr.bf16.mxu0 0
    %191 = vmatpush1.bf16.msra.mxu0 0
    %192 = vmatprep.subr.bf16.mxu0 0
    %193 = vmatpush1.bf16.msra.mxu0 0
    %194 = vmatprep.subr.bf16.mxu0 0
    %195 = vmatpush1.bf16.msra.mxu0 0
    %196 = vmatprep.subr.bf16.mxu0 0
    %197 = vmatpush1.bf16.msra.mxu0 0
    %198 = vmatprep.subr.bf16.mxu0 0
    %199 = vmatpush1.bf16.msra.mxu0 0
    %200 = vmatprep.mubr.bf16.mxu0 0
    %201 = vmatmul.mubr.bf16.gmra.mrb[0].mxu0 %v166
    %v202 = vpop.f32.mrb[0].mxu0
    %v203 = vadd.f32 %v151, %v202
    %v204 = vpop.f32.mrb[0].mxu0
    %v205 = vpop.f32.mrb[0].mxu0
    %v206 = vadd.f32 %v151, %v205
    %v207 = vpop.f32.mrb[0].mxu0
    %208 = vdwg.mxu0
    %v209 = vpack.c.bf16 %v206, %v203
    %v210 = vld [vmem:[%s5] sm:$0xf]
    %v211 = vld [vmem:[%s5 + $0x4] sm:$0xf]
    %v212 = vld [vmem:[%s5 + $0x8] sm:$0xf]
    %v213 = vld [vmem:[%s5 + $0xc] sm:$0xf]
    %v214 = vld [vmem:[#allocation5] sm:$0x1]
    %v216 = vlaneseq
    %v217 = vshrl.u32 %v216, 7
    %v218 = vsub.s32 0, %v217
    %v219 = vrot.slane %v214, %v218
    %v225 = vunpack.c.l.b16 %v210
    %v226 = vunpack.c.l.b16 %v211
    %v227 = vunpack.c.l.b16 %v212
    %v228 = vunpack.c.l.b16 %v213
    %v229 = vpack.c.b16 %v226, %v225
    %v230 = vpack.c.b16 %v228, %v227
    %233 = vmatprep.subr.bf16.mxu0 0
    %234 = vmatpush1.bf16.msra.mxu0 %v229
    %235 = vmatprep.subr.bf16.mxu0 0
    %236 = vmatpush1.bf16.msra.mxu0 %v230
    %237 = vmatprep.subr.bf16.mxu0 0
    %238 = vmatpush1.bf16.msra.mxu0 0
    %239 = vmatprep.subr.bf16.mxu0 0
    %240 = vmatpush1.bf16.msra.mxu0 0
    %241 = vmatprep.subr.bf16.mxu0 0
    %242 = vmatpush1.bf16.msra.mxu0 0
    %243 = vmatprep.subr.bf16.mxu0 0
    %244 = vmatpush1.bf16.msra.mxu0 0
    %245 = vmatprep.subr.bf16.mxu0 0
    %246 = vmatpush1.bf16.msra.mxu0 0
    %247 = vmatprep.subr.bf16.mxu0 0
    %248 = vmatpush1.bf16.msra.mxu0 0
    %249 = vmatprep.subr.bf16.mxu0 0
    %250 = vmatpush1.bf16.msra.mxu0 0
    %251 = vmatprep.subr.bf16.mxu0 0
    %252 = vmatpush1.bf16.msra.mxu0 0
    %253 = vmatprep.subr.bf16.mxu0 0
    %254 = vmatpush1.bf16.msra.mxu0 0
    %255 = vmatprep.subr.bf16.mxu0 0
    %256 = vmatpush1.bf16.msra.mxu0 0
    %257 = vmatprep.subr.bf16.mxu0 0
    %258 = vmatpush1.bf16.msra.mxu0 0
    %259 = vmatprep.subr.bf16.mxu0 0
    %260 = vmatpush1.bf16.msra.mxu0 0
    %261 = vmatprep.subr.bf16.mxu0 0
    %262 = vmatpush1.bf16.msra.mxu0 0
    %263 = vmatprep.subr.bf16.mxu0 0
    %264 = vmatpush1.bf16.msra.mxu0 0
    %265 = vmatprep.mubr.bf16.mxu0 0
    %266 = vmatmul.mubr.bf16.gmra.mrb[0].mxu0 %v166
    %v267 = vpop.f32.mrb[0].mxu0
    %v268 = vadd.f32 %v219, %v267
    %v269 = vpop.f32.mrb[0].mxu0
    %v270 = vpop.f32.mrb[0].mxu0
    %v271 = vadd.f32 %v219, %v270
    %v272 = vpop.f32.mrb[0].mxu0
    %273 = vdwg.mxu0
    %v274 = vpack.c.bf16 %v271, %v268
    %v275 = vld [vmem:[%s7] sm:$0xf]
    %v276 = vld [vmem:[%s7 + $0x4] sm:$0xf]
    %v277 = vld [vmem:[%s7 + $0x8] sm:$0xf]
    %v278 = vld [vmem:[%s7 + $0xc] sm:$0xf]
    %v279 = vld [vmem:[#allocation7] sm:$0x1]
    %v281 = vlaneseq
    %v282 = vshrl.u32 %v281, 7
    %v283 = vsub.s32 0, %v282
    %v284 = vrot.slane %v279, %v283
    %v290 = vunpack.c.l.b16 %v275
    %v291 = vunpack.c.l.b16 %v276
    %v292 = vunpack.c.l.b16 %v277
    %v293 = vunpack.c.l.b16 %v278
    %v294 = vpack.c.b16 %v291, %v290
    %v295 = vpack.c.b16 %v293, %v292
    %298 = vmatprep.subr.bf16.mxu0 0
    %299 = vmatpush1.bf16.msra.mxu0 %v294
    %300 = vmatprep.subr.bf16.mxu0 0
    %301 = vmatpush1.bf16.msra.mxu0 %v295
    %302 = vmatprep.subr.bf16.mxu0 0
    %303 = vmatpush1.bf16.msra.mxu0 0
    %304 = vmatprep.subr.bf16.mxu0 0
    %305 = vmatpush1.bf16.msra.mxu0 0
    %306 = vmatprep.subr.bf16.mxu0 0
    %307 = vmatpush1.bf16.msra.mxu0 0
    %308 = vmatprep.subr.bf16.mxu0 0
    %309 = vmatpush1.bf16.msra.mxu0 0
    %310 = vmatprep.subr.bf16.mxu0 0
    %311 = vmatpush1.bf16.msra.mxu0 0
    %312 = vmatprep.subr.bf16.mxu0 0
    %313 = vmatpush1.bf16.msra.mxu0 0
    %314 = vmatprep.subr.bf16.mxu0 0
    %315 = vmatpush1.bf16.msra.mxu0 0
    %316 = vmatprep.subr.bf16.mxu0 0
    %317 = vmatpush1.bf16.msra.mxu0 0
    %318 = vmatprep.subr.bf16.mxu0 0
    %319 = vmatpush1.bf16.msra.mxu0 0
    %320 = vmatprep.subr.bf16.mxu0 0
    %321 = vmatpush1.bf16.msra.mxu0 0
    %322 = vmatprep.subr.bf16.mxu0 0
    %323 = vmatpush1.bf16.msra.mxu0 0
    %324 = vmatprep.subr.bf16.mxu0 0
    %325 = vmatpush1.bf16.msra.mxu0 0
    %326 = vmatprep.subr.bf16.mxu0 0
    %327 = vmatpush1.bf16.msra.mxu0 0
    %328 = vmatprep.subr.bf16.mxu0 0
    %329 = vmatpush1.bf16.msra.mxu0 0
    %330 = vmatprep.mubr.bf16.mxu0 0
    %331 = vmatmul.mubr.bf16.gmra.mrb[0].mxu0 %v166
    %v332 = vpop.f32.mrb[0].mxu0
    %v333 = vadd.f32 %v284, %v332
    %v334 = vpop.f32.mrb[0].mxu0
    %v335 = vpop.f32.mrb[0].mxu0
    %v336 = vadd.f32 %v284, %v335
    %v337 = vpop.f32.mrb[0].mxu0
    %338 = vdwg.mxu0
    %v339 = vpack.c.bf16 %v336, %v333
    %v341 = vunpack.c.l.b16 %v209
    %v342 = vunpack.c.h.b16 %v209
    %v343 = vpack.c.b16 %v341, %v341
    %v344 = vpack.c.b16 %v342, %v342
    %v346 = vunpack.c.l.b16 %v274
    %v347 = vunpack.c.h.b16 %v274
    %v348 = vpack.c.b16 %v346, %v346
    %v349 = vpack.c.b16 %v347, %v347
    %v351 = vunpack.c.l.b16 %v339
    %v352 = vunpack.c.h.b16 %v339
    %v353 = vpack.c.b16 %v351, %v351
    %v354 = vpack.c.b16 %v352, %v352
    %v355 = vlaneseq
    %v356 = vshrl.u32 %v355, 7
    %v357 = vlaneseq
    %v358 = vand.u32 %v357, 127
    %vm359 = vcmp.gt.s32.totalorder %v358, %v356
    %v360 = vsel %vm359, -1e+30, 0.0
    %vm361 = vcmask 64512
    %v363 = vsel %vm361, %v343, 0
    %v366 = vsel %vm361, %v348, 0
    %368 = vmatprep.subr.bf16.mxu0 0
    %369 = vmatpush1.bf16.xpose.msra.mxu0 %v366
    %370 = vmatprep.subr.bf16.mxu0 0
    %371 = vmatpush1.bf16.xpose.msra.mxu0 0
    %372 = vmatprep.subr.bf16.mxu0 0
    %373 = vmatpush1.bf16.xpose.msra.mxu0 0
    %374 = vmatprep.subr.bf16.mxu0 0
    %375 = vmatpush1.bf16.xpose.msra.mxu0 0
    %376 = vmatprep.subr.bf16.mxu0 0
    %377 = vmatpush1.bf16.xpose.msra.mxu0 0
    %378 = vmatprep.subr.bf16.mxu0 0
    %379 = vmatpush1.bf16.xpose.msra.mxu0 0
    %380 = vmatprep.subr.bf16.mxu0 0
    %381 = vmatpush1.bf16.xpose.msra.mxu0 0
    %382 = vmatprep.subr.bf16.mxu0 0
    %383 = vmatpush1.bf16.xpose.msra.mxu0 0
    %384 = vmatprep.subr.bf16.mxu0 0
    %385 = vmatpush1.bf16.xpose.msra.mxu0 0
    %386 = vmatprep.subr.bf16.mxu0 0
    %387 = vmatpush1.bf16.xpose.msra.mxu0 0
    %388 = vmatprep.subr.bf16.mxu0 0
    %389 = vmatpush1.bf16.xpose.msra.mxu0 0
    %390 = vmatprep.subr.bf16.mxu0 0
    %391 = vmatpush1.bf16.xpose.msra.mxu0 0
    %392 = vmatprep.subr.bf16.mxu0 0
    %393 = vmatpush1.bf16.xpose.msra.mxu0 0
    %394 = vmatprep.subr.bf16.mxu0 0
    %395 = vmatpush1.bf16.xpose.msra.mxu0 0
    %396 = vmatprep.subr.bf16.mxu0 0
    %397 = vmatpush1.bf16.xpose.msra.mxu0 0
    %398 = vmatprep.subr.bf16.mxu0 0
    %399 = vmatpush1.bf16.xpose.msra.mxu0 0
    %400 = vmatprep.mubr.bf16.mxu0 0
    %401 = vmatmul.mubr.bf16.gmra.mrb[0].mxu0 %v363
    %v402 = vpop.f32.mrb[0].mxu0
    %v403 = vadd.f32 %v360, %v402
    %v404 = vpop.f32.mrb[0].mxu0
    %v405 = vpop.f32.mrb[0].mxu0
    %v406 = vpop.f32.mrb[0].mxu0
    %407 = vdwg.mxu0
    %v409 = vsel %vm361, %v344, 0
    %v412 = vsel %vm361, %v349, 0
    %414 = vmatprep.subr.bf16.mxu0 0
    %415 = vmatpush1.bf16.xpose.msra.mxu0 %v412
    %416 = vmatprep.subr.bf16.mxu0 0
    %417 = vmatpush1.bf16.xpose.msra.mxu0 0
    %418 = vmatprep.subr.bf16.mxu0 0
    %419 = vmatpush1.bf16.xpose.msra.mxu0 0
    %420 = vmatprep.subr.bf16.mxu0 0
    %421 = vmatpush1.bf16.xpose.msra.mxu0 0
    %422 = vmatprep.subr.bf16.mxu0 0
    %423 = vmatpush1.bf16.xpose.msra.mxu0 0
    %424 = vmatprep.subr.bf16.mxu0 0
    %425 = vmatpush1.bf16.xpose.msra.mxu0 0
    %426 = vmatprep.subr.bf16.mxu0 0
    %427 = vmatpush1.bf16.xpose.msra.mxu0 0
    %428 = vmatprep.subr.bf16.mxu0 0
    %429 = vmatpush1.bf16.xpose.msra.mxu0 0
    %430 = vmatprep.subr.bf16.mxu0 0
    %431 = vmatpush1.bf16.xpose.msra.mxu0 0
    %432 = vmatprep.subr.bf16.mxu0 0
    %433 = vmatpush1.bf16.xpose.msra.mxu0 0
    %434 = vmatprep.subr.bf16.mxu0 0
    %435 = vmatpush1.bf16.xpose.msra.mxu0 0
    %436 = vmatprep.subr.bf16.mxu0 0
    %437 = vmatpush1.bf16.xpose.msra.mxu0 0
    %438 = vmatprep.subr.bf16.mxu0 0
    %439 = vmatpush1.bf16.xpose.msra.mxu0 0
    %440 = vmatprep.subr.bf16.mxu0 0
    %441 = vmatpush1.bf16.xpose.msra.mxu0 0
    %442 = vmatprep.subr.bf16.mxu0 0
    %443 = vmatpush1.bf16.xpose.msra.mxu0 0
    %444 = vmatprep.subr.bf16.mxu0 0
    %445 = vmatpush1.bf16.xpose.msra.mxu0 0
    %446 = vmatprep.mubr.bf16.mxu0 0
    %447 = vmatmul.mubr.bf16.gmra.mrb[0].mxu0 %v409
    %v448 = vpop.f32.mrb[0].mxu0
    %v449 = vadd.f32 %v360, %v448
    %v450 = vpop.f32.mrb[0].mxu0
    %v451 = vpop.f32.mrb[0].mxu0
    %v452 = vpop.f32.mrb[0].mxu0
    %453 = vdwg.mxu0
    %v454 = vsel %vm361, %v403, -inf
    %455 = vmax.xlane.f32.xlu0 %v454
    %v456 = vpop.xlane.xlu0 %455
    %v457 = vsel %vm361, %v449, -inf
    %458 = vmax.xlane.f32.xlu0 %v457
    %v459 = vpop.xlane.xlu0 %458
    %v460 = vsub.f32 %v403, %v456
    %v461 = vsub.f32 %v449, %v459
    %v462 = vmul.f32 %v460, 1.442695
    %v463 = vpow.pop %v462
    %v464 = vmul.f32 %v461, 1.442695
    %v465 = vpow.pop %v464
    %v466 = vsel %vm361, %v463, 0.0
    %467 = vadd.xlane.f32.xlu0 %v466
    %v468 = vpop.xlane.xlu0 %467
    %v469 = vsel %vm361, %v465, 0.0
    %470 = vadd.xlane.f32.xlu0 %v469
    %v471 = vpop.xlane.xlu0 %470
    %v472 = vrcp.pop %v468
    %v473 = vrcp.pop %v471
    %v474 = vmul.f32 %v463, %v472
    %v475 = vmul.f32 %v465, %v473
    %v476 = vpack.c.bf16 %v474, %v474
    %v477 = vpack.c.bf16 %v475, %v475
    %v479 = vsel %vm361, %v476, 0
    %vm481 = vcmask 1043456
    %v483 = vsel %vm481, %v353, 0
    %485 = vmatprep.subr.bf16.mxu0 0
    %486 = vmatpush1.bf16.msra.mxu0 %v483
    %487 = vmatprep.subr.bf16.mxu0 0
    %488 = vmatpush1.bf16.msra.mxu0 0
    %489 = vmatprep.subr.bf16.mxu0 0
    %490 = vmatpush1.bf16.msra.mxu0 0
    %491 = vmatprep.subr.bf16.mxu0 0
    %492 = vmatpush1.bf16.msra.mxu0 0
    %493 = vmatprep.subr.bf16.mxu0 0
    %494 = vmatpush1.bf16.msra.mxu0 0
    %495 = vmatprep.subr.bf16.mxu0 0
    %496 = vmatpush1.bf16.msra.mxu0 0
    %497 = vmatprep.subr.bf16.mxu0 0
    %498 = vmatpush1.bf16.msra.mxu0 0
    %499 = vmatprep.subr.bf16.mxu0 0
    %500 = vmatpush1.bf16.msra.mxu0 0
    %501 = vmatprep.subr.bf16.mxu0 0
    %502 = vmatpush1.bf16.msra.mxu0 0
    %503 = vmatprep.subr.bf16.mxu0 0
    %504 = vmatpush1.bf16.msra.mxu0 0
    %505 = vmatprep.subr.bf16.mxu0 0
    %506 = vmatpush1.bf16.msra.mxu0 0
    %507 = vmatprep.subr.bf16.mxu0 0
    %508 = vmatpush1.bf16.msra.mxu0 0
    %509 = vmatprep.subr.bf16.mxu0 0
    %510 = vmatpush1.bf16.msra.mxu0 0
    %511 = vmatprep.subr.bf16.mxu0 0
    %512 = vmatpush1.bf16.msra.mxu0 0
    %513 = vmatprep.subr.bf16.mxu0 0
    %514 = vmatpush1.bf16.msra.mxu0 0
    %515 = vmatprep.subr.bf16.mxu0 0
    %516 = vmatpush1.bf16.msra.mxu0 0
    %517 = vmatprep.mubr.bf16.mxu0 0
    %518 = vmatmul.mubr.bf16.gmra.mrb[0].mxu0 %v479
    %v519 = vpop.f32.mrb[0].mxu0
    %v520 = vadd.f32 0.0, %v519
    %v521 = vpop.f32.mrb[0].mxu0
    %v522 = vpop.f32.mrb[0].mxu0
    %v523 = vpop.f32.mrb[0].mxu0
    %524 = vdwg.mxu0
    %v526 = vsel %vm361, %v477, 0
    %v529 = vsel %vm481, %v354, 0
    %531 = vmatprep.subr.bf16.mxu0 0
    %532 = vmatpush1.bf16.msra.mxu0 %v529
    %533 = vmatprep.subr.bf16.mxu0 0
    %534 = vmatpush1.bf16.msra.mxu0 0
    %535 = vmatprep.subr.bf16.mxu0 0
    %536 = vmatpush1.bf16.msra.mxu0 0
    %537 = vmatprep.subr.bf16.mxu0 0
    %538 = vmatpush1.bf16.msra.mxu0 0
    %539 = vmatprep.subr.bf16.mxu0 0
    %540 = vmatpush1.bf16.msra.mxu0 0
    %541 = vmatprep.subr.bf16.mxu0 0
    %542 = vmatpush1.bf16.msra.mxu0 0
    %543 = vmatprep.subr.bf16.mxu0 0
    %544 = vmatpush1.bf16.msra.mxu0 0
    %545 = vmatprep.subr.bf16.mxu0 0
    %546 = vmatpush1.bf16.msra.mxu0 0
    %547 = vmatprep.subr.bf16.mxu0 0
    %548 = vmatpush1.bf16.msra.mxu0 0
    %549 = vmatprep.subr.bf16.mxu0 0
    %550 = vmatpush1.bf16.msra.mxu0 0
    %551 = vmatprep.subr.bf16.mxu0 0
    %552 = vmatpush1.bf16.msra.mxu0 0
    %553 = vmatprep.subr.bf16.mxu0 0
    %554 = vmatpush1.bf16.msra.mxu0 0
    %555 = vmatprep.subr.bf16.mxu0 0
    %556 = vmatpush1.bf16.msra.mxu0 0
    %557 = vmatprep.subr.bf16.mxu0 0
    %558 = vmatpush1.bf16.msra.mxu0 0
    %559 = vmatprep.subr.bf16.mxu0 0
    %560 = vmatpush1.bf16.msra.mxu0 0
    %561 = vmatprep.subr.bf16.mxu0 0
    %562 = vmatpush1.bf16.msra.mxu0 0
    %563 = vmatprep.mubr.bf16.mxu0 0
    %564 = vmatmul.mubr.bf16.gmra.mrb[0].mxu0 %v526
    %v565 = vpop.f32.mrb[0].mxu0
    %v566 = vadd.f32 0.0, %v565
    %v567 = vpop.f32.mrb[0].mxu0
    %v568 = vpop.f32.mrb[0].mxu0
    %v569 = vpop.f32.mrb[0].mxu0
    %570 = vdwg.mxu0
    %v571 = vpack.c.bf16 %v566, %v520
    %v572 = vld [vmem:[%s9] sm:$0xf]
    %573 = vrot.lane.b32.xlu0 %v343, 120
    %v574 = vpop.permute.xlu0 %573
    %575 = vrot.lane.b32.xlu0 %v348, 120
    %v576 = vpop.permute.xlu0 %575
    %v578 = vsel %vm361, %v574, 0
    %v581 = vsel %vm361, %v576, 0
    %583 = vmatprep.subr.bf16.mxu0 0
    %584 = vmatpush1.bf16.xpose.msra.mxu0 %v581
    %585 = vmatprep.subr.bf16.mxu0 0
    %586 = vmatpush1.bf16.xpose.msra.mxu0 0
    %587 = vmatprep.subr.bf16.mxu0 0
    %588 = vmatpush1.bf16.xpose.msra.mxu0 0
    %589 = vmatprep.subr.bf16.mxu0 0
    %590 = vmatpush1.bf16.xpose.msra.mxu0 0
    %591 = vmatprep.subr.bf16.mxu0 0
    %592 = vmatpush1.bf16.xpose.msra.mxu0 0
    %593 = vmatprep.subr.bf16.mxu0 0
    %594 = vmatpush1.bf16.xpose.msra.mxu0 0
    %595 = vmatprep.subr.bf16.mxu0 0
    %596 = vmatpush1.bf16.xpose.msra.mxu0 0
    %597 = vmatprep.subr.bf16.mxu0 0
    %598 = vmatpush1.bf16.xpose.msra.mxu0 0
    %599 = vmatprep.subr.bf16.mxu0 0
    %600 = vmatpush1.bf16.xpose.msra.mxu0 0
    %601 = vmatprep.subr.bf16.mxu0 0
    %602 = vmatpush1.bf16.xpose.msra.mxu0 0
    %603 = vmatprep.subr.bf16.mxu0 0
    %604 = vmatpush1.bf16.xpose.msra.mxu0 0
    %605 = vmatprep.subr.bf16.mxu0 0
    %606 = vmatpush1.bf16.xpose.msra.mxu0 0
    %607 = vmatprep.subr.bf16.mxu0 0
    %608 = vmatpush1.bf16.xpose.msra.mxu0 0
    %609 = vmatprep.subr.bf16.mxu0 0
    %610 = vmatpush1.bf16.xpose.msra.mxu0 0
    %611 = vmatprep.subr.bf16.mxu0 0
    %612 = vmatpush1.bf16.xpose.msra.mxu0 0
    %613 = vmatprep.subr.bf16.mxu0 0
    %614 = vmatpush1.bf16.xpose.msra.mxu0 0
    %615 = vmatprep.mubr.bf16.mxu0 0
    %616 = vmatmul.mubr.bf16.gmra.mrb[0].mxu0 %v578
    %v617 = vpop.f32.mrb[0].mxu0
    %v618 = vadd.f32 %v360, %v617
    %v619 = vpop.f32.mrb[0].mxu0
    %v620 = vpop.f32.mrb[0].mxu0
    %v621 = vpop.f32.mrb[0].mxu0
    %622 = vdwg.mxu0
    %623 = vrot.lane.b32.xlu0 %v344, 120
    %v624 = vpop.permute.xlu0 %623
    %625 = vrot.lane.b32.xlu0 %v349, 120
    %v626 = vpop.permute.xlu0 %625
    %v628 = vsel %vm361, %v624, 0
    %v631 = vsel %vm361, %v626, 0
    %633 = vmatprep.subr.bf16.mxu0 0
    %634 = vmatpush1.bf16.xpose.msra.mxu0 %v631
    %635 = vmatprep.subr.bf16.mxu0 0
    %636 = vmatpush1.bf16.xpose.msra.mxu0 0
    %637 = vmatprep.subr.bf16.mxu0 0
    %638 = vmatpush1.bf16.xpose.msra.mxu0 0
    %639 = vmatprep.subr.bf16.mxu0 0
    %640 = vmatpush1.bf16.xpose.msra.mxu0 0
    %641 = vmatprep.subr.bf16.mxu0 0
    %642 = vmatpush1.bf16.xpose.msra.mxu0 0
    %643 = vmatprep.subr.bf16.mxu0 0
    %644 = vmatpush1.bf16.xpose.msra.mxu0 0
    %645 = vmatprep.subr.bf16.mxu0 0
    %646 = vmatpush1.bf16.xpose.msra.mxu0 0
    %647 = vmatprep.subr.bf16.mxu0 0
    %648 = vmatpush1.bf16.xpose.msra.mxu0 0
    %649 = vmatprep.subr.bf16.mxu0 0
    %650 = vmatpush1.bf16.xpose.msra.mxu0 0
    %651 = vmatprep.subr.bf16.mxu0 0
    %652 = vmatpush1.bf16.xpose.msra.mxu0 0
    %653 = vmatprep.subr.bf16.mxu0 0
    %654 = vmatpush1.bf16.xpose.msra.mxu0 0
    %655 = vmatprep.subr.bf16.mxu0 0
    %656 = vmatpush1.bf16.xpose.msra.mxu0 0
    %657 = vmatprep.subr.bf16.mxu0 0
    %658 = vmatpush1.bf16.xpose.msra.mxu0 0
    %659 = vmatprep.subr.bf16.mxu0 0
    %660 = vmatpush1.bf16.xpose.msra.mxu0 0
    %661 = vmatprep.subr.bf16.mxu0 0
    %662 = vmatpush1.bf16.xpose.msra.mxu0 0
    %663 = vmatprep.subr.bf16.mxu0 0
    %664 = vmatpush1.bf16.xpose.msra.mxu0 0
    %665 = vmatprep.mubr.bf16.mxu0 0
    %666 = vmatmul.mubr.bf16.gmra.mrb[0].mxu0 %v628
    %v667 = vpop.f32.mrb[0].mxu0
    %v668 = vadd.f32 %v360, %v667
    %v669 = vpop.f32.mrb[0].mxu0
    %v670 = vpop.f32.mrb[0].mxu0
    %v671 = vpop.f32.mrb[0].mxu0
    %672 = vdwg.mxu0
    %v673 = vsel %vm361, %v618, -inf
    %674 = vmax.xlane.f32.xlu0 %v673
    %v675 = vpop.xlane.xlu0 %674
    %v676 = vsel %vm361, %v668, -inf
    %677 = vmax.xlane.f32.xlu0 %v676
    %v678 = vpop.xlane.xlu0 %677
    %v679 = vsub.f32 %v618, %v675
    %v680 = vsub.f32 %v668, %v678
    %v681 = vmul.f32 %v679, 1.442695
    %v682 = vpow.pop %v681
    %v683 = vmul.f32 %v680, 1.442695
    %v684 = vpow.pop %v683
    %v685 = vsel %vm361, %v682, 0.0
    %686 = vadd.xlane.f32.xlu0 %v685
    %v687 = vpop.xlane.xlu0 %686
    %v688 = vsel %vm361, %v684, 0.0
    %689 = vadd.xlane.f32.xlu0 %v688
    %v690 = vpop.xlane.xlu0 %689
    %v691 = vrcp.pop %v687
    %v692 = vrcp.pop %v690
    %v693 = vmul.f32 %v682, %v691
    %v694 = vmul.f32 %v684, %v692
    %v695 = vpack.c.bf16 %v693, %v693
    %v696 = vpack.c.bf16 %v694, %v694
    %697 = vrot.lane.b32.xlu0 %v353, 120
    %v698 = vpop.permute.xlu0 %697
    %v700 = vsel %vm361, %v695, 0
    %v703 = vsel %vm481, %v698, 0
    %705 = vmatprep.subr.bf16.mxu0 0
    %706 = vmatpush1.bf16.msra.mxu0 %v703
    %707 = vmatprep.subr.bf16.mxu0 0
    %708 = vmatpush1.bf16.msra.mxu0 0
    %709 = vmatprep.subr.bf16.mxu0 0
    %710 = vmatpush1.bf16.msra.mxu0 0
    %711 = vmatprep.subr.bf16.mxu0 0
    %712 = vmatpush1.bf16.msra.mxu0 0
    %713 = vmatprep.subr.bf16.mxu0 0
    %714 = vmatpush1.bf16.msra.mxu0 0
    %715 = vmatprep.subr.bf16.mxu0 0
    %716 = vmatpush1.bf16.msra.mxu0 0
    %717 = vmatprep.subr.bf16.mxu0 0
    %718 = vmatpush1.bf16.msra.mxu0 0
    %719 = vmatprep.subr.bf16.mxu0 0
    %720 = vmatpush1.bf16.msra.mxu0 0
    %721 = vmatprep.subr.bf16.mxu0 0
    %722 = vmatpush1.bf16.msra.mxu0 0
    %723 = vmatprep.subr.bf16.mxu0 0
    %724 = vmatpush1.bf16.msra.mxu0 0
    %725 = vmatprep.subr.bf16.mxu0 0
    %726 = vmatpush1.bf16.msra.mxu0 0
    %727 = vmatprep.subr.bf16.mxu0 0
    %728 = vmatpush1.bf16.msra.mxu0 0
    %729 = vmatprep.subr.bf16.mxu0 0
    %730 = vmatpush1.bf16.msra.mxu0 0
    %731 = vmatprep.subr.bf16.mxu0 0
    %732 = vmatpush1.bf16.msra.mxu0 0
    %733 = vmatprep.subr.bf16.mxu0 0
    %734 = vmatpush1.bf16.msra.mxu0 0
    %735 = vmatprep.subr.bf16.mxu0 0
    %736 = vmatpush1.bf16.msra.mxu0 0
    %737 = vmatprep.mubr.bf16.mxu0 0
    %738 = vmatmul.mubr.bf16.gmra.mrb[0].mxu0 %v700
    %v739 = vpop.f32.mrb[0].mxu0
    %v740 = vadd.f32 0.0, %v739
    %v741 = vpop.f32.mrb[0].mxu0
    %v742 = vpop.f32.mrb[0].mxu0
    %v743 = vpop.f32.mrb[0].mxu0
    %744 = vdwg.mxu0
    %745 = vrot.lane.b32.xlu0 %v354, 120
    %v746 = vpop.permute.xlu0 %745
    %v748 = vsel %vm361, %v696, 0
    %v751 = vsel %vm481, %v746, 0
    %753 = vmatprep.subr.bf16.mxu0 0
    %754 = vmatpush1.bf16.msra.mxu0 %v751
    %755 = vmatprep.subr.bf16.mxu0 0
    %756 = vmatpush1.bf16.msra.mxu0 0
    %757 = vmatprep.subr.bf16.mxu0 0
    %758 = vmatpush1.bf16.msra.mxu0 0
    %759 = vmatprep.subr.bf16.mxu0 0
    %760 = vmatpush1.bf16.msra.mxu0 0
    %761 = vmatprep.subr.bf16.mxu0 0
    %762 = vmatpush1.bf16.msra.mxu0 0
    %763 = vmatprep.subr.bf16.mxu0 0
    %764 = vmatpush1.bf16.msra.mxu0 0
    %765 = vmatprep.subr.bf16.mxu0 0
    %766 = vmatpush1.bf16.msra.mxu0 0
    %767 = vmatprep.subr.bf16.mxu0 0
    %768 = vmatpush1.bf16.msra.mxu0 0
    %769 = vmatprep.subr.bf16.mxu0 0
    %770 = vmatpush1.bf16.msra.mxu0 0
    %771 = vmatprep.subr.bf16.mxu0 0
    %772 = vmatpush1.bf16.msra.mxu0 0
    %773 = vmatprep.subr.bf16.mxu0 0
    %774 = vmatpush1.bf16.msra.mxu0 0
    %775 = vmatprep.subr.bf16.mxu0 0
    %776 = vmatpush1.bf16.msra.mxu0 0
    %777 = vmatprep.subr.bf16.mxu0 0
    %778 = vmatpush1.bf16.msra.mxu0 0
    %779 = vmatprep.subr.bf16.mxu0 0
    %780 = vmatpush1.bf16.msra.mxu0 0
    %781 = vmatprep.subr.bf16.mxu0 0
    %782 = vmatpush1.bf16.msra.mxu0 0
    %783 = vmatprep.subr.bf16.mxu0 0
    %784 = vmatpush1.bf16.msra.mxu0 0
    %785 = vmatprep.mubr.bf16.mxu0 0
    %786 = vmatmul.mubr.bf16.gmra.mrb[0].mxu0 %v748
    %v787 = vpop.f32.mrb[0].mxu0
    %v788 = vadd.f32 0.0, %v787
    %v789 = vpop.f32.mrb[0].mxu0
    %v790 = vpop.f32.mrb[0].mxu0
    %v791 = vpop.f32.mrb[0].mxu0
    %792 = vdwg.mxu0
    %v793 = vpack.c.bf16 %v788, %v740
    %s794 = scalar_lea.vmem %s9, 4
    %v795 = vld [vmem:[%s794] sm:$0xf]
    %v797 = vsel %vm361, %v793, 0
    %v800 = vsel %vm481, %v795, 0
    %802 = vmatprep.subr.bf16.mxu0 0
    %803 = vmatpush1.bf16.msra.mxu0 %v800
    %804 = vmatprep.subr.bf16.mxu0 0
    %805 = vmatpush1.bf16.msra.mxu0 0
    %806 = vmatprep.subr.bf16.mxu0 0
    %807 = vmatpush1.bf16.msra.mxu0 0
    %808 = vmatprep.subr.bf16.mxu0 0
    %809 = vmatpush1.bf16.msra.mxu0 0
    %810 = vmatprep.subr.bf16.mxu0 0
    %811 = vmatpush1.bf16.msra.mxu0 0
    %812 = vmatprep.subr.bf16.mxu0 0
    %813 = vmatpush1.bf16.msra.mxu0 0
    %814 = vmatprep.subr.bf16.mxu0 0
    %815 = vmatpush1.bf16.msra.mxu0 0
    %816 = vmatprep.subr.bf16.mxu0 0
    %817 = vmatpush1.bf16.msra.mxu0 0
    %818 = vmatprep.subr.bf16.mxu0 0
    %819 = vmatpush1.bf16.msra.mxu0 0
    %820 = vmatprep.subr.bf16.mxu0 0
    %821 = vmatpush1.bf16.msra.mxu0 0
    %822 = vmatprep.subr.bf16.mxu0 0
    %823 = vmatpush1.bf16.msra.mxu0 0
    %824 = vmatprep.subr.bf16.mxu0 0
    %825 = vmatpush1.bf16.msra.mxu0 0
    %826 = vmatprep.subr.bf16.mxu0 0
    %827 = vmatpush1.bf16.msra.mxu0 0
    %828 = vmatprep.subr.bf16.mxu0 0
    %829 = vmatpush1.bf16.msra.mxu0 0
    %830 = vmatprep.subr.bf16.mxu0 0
    %831 = vmatpush1.bf16.msra.mxu0 0
    %832 = vmatprep.subr.bf16.mxu0 0
    %833 = vmatpush1.bf16.msra.mxu0 0
    %834 = vmatprep.mubr.bf16.mxu0 0
    %835 = vmatmul.mubr.bf16.gmra.mrb[0].mxu0 %v797
    %v836 = vpop.f32.mrb[0].mxu0
    %v837 = vadd.f32 0.0, %v836
    %v838 = vpop.f32.mrb[0].mxu0
    %v839 = vpop.f32.mrb[0].mxu0
    %v840 = vadd.f32 0.0, %v839
    %v841 = vpop.f32.mrb[0].mxu0
    %842 = vdwg.mxu0
    %v844 = vsel %vm361, %v571, 0
    %v847 = vsel %vm481, %v572, 0
    %849 = vmatprep.subr.bf16.mxu0 0
    %850 = vmatpush1.bf16.msra.mxu0 %v847
    %851 = vmatprep.subr.bf16.mxu0 0
    %852 = vmatpush1.bf16.msra.mxu0 0
    %853 = vmatprep.subr.bf16.mxu0 0
    %854 = vmatpush1.bf16.msra.mxu0 0
    %855 = vmatprep.subr.bf16.mxu0 0
    %856 = vmatpush1.bf16.msra.mxu0 0
    %857 = vmatprep.subr.bf16.mxu0 0
    %858 = vmatpush1.bf16.msra.mxu0 0
    %859 = vmatprep.subr.bf16.mxu0 0
    %860 = vmatpush1.bf16.msra.mxu0 0
    %861 = vmatprep.subr.bf16.mxu0 0
    %862 = vmatpush1.bf16.msra.mxu0 0
    %863 = vmatprep.subr.bf16.mxu0 0
    %864 = vmatpush1.bf16.msra.mxu0 0
    %865 = vmatprep.subr.bf16.mxu0 0
    %866 = vmatpush1.bf16.msra.mxu0 0
    %867 = vmatprep.subr.bf16.mxu0 0
    %868 = vmatpush1.bf16.msra.mxu0 0
    %869 = vmatprep.subr.bf16.mxu0 0
    %870 = vmatpush1.bf16.msra.mxu0 0
    %871 = vmatprep.subr.bf16.mxu0 0
    %872 = vmatpush1.bf16.msra.mxu0 0
    %873 = vmatprep.subr.bf16.mxu0 0
    %874 = vmatpush1.bf16.msra.mxu0 0
    %875 = vmatprep.subr.bf16.mxu0 0
    %876 = vmatpush1.bf16.msra.mxu0 0
    %877 = vmatprep.subr.bf16.mxu0 0
    %878 = vmatpush1.bf16.msra.mxu0 0
    %879 = vmatprep.subr.bf16.mxu0 0
    %880 = vmatpush1.bf16.msra.mxu0 0
    %881 = vmatprep.mubr.bf16.mxu0 0
    %882 = vmatmul.mubr.bf16.gmra.mrb[0].mxu0 %v844
    %v883 = vpop.f32.mrb[0].mxu0
    %v884 = vadd.f32 %v837, %v883
    %v885 = vpop.f32.mrb[0].mxu0
    %v886 = vpop.f32.mrb[0].mxu0
    %v887 = vadd.f32 %v840, %v886
    %v888 = vpop.f32.mrb[0].mxu0
    %889 = vdwg.mxu0
    %890 = vrot.lane.b32.xlu0 %v343, 112
    %v891 = vpop.permute.xlu0 %890
    %892 = vrot.lane.b32.xlu0 %v348, 112
    %v893 = vpop.permute.xlu0 %892
    %v895 = vsel %vm361, %v891, 0
    %v898 = vsel %vm361, %v893, 0
    %900 = vmatprep.subr.bf16.mxu0 0
    %901 = vmatpush1.bf16.xpose.msra.mxu0 %v898
    %902 = vmatprep.subr.bf16.mxu0 0
    %903 = vmatpush1.bf16.xpose.msra.mxu0 0
    %904 = vmatprep.subr.bf16.mxu0 0
    %905 = vmatpush1.bf16.xpose.msra.mxu0 0
    %906 = vmatprep.subr.bf16.mxu0 0
    %907 = vmatpush1.bf16.xpose.msra.mxu0 0
    %908 = vmatprep.subr.bf16.mxu0 0
    %909 = vmatpush1.bf16.xpose.msra.mxu0 0
    %910 = vmatprep.subr.bf16.mxu0 0
    %911 = vmatpush1.bf16.xpose.msra.mxu0 0
    %912 = vmatprep.subr.bf16.mxu0 0
    %913 = vmatpush1.bf16.xpose.msra.mxu0 0
    %914 = vmatprep.subr.bf16.mxu0 0
    %915 = vmatpush1.bf16.xpose.msra.mxu0 0
    %916 = vmatprep.subr.bf16.mxu0 0
    %917 = vmatpush1.bf16.xpose.msra.mxu0 0
    %918 = vmatprep.subr.bf16.mxu0 0
    %919 = vmatpush1.bf16.xpose.msra.mxu0 0
    %920 = vmatprep.subr.bf16.mxu0 0
    %921 = vmatpush1.bf16.xpose.msra.mxu0 0
    %922 = vmatprep.subr.bf16.mxu0 0
    %923 = vmatpush1.bf16.xpose.msra.mxu0 0
    %924 = vmatprep.subr.bf16.mxu0 0
    %925 = vmatpush1.bf16.xpose.msra.mxu0 0
    %926 = vmatprep.subr.bf16.mxu0 0
    %927 = vmatpush1.bf16.xpose.msra.mxu0 0
    %928 = vmatprep.subr.bf16.mxu0 0
    %929 = vmatpush1.bf16.xpose.msra.mxu0 0
    %930 = vmatprep.subr.bf16.mxu0 0
    %931 = vmatpush1.bf16.xpose.msra.mxu0 0
    %932 = vmatprep.mubr.bf16.mxu0 0
    %933 = vmatmul.mubr.bf16.gmra.mrb[0].mxu0 %v895
    %v934 = vpop.f32.mrb[0].mxu0
    %v935 = vadd.f32 %v360, %v934
    %v936 = vpop.f32.mrb[0].mxu0
    %v937 = vpop.f32.mrb[0].mxu0
    %v938 = vpop.f32.mrb[0].mxu0
    %939 = vdwg.mxu0
    %940 = vrot.lane.b32.xlu0 %v344, 112
    %v941 = vpop.permute.xlu0 %940
    %942 = vrot.lane.b32.xlu0 %v349, 112
    %v943 = vpop.permute.xlu0 %942
    %v945 = vsel %vm361, %v941, 0
    %v948 = vsel %vm361, %v943, 0
    %950 = vmatprep.subr.bf16.mxu0 0
    %951 = vmatpush1.bf16.xpose.msra.mxu0 %v948
    %952 = vmatprep.subr.bf16.mxu0 0
    %953 = vmatpush1.bf16.xpose.msra.mxu0 0
    %954 = vmatprep.subr.bf16.mxu0 0
    %955 = vmatpush1.bf16.xpose.msra.mxu0 0
    %956 = vmatprep.subr.bf16.mxu0 0
    %957 = vmatpush1.bf16.xpose.msra.mxu0 0
    %958 = vmatprep.subr.bf16.mxu0 0
    %959 = vmatpush1.bf16.xpose.msra.mxu0 0
    %960 = vmatprep.subr.bf16.mxu0 0
    %961 = vmatpush1.bf16.xpose.msra.mxu0 0
    %962 = vmatprep.subr.bf16.mxu0 0
    %963 = vmatpush1.bf16.xpose.msra.mxu0 0
    %964 = vmatprep.subr.bf16.mxu0 0
    %965 = vmatpush1.bf16.xpose.msra.mxu0 0
    %966 = vmatprep.subr.bf16.mxu0 0
    %967 = vmatpush1.bf16.xpose.msra.mxu0 0
    %968 = vmatprep.subr.bf16.mxu0 0
    %969 = vmatpush1.bf16.xpose.msra.mxu0 0
    %970 = vmatprep.subr.bf16.mxu0 0
    %971 = vmatpush1.bf16.xpose.msra.mxu0 0
    %972 = vmatprep.subr.bf16.mxu0 0
    %973 = vmatpush1.bf16.xpose.msra.mxu0 0
    %974 = vmatprep.subr.bf16.mxu0 0
    %975 = vmatpush1.bf16.xpose.msra.mxu0 0
    %976 = vmatprep.subr.bf16.mxu0 0
    %977 = vmatpush1.bf16.xpose.msra.mxu0 0
    %978 = vmatprep.subr.bf16.mxu0 0
    %979 = vmatpush1.bf16.xpose.msra.mxu0 0
    %980 = vmatprep.subr.bf16.mxu0 0
    %981 = vmatpush1.bf16.xpose.msra.mxu0 0
    %982 = vmatprep.mubr.bf16.mxu0 0
    %983 = vmatmul.mubr.bf16.gmra.mrb[0].mxu0 %v945
    %v984 = vpop.f32.mrb[0].mxu0
    %v985 = vadd.f32 %v360, %v984
    %v986 = vpop.f32.mrb[0].mxu0
    %v987 = vpop.f32.mrb[0].mxu0
    %v988 = vpop.f32.mrb[0].mxu0
    %989 = vdwg.mxu0
    %v990 = vsel %vm361, %v935, -inf
    %991 = vmax.xlane.f32.xlu0 %v990
    %v992 = vpop.xlane.xlu0 %991
    %v993 = vsel %vm361, %v985, -inf
    %994 = vmax.xlane.f32.xlu0 %v993
    %v995 = vpop.xlane.xlu0 %994
    %v996 = vsub.f32 %v935, %v992
    %v997 = vsub.f32 %v985, %v995
    %v998 = vmul.f32 %v996, 1.442695
    %v999 = vpow.pop %v998
    %v1000 = vmul.f32 %v997, 1.442695
    %v1001 = vpow.pop %v1000
    %v1002 = vsel %vm361, %v999, 0.0
    %1003 = vadd.xlane.f32.xlu0 %v1002
    %v1004 = vpop.xlane.xlu0 %1003
    %v1005 = vsel %vm361, %v1001, 0.0
    %1006 = vadd.xlane.f32.xlu0 %v1005
    %v1007 = vpop.xlane.xlu0 %1006
    %v1008 = vrcp.pop %v1004
    %v1009 = vrcp.pop %v1007
    %v1010 = vmul.f32 %v999, %v1008
    %v1011 = vmul.f32 %v1001, %v1009
    %v1012 = vpack.c.bf16 %v1010, %v1010
    %v1013 = vpack.c.bf16 %v1011, %v1011
    %1014 = vrot.lane.b32.xlu0 %v353, 112
    %v1015 = vpop.permute.xlu0 %1014
    %v1017 = vsel %vm361, %v1012, 0
    %v1020 = vsel %vm481, %v1015, 0
    %1022 = vmatprep.subr.bf16.mxu0 0
    %1023 = vmatpush1.bf16.msra.mxu0 %v1020
    %1024 = vmatprep.subr.bf16.mxu0 0
    %1025 = vmatpush1.bf16.msra.mxu0 0
    %1026 = vmatprep.subr.bf16.mxu0 0
    %1027 = vmatpush1.bf16.msra.mxu0 0
    %1028 = vmatprep.subr.bf16.mxu0 0
    %1029 = vmatpush1.bf16.msra.mxu0 0
    %1030 = vmatprep.subr.bf16.mxu0 0
    %1031 = vmatpush1.bf16.msra.mxu0 0
    %1032 = vmatprep.subr.bf16.mxu0 0
    %1033 = vmatpush1.bf16.msra.mxu0 0
    %1034 = vmatprep.subr.bf16.mxu0 0
    %1035 = vmatpush1.bf16.msra.mxu0 0
    %1036 = vmatprep.subr.bf16.mxu0 0
    %1037 = vmatpush1.bf16.msra.mxu0 0
    %1038 = vmatprep.subr.bf16.mxu0 0
    %1039 = vmatpush1.bf16.msra.mxu0 0
    %1040 = vmatprep.subr.bf16.mxu0 0
    %1041 = vmatpush1.bf16.msra.mxu0 0
    %1042 = vmatprep.subr.bf16.mxu0 0
    %1043 = vmatpush1.bf16.msra.mxu0 0
    %1044 = vmatprep.subr.bf16.mxu0 0
    %1045 = vmatpush1.bf16.msra.mxu0 0
    %1046 = vmatprep.subr.bf16.mxu0 0
    %1047 = vmatpush1.bf16.msra.mxu0 0
    %1048 = vmatprep.subr.bf16.mxu0 0
    %1049 = vmatpush1.bf16.msra.mxu0 0
    %1050 = vmatprep.subr.bf16.mxu0 0
    %1051 = vmatpush1.bf16.msra.mxu0 0
    %1052 = vmatprep.subr.bf16.mxu0 0
    %1053 = vmatpush1.bf16.msra.mxu0 0
    %1054 = vmatprep.mubr.bf16.mxu0 0
    %1055 = vmatmul.mubr.bf16.gmra.mrb[0].mxu0 %v1017
    %v1056 = vpop.f32.mrb[0].mxu0
    %v1057 = vadd.f32 0.0, %v1056
    %v1058 = vpop.f32.mrb[0].mxu0
    %v1059 = vpop.f32.mrb[0].mxu0
    %v1060 = vpop.f32.mrb[0].mxu0
    %1061 = vdwg.mxu0
    %1062 = vrot.lane.b32.xlu0 %v354, 112
    %v1063 = vpop.permute.xlu0 %1062
    %v1065 = vsel %vm361, %v1013, 0
    %v1068 = vsel %vm481, %v1063, 0
    %1070 = vmatprep.subr.bf16.mxu0 0
    %1071 = vmatpush1.bf16.msra.mxu0 %v1068
    %1072 = vmatprep.subr.bf16.mxu0 0
    %1073 = vmatpush1.bf16.msra.mxu0 0
    %1074 = vmatprep.subr.bf16.mxu0 0
    %1075 = vmatpush1.bf16.msra.mxu0 0
    %1076 = vmatprep.subr.bf16.mxu0 0
    %1077 = vmatpush1.bf16.msra.mxu0 0
    %1078 = vmatprep.subr.bf16.mxu0 0
    %1079 = vmatpush1.bf16.msra.mxu0 0
    %1080 = vmatprep.subr.bf16.mxu0 0
    %1081 = vmatpush1.bf16.msra.mxu0 0
    %1082 = vmatprep.subr.bf16.mxu0 0
    %1083 = vmatpush1.bf16.msra.mxu0 0
    %1084 = vmatprep.subr.bf16.mxu0 0
    %1085 = vmatpush1.bf16.msra.mxu0 0
    %1086 = vmatprep.subr.bf16.mxu0 0
    %1087 = vmatpush1.bf16.msra.mxu0 0
    %1088 = vmatprep.subr.bf16.mxu0 0
    %1089 = vmatpush1.bf16.msra.mxu0 0
    %1090 = vmatprep.subr.bf16.mxu0 0
    %1091 = vmatpush1.bf16.msra.mxu0 0
    %1092 = vmatprep.subr.bf16.mxu0 0
    %1093 = vmatpush1.bf16.msra.mxu0 0
    %1094 = vmatprep.subr.bf16.mxu0 0
    %1095 = vmatpush1.bf16.msra.mxu0 0
    %1096 = vmatprep.subr.bf16.mxu0 0
    %1097 = vmatpush1.bf16.msra.mxu0 0
    %1098 = vmatprep.subr.bf16.mxu0 0
    %1099 = vmatpush1.bf16.msra.mxu0 0
    %1100 = vmatprep.subr.bf16.mxu0 0
    %1101 = vmatpush1.bf16.msra.mxu0 0
    %1102 = vmatprep.mubr.bf16.mxu0 0
    %1103 = vmatmul.mubr.bf16.gmra.mrb[0].mxu0 %v1065
    %v1104 = vpop.f32.mrb[0].mxu0
    %v1105 = vadd.f32 0.0, %v1104
    %v1106 = vpop.f32.mrb[0].mxu0
    %v1107 = vpop.f32.mrb[0].mxu0
    %v1108 = vpop.f32.mrb[0].mxu0
    %1109 = vdwg.mxu0
    %v1110 = vpack.c.bf16 %v1105, %v1057
    %s1111 = scalar_lea.vmem %s9, 8
    %v1112 = vld [vmem:[%s1111] sm:$0xf]
    %v1114 = vsel %vm361, %v1110, 0
    %v1117 = vsel %vm481, %v1112, 0
    %1119 = vmatprep.subr.bf16.mxu0 0
    %1120 = vmatpush1.bf16.msra.mxu0 %v1117
    %1121 = vmatprep.subr.bf16.mxu0 0
    %1122 = vmatpush1.bf16.msra.mxu0 0
    %1123 = vmatprep.subr.bf16.mxu0 0
    %1124 = vmatpush1.bf16.msra.mxu0 0
    %1125 = vmatprep.subr.bf16.mxu0 0
    %1126 = vmatpush1.bf16.msra.mxu0 0
    %1127 = vmatprep.subr.bf16.mxu0 0
    %1128 = vmatpush1.bf16.msra.mxu0 0
    %1129 = vmatprep.subr.bf16.mxu0 0
    %1130 = vmatpush1.bf16.msra.mxu0 0
    %1131 = vmatprep.subr.bf16.mxu0 0
    %1132 = vmatpush1.bf16.msra.mxu0 0
    %1133 = vmatprep.subr.bf16.mxu0 0
    %1134 = vmatpush1.bf16.msra.mxu0 0
    %1135 = vmatprep.subr.bf16.mxu0 0
    %1136 = vmatpush1.bf16.msra.mxu0 0
    %1137 = vmatprep.subr.bf16.mxu0 0
    %1138 = vmatpush1.bf16.msra.mxu0 0
    %1139 = vmatprep.subr.bf16.mxu0 0
    %1140 = vmatpush1.bf16.msra.mxu0 0
    %1141 = vmatprep.subr.bf16.mxu0 0
    %1142 = vmatpush1.bf16.msra.mxu0 0
    %1143 = vmatprep.subr.bf16.mxu0 0
    %1144 = vmatpush1.bf16.msra.mxu0 0
    %1145 = vmatprep.subr.bf16.mxu0 0
    %1146 = vmatpush1.bf16.msra.mxu0 0
    %1147 = vmatprep.subr.bf16.mxu0 0
    %1148 = vmatpush1.bf16.msra.mxu0 0
    %1149 = vmatprep.subr.bf16.mxu0 0
    %1150 = vmatpush1.bf16.msra.mxu0 0
    %1151 = vmatprep.mubr.bf16.mxu0 0
    %1152 = vmatmul.mubr.bf16.gmra.mrb[0].mxu0 %v1114
    %v1153 = vpop.f32.mrb[0].mxu0
    %v1154 = vadd.f32 0.0, %v1153
    %v1155 = vpop.f32.mrb[0].mxu0
    %v1156 = vpop.f32.mrb[0].mxu0
    %v1157 = vadd.f32 0.0, %v1156
    %v1158 = vpop.f32.mrb[0].mxu0
    %1159 = vdwg.mxu0
    %v1160 = vadd.f32 %v884, %v1154
    %v1161 = vadd.f32 %v887, %v1157
    %1162 = vrot.lane.b32.xlu0 %v343, 104
    %v1163 = vpop.permute.xlu0 %1162
    %1164 = vrot.lane.b32.xlu0 %v348, 104
    %v1165 = vpop.permute.xlu0 %1164
    %v1167 = vsel %vm361, %v1163, 0
    %v1170 = vsel %vm361, %v1165, 0
    %1172 = vmatprep.subr.bf16.mxu0 0
    %1173 = vmatpush1.bf16.xpose.msra.mxu0 %v1170
    %1174 = vmatprep.subr.bf16.mxu0 0
    %1175 = vmatpush1.bf16.xpose.msra.mxu0 0
    %1176 = vmatprep.subr.bf16.mxu0 0
    %1177 = vmatpush1.bf16.xpose.msra.mxu0 0
    %1178 = vmatprep.subr.bf16.mxu0 0
    %1179 = vmatpush1.bf16.xpose.msra.mxu0 0
    %1180 = vmatprep.subr.bf16.mxu0 0
    %1181 = vmatpush1.bf16.xpose.msra.mxu0 0
    %1182 = vmatprep.subr.bf16.mxu0 0
    %1183 = vmatpush1.bf16.xpose.msra.mxu0 0
    %1184 = vmatprep.subr.bf16.mxu0 0
    %1185 = vmatpush1.bf16.xpose.msra.mxu0 0
    %1186 = vmatprep.subr.bf16.mxu0 0
    %1187 = vmatpush1.bf16.xpose.msra.mxu0 0
    %1188 = vmatprep.subr.bf16.mxu0 0
    %1189 = vmatpush1.bf16.xpose.msra.mxu0 0
    %1190 = vmatprep.subr.bf16.mxu0 0
    %1191 = vmatpush1.bf16.xpose.msra.mxu0 0
    %1192 = vmatprep.subr.bf16.mxu0 0
    %1193 = vmatpush1.bf16.xpose.msra.mxu0 0
    %1194 = vmatprep.subr.bf16.mxu0 0
    %1195 = vmatpush1.bf16.xpose.msra.mxu0 0
    %1196 = vmatprep.subr.bf16.mxu0 0
    %1197 = vmatpush1.bf16.xpose.msra.mxu0 0
    %1198 = vmatprep.subr.bf16.mxu0 0
    %1199 = vmatpush1.bf16.xpose.msra.mxu0 0
    %1200 = vmatprep.subr.bf16.mxu0 0
    %1201 = vmatpush1.bf16.xpose.msra.mxu0 0
    %1202 = vmatprep.subr.bf16.mxu0 0
    %1203 = vmatpush1.bf16.xpose.msra.mxu0 0
    %1204 = vmatprep.mubr.bf16.mxu0 0
    %1205 = vmatmul.mubr.bf16.gmra.mrb[0].mxu0 %v1167
    %v1206 = vpop.f32.mrb[0].mxu0
    %v1207 = vadd.f32 %v360, %v1206
    %v1208 = vpop.f32.mrb[0].mxu0
    %v1209 = vpop.f32.mrb[0].mxu0
    %v1210 = vpop.f32.mrb[0].mxu0
    %1211 = vdwg.mxu0
    %1212 = vrot.lane.b32.xlu0 %v344, 104
    %v1213 = vpop.permute.xlu0 %1212
    %1214 = vrot.lane.b32.xlu0 %v349, 104
    %v1215 = vpop.permute.xlu0 %1214
    %v1217 = vsel %vm361, %v1213, 0
    %v1220 = vsel %vm361, %v1215, 0
    %1222 = vmatprep.subr.bf16.mxu0 0
    %1223 = vmatpush1.bf16.xpose.msra.mxu0 %v1220
    %1224 = vmatprep.subr.bf16.mxu0 0
    %1225 = vmatpush1.bf16.xpose.msra.mxu0 0
    %1226 = vmatprep.subr.bf16.mxu0 0
    %1227 = vmatpush1.bf16.xpose.msra.mxu0 0
    %1228 = vmatprep.subr.bf16.mxu0 0
    %1229 = vmatpush1.bf16.xpose.msra.mxu0 0
    %1230 = vmatprep.subr.bf16.mxu0 0
    %1231 = vmatpush1.bf16.xpose.msra.mxu0 0
    %1232 = vmatprep.subr.bf16.mxu0 0
    %1233 = vmatpush1.bf16.xpose.msra.mxu0 0
    %1234 = vmatprep.subr.bf16.mxu0 0
    %1235 = vmatpush1.bf16.xpose.msra.mxu0 0
    %1236 = vmatprep.subr.bf16.mxu0 0
    %1237 = vmatpush1.bf16.xpose.msra.mxu0 0
    %1238 = vmatprep.subr.bf16.mxu0 0
    %1239 = vmatpush1.bf16.xpose.msra.mxu0 0
    %1240 = vmatprep.subr.bf16.mxu0 0
    %1241 = vmatpush1.bf16.xpose.msra.mxu0 0
    %1242 = vmatprep.subr.bf16.mxu0 0
    %1243 = vmatpush1.bf16.xpose.msra.mxu0 0
    %1244 = vmatprep.subr.bf16.mxu0 0
    %1245 = vmatpush1.bf16.xpose.msra.mxu0 0
    %1246 = vmatprep.subr.bf16.mxu0 0
    %1247 = vmatpush1.bf16.xpose.msra.mxu0 0
    %1248 = vmatprep.subr.bf16.mxu0 0
    %1249 = vmatpush1.bf16.xpose.msra.mxu0 0
    %1250 = vmatprep.subr.bf16.mxu0 0
    %1251 = vmatpush1.bf16.xpose.msra.mxu0 0
    %1252 = vmatprep.subr.bf16.mxu0 0
    %1253 = vmatpush1.bf16.xpose.msra.mxu0 0
    %1254 = vmatprep.mubr.bf16.mxu0 0
    %1255 = vmatmul.mubr.bf16.gmra.mrb[0].mxu0 %v1217
    %v1256 = vpop.f32.mrb[0].mxu0
    %v1257 = vadd.f32 %v360, %v1256
    %v1258 = vpop.f32.mrb[0].mxu0
    %v1259 = vpop.f32.mrb[0].mxu0
    %v1260 = vpop.f32.mrb[0].mxu0
    %1261 = vdwg.mxu0
    %v1262 = vsel %vm361, %v1207, -inf
    %1263 = vmax.xlane.f32.xlu0 %v1262
    %v1264 = vpop.xlane.xlu0 %1263
    %v1265 = vsel %vm361, %v1257, -inf
    %1266 = vmax.xlane.f32.xlu0 %v1265
    %v1267 = vpop.xlane.xlu0 %1266
    %v1268 = vsub.f32 %v1207, %v1264
    %v1269 = vsub.f32 %v1257, %v1267
    %v1270 = vmul.f32 %v1268, 1.442695
    %v1271 = vpow.pop %v1270
    %v1272 = vmul.f32 %v1269, 1.442695
    %v1273 = vpow.pop %v1272
    %v1274 = vsel %vm361, %v1271, 0.0
    %1275 = vadd.xlane.f32.xlu0 %v1274
    %v1276 = vpop.xlane.xlu0 %1275
    %v1277 = vsel %vm361, %v1273, 0.0
    %1278 = vadd.xlane.f32.xlu0 %v1277
    %v1279 = vpop.xlane.xlu0 %1278
    %v1280 = vrcp.pop %v1276
    %v1281 = vrcp.pop %v1279
    %v1282 = vmul.f32 %v1271, %v1280
    %v1283 = vmul.f32 %v1273, %v1281
    %v1284 = vpack.c.bf16 %v1282, %v1282
    %v1285 = vpack.c.bf16 %v1283, %v1283
    %1286 = vrot.lane.b32.xlu0 %v353, 104
    %v1287 = vpop.permute.xlu0 %1286
    %v1289 = vsel %vm361, %v1284, 0
    %v1292 = vsel %vm481, %v1287, 0
    %1294 = vmatprep.subr.bf16.mxu0 0
    %1295 = vmatpush1.bf16.msra.mxu0 %v1292
    %1296 = vmatprep.subr.bf16.mxu0 0
    %1297 = vmatpush1.bf16.msra.mxu0 0
    %1298 = vmatprep.subr.bf16.mxu0 0
    %1299 = vmatpush1.bf16.msra.mxu0 0
    %1300 = vmatprep.subr.bf16.mxu0 0
    %1301 = vmatpush1.bf16.msra.mxu0 0
    %1302 = vmatprep.subr.bf16.mxu0 0
    %1303 = vmatpush1.bf16.msra.mxu0 0
    %1304 = vmatprep.subr.bf16.mxu0 0
    %1305 = vmatpush1.bf16.msra.mxu0 0
    %1306 = vmatprep.subr.bf16.mxu0 0
    %1307 = vmatpush1.bf16.msra.mxu0 0
    %1308 = vmatprep.subr.bf16.mxu0 0
    %1309 = vmatpush1.bf16.msra.mxu0 0
    %1310 = vmatprep.subr.bf16.mxu0 0
    %1311 = vmatpush1.bf16.msra.mxu0 0
    %1312 = vmatprep.subr.bf16.mxu0 0
    %1313 = vmatpush1.bf16.msra.mxu0 0
    %1314 = vmatprep.subr.bf16.mxu0 0
    %1315 = vmatpush1.bf16.msra.mxu0 0
    %1316 = vmatprep.subr.bf16.mxu0 0
    %1317 = vmatpush1.bf16.msra.mxu0 0
    %1318 = vmatprep.subr.bf16.mxu0 0
    %1319 = vmatpush1.bf16.msra.mxu0 0
    %1320 = vmatprep.subr.bf16.mxu0 0
    %1321 = vmatpush1.bf16.msra.mxu0 0
    %1322 = vmatprep.subr.bf16.mxu0 0
    %1323 = vmatpush1.bf16.msra.mxu0 0
    %1324 = vmatprep.subr.bf16.mxu0 0
    %1325 = vmatpush1.bf16.msra.mxu0 0
    %1326 = vmatprep.mubr.bf16.mxu0 0
    %1327 = vmatmul.mubr.bf16.gmra.mrb[0].mxu0 %v1289
    %v1328 = vpop.f32.mrb[0].mxu0
    %v1329 = vadd.f32 0.0, %v1328
    %v1330 = vpop.f32.mrb[0].mxu0
    %v1331 = vpop.f32.mrb[0].mxu0
    %v1332 = vpop.f32.mrb[0].mxu0
    %1333 = vdwg.mxu0
    %1334 = vrot.lane.b32.xlu0 %v354, 104
    %v1335 = vpop.permute.xlu0 %1334
    %v1337 = vsel %vm361, %v1285, 0
    %v1340 = vsel %vm481, %v1335, 0
    %1342 = vmatprep.subr.bf16.mxu0 0
    %1343 = vmatpush1.bf16.msra.mxu0 %v1340
    %1344 = vmatprep.subr.bf16.mxu0 0
    %1345 = vmatpush1.bf16.msra.mxu0 0
    %1346 = vmatprep.subr.bf16.mxu0 0
    %1347 = vmatpush1.bf16.msra.mxu0 0
    %1348 = vmatprep.subr.bf16.mxu0 0
    %1349 = vmatpush1.bf16.msra.mxu0 0
    %1350 = vmatprep.subr.bf16.mxu0 0
    %1351 = vmatpush1.bf16.msra.mxu0 0
    %1352 = vmatprep.subr.bf16.mxu0 0
    %1353 = vmatpush1.bf16.msra.mxu0 0
    %1354 = vmatprep.subr.bf16.mxu0 0
    %1355 = vmatpush1.bf16.msra.mxu0 0
    %1356 = vmatprep.subr.bf16.mxu0 0
    %1357 = vmatpush1.bf16.msra.mxu0 0
    %1358 = vmatprep.subr.bf16.mxu0 0
    %1359 = vmatpush1.bf16.msra.mxu0 0
    %1360 = vmatprep.subr.bf16.mxu0 0
    %1361 = vmatpush1.bf16.msra.mxu0 0
    %1362 = vmatprep.subr.bf16.mxu0 0
    %1363 = vmatpush1.bf16.msra.mxu0 0
    %1364 = vmatprep.subr.bf16.mxu0 0
    %1365 = vmatpush1.bf16.msra.mxu0 0
    %1366 = vmatprep.subr.bf16.mxu0 0
    %1367 = vmatpush1.bf16.msra.mxu0 0
    %1368 = vmatprep.subr.bf16.mxu0 0
    %1369 = vmatpush1.bf16.msra.mxu0 0
    %1370 = vmatprep.subr.bf16.mxu0 0
    %1371 = vmatpush1.bf16.msra.mxu0 0
    %1372 = vmatprep.subr.bf16.mxu0 0
    %1373 = vmatpush1.bf16.msra.mxu0 0
    %1374 = vmatprep.mubr.bf16.mxu0 0
    %1375 = vmatmul.mubr.bf16.gmra.mrb[0].mxu0 %v1337
    %v1376 = vpop.f32.mrb[0].mxu0
    %v1377 = vadd.f32 0.0, %v1376
    %v1378 = vpop.f32.mrb[0].mxu0
    %v1379 = vpop.f32.mrb[0].mxu0
    %v1380 = vpop.f32.mrb[0].mxu0
    %1381 = vdwg.mxu0
    %v1382 = vpack.c.bf16 %v1377, %v1329
    %s1383 = scalar_lea.vmem %s9, 12
    %v1384 = vld [vmem:[%s1383] sm:$0xf]
    %v1386 = vsel %vm361, %v1382, 0
    %v1389 = vsel %vm481, %v1384, 0
    %1391 = vmatprep.subr.bf16.mxu0 0
    %1392 = vmatpush1.bf16.msra.mxu0 %v1389
    %1393 = vmatprep.subr.bf16.mxu0 0
    %1394 = vmatpush1.bf16.msra.mxu0 0
    %1395 = vmatprep.subr.bf16.mxu0 0
    %1396 = vmatpush1.bf16.msra.mxu0 0
    %1397 = vmatprep.subr.bf16.mxu0 0
    %1398 = vmatpush1.bf16.msra.mxu0 0
    %1399 = vmatprep.subr.bf16.mxu0 0
    %1400 = vmatpush1.bf16.msra.mxu0 0
    %1401 = vmatprep.subr.bf16.mxu0 0
    %1402 = vmatpush1.bf16.msra.mxu0 0
    %1403 = vmatprep.subr.bf16.mxu0 0
    %1404 = vmatpush1.bf16.msra.mxu0 0
    %1405 = vmatprep.subr.bf16.mxu0 0
    %1406 = vmatpush1.bf16.msra.mxu0 0
    %1407 = vmatprep.subr.bf16.mxu0 0
    %1408 = vmatpush1.bf16.msra.mxu0 0
    %1409 = vmatprep.subr.bf16.mxu0 0
    %1410 = vmatpush1.bf16.msra.mxu0 0
    %1411 = vmatprep.subr.bf16.mxu0 0
    %1412 = vmatpush1.bf16.msra.mxu0 0
    %1413 = vmatprep.subr.bf16.mxu0 0
    %1414 = vmatpush1.bf16.msra.mxu0 0
    %1415 = vmatprep.subr.bf16.mxu0 0
    %1416 = vmatpush1.bf16.msra.mxu0 0
    %1417 = vmatprep.subr.bf16.mxu0 0
    %1418 = vmatpush1.bf16.msra.mxu0 0
    %1419 = vmatprep.subr.bf16.mxu0 0
    %1420 = vmatpush1.bf16.msra.mxu0 0
    %1421 = vmatprep.subr.bf16.mxu0 0
    %1422 = vmatpush1.bf16.msra.mxu0 0
    %1423 = vmatprep.mubr.bf16.mxu0 0
    %1424 = vmatmul.mubr.bf16.gmra.mrb[0].mxu0 %v1386
    %v1425 = vpop.f32.mrb[0].mxu0
    %v1426 = vadd.f32 0.0, %v1425
    %v1427 = vpop.f32.mrb[0].mxu0
    %v1428 = vpop.f32.mrb[0].mxu0
    %v1429 = vadd.f32 0.0, %v1428
    %v1430 = vpop.f32.mrb[0].mxu0
    %1431 = vdwg.mxu0
    %v1432 = vadd.f32 %v1160, %v1426
    %v1433 = vadd.f32 %v1161, %v1429
    %v1434 = vld [vmem:[%s10] sm:$0x1]
    %v1436 = vlaneseq
    %v1437 = vshrl.u32 %v1436, 7
    %v1438 = vsub.s32 0, %v1437
    %v1439 = vrot.slane %v1434, %v1438
    %v1441 = vadd.f32 %v1432, %v1439
    %v1442 = vadd.f32 %v1433, %v1439
    %v1443 = vadd.f32 %v93, %v1441
    %v1444 = vadd.f32 %v94, %v1442
    %v1445 = vsel %vm95, %v1443, 0.0
    %1446 = vadd.xlane.f32.xlu0 %v1445
    %v1447 = vpop.xlane.xlu0 %1446
    %v1448 = vsel %vm95, %v1444, 0.0
    %1449 = vadd.xlane.f32.xlu0 %v1448
    %v1450 = vpop.xlane.xlu0 %1449
    %v1451 = vmul.f32 %v1447, %v102
    %v1452 = vmul.f32 %v1450, %v102
    %v1453 = vsub.f32 %v1443, %v1451
    %v1454 = vsub.f32 %v1444, %v1452
    %v1455 = vmul.f32 %v1453, %v1453
    %v1456 = vmul.f32 %v1454, %v1454
    %v1457 = vsel %vm95, %v1455, 0.0
    %1458 = vadd.xlane.f32.xlu0 %v1457
    %v1459 = vpop.xlane.xlu0 %1458
    %v1460 = vsel %vm95, %v1456, 0.0
    %1461 = vadd.xlane.f32.xlu0 %v1460
    %v1462 = vpop.xlane.xlu0 %1461
    %v1463 = vmul.f32 %v1459, %v102
    %v1464 = vmul.f32 %v1462, %v102
    %v1465 = vadd.f32 %v1463, 1e-05
    %v1466 = vadd.f32 %v1464, 1e-05
    %v1467 = vrsqrt.pop %v1465
    %v1468 = vrsqrt.pop %v1466
    %v1469 = vmul.f32 %v1453, %v1467
    %v1470 = vmul.f32 %v1454, %v1468
    %v1471 = vld [vmem:[%s11] sm:$0x1]
    %v1473 = vlaneseq
    %v1474 = vshrl.u32 %v1473, 7
    %v1475 = vsub.s32 0, %v1474
    %v1476 = vrot.slane %v1471, %v1475
    %v1478 = vmul.f32 %v1469, %v1476
    %v1479 = vmul.f32 %v1470, %v1476
    %v1480 = vld [vmem:[%s12] sm:$0x1]
    %v1482 = vlaneseq
    %v1483 = vshrl.u32 %v1482, 7
    %v1484 = vsub.s32 0, %v1483
    %v1485 = vrot.slane %v1480, %v1484
    %v1487 = vadd.f32 %v1478, %v1485
    %v1488 = vadd.f32 %v1479, %v1485
    %v1489 = vpack.c.bf16 %v1488, %v1487
    %v1490 = vld [vmem:[%s14] sm:$0x1]
    %v1491 = vld [vmem:[%s13] sm:$0xf]
    %v1492 = vld [vmem:[%s13 + $0x4] sm:$0xf]
    %v1493 = vld [vmem:[%s13 + $0x8] sm:$0xf]
    %v1494 = vld [vmem:[%s13 + $0xc] sm:$0xf]
    %v1496 = vlaneseq
    %v1497 = vshrl.u32 %v1496, 7
    %v1498 = vsub.s32 0, %v1497
    %v1499 = vrot.slane %v1490, %v1498
    %v1505 = vunpack.c.l.b16 %v1491
    %v1506 = vunpack.c.l.b16 %v1492
    %v1507 = vunpack.c.l.b16 %v1493
    %v1508 = vunpack.c.l.b16 %v1494
    %v1509 = vpack.c.b16 %v1506, %v1505
    %v1510 = vpack.c.b16 %v1508, %v1507
    %v1514 = vsel %vm95, %v1489, 0
    %1516 = vmatprep.subr.bf16.mxu0 0
    %1517 = vmatpush1.bf16.msra.mxu0 %v1509
    %1518 = vmatprep.subr.bf16.mxu0 0
    %1519 = vmatpush1.bf16.msra.mxu0 %v1510
    %1520 = vmatprep.subr.bf16.mxu0 0
    %1521 = vmatpush1.bf16.msra.mxu0 0
    %1522 = vmatprep.subr.bf16.mxu0 0
    %1523 = vmatpush1.bf16.msra.mxu0 0
    %1524 = vmatprep.subr.bf16.mxu0 0
    %1525 = vmatpush1.bf16.msra.mxu0 0
    %1526 = vmatprep.subr.bf16.mxu0 0
    %1527 = vmatpush1.bf16.msra.mxu0 0
    %1528 = vmatprep.subr.bf16.mxu0 0
    %1529 = vmatpush1.bf16.msra.mxu0 0
    %1530 = vmatprep.subr.bf16.mxu0 0
    %1531 = vmatpush1.bf16.msra.mxu0 0
    %1532 = vmatprep.subr.bf16.mxu0 0
    %1533 = vmatpush1.bf16.msra.mxu0 0
    %1534 = vmatprep.subr.bf16.mxu0 0
    %1535 = vmatpush1.bf16.msra.mxu0 0
    %1536 = vmatprep.subr.bf16.mxu0 0
    %1537 = vmatpush1.bf16.msra.mxu0 0
    %1538 = vmatprep.subr.bf16.mxu0 0
    %1539 = vmatpush1.bf16.msra.mxu0 0
    %1540 = vmatprep.subr.bf16.mxu0 0
    %1541 = vmatpush1.bf16.msra.mxu0 0
    %1542 = vmatprep.subr.bf16.mxu0 0
    %1543 = vmatpush1.bf16.msra.mxu0 0
    %1544 = vmatprep.subr.bf16.mxu0 0
    %1545 = vmatpush1.bf16.msra.mxu0 0
    %1546 = vmatprep.subr.bf16.mxu0 0
    %1547 = vmatpush1.bf16.msra.mxu0 0
    %1548 = vmatprep.mubr.bf16.mxu0 0
    %1549 = vmatmul.mubr.bf16.gmra.mrb[0].mxu0 %v1514
    %v1550 = vpop.f32.mrb[0].mxu0
    %v1551 = vadd.f32 %v1499, %v1550
    %v1552 = vpop.f32.mrb[0].mxu0
    %v1553 = vpop.f32.mrb[0].mxu0
    %v1554 = vadd.f32 %v1499, %v1553
    %v1555 = vpop.f32.mrb[0].mxu0
    %1556 = vdwg.mxu0
    %v1557 = vmul.f32 %v1551, 1.702
    %v1558 = vmul.f32 %v1554, 1.702
    %v1559 = vxor.u32 %v1557, 2147483648
    %v1560 = vxor.u32 %v1558, 2147483648
    %v1561 = vmul.f32 %v1559, 1.442695
    %v1562 = vpow.pop %v1561
    %v1563 = vmul.f32 %v1560, 1.442695
    %v1564 = vpow.pop %v1563
    %v1565 = vadd.f32 %v1562, 1.0
    %v1566 = vadd.f32 %v1564, 1.0
    %v1567 = vrcp.pop %v1565
    %v1568 = vmul.f32 1.0, %v1567
    %v1569 = vrcp.pop %v1566
    %v1570 = vmul.f32 1.0, %v1569
    %v1571 = vmul.f32 %v1551, %v1568
    %v1572 = vmul.f32 %v1554, %v1570
    %v1573 = vpack.c.bf16 %v1572, %v1571
    %v1574 = vld [vmem:[%s15] sm:$0xf]
    %v1575 = vld [vmem:[%s15 + $0x4] sm:$0xf]
    %v1576 = vld [vmem:[%s15 + $0x8] sm:$0xf]
    %v1577 = vld [vmem:[%s15 + $0xc] sm:$0xf]
    %v1578 = vld [vmem:[%s15 + $0x10] sm:$0xf]
    %v1579 = vld [vmem:[%s15 + $0x14] sm:$0xf]
    %v1580 = vld [vmem:[%s15 + $0x18] sm:$0xf]
    %v1581 = vld [vmem:[%s15 + $0x1c] sm:$0xf]
    %v1582 = vld [vmem:[%s15 + $0x20] sm:$0xf]
    %v1583 = vld [vmem:[%s15 + $0x24] sm:$0xf]
    %v1584 = vld [vmem:[%s15 + $0x28] sm:$0xf]
    %v1585 = vld [vmem:[%s15 + $0x2c] sm:$0xf]
    %v1586 = vld [vmem:[%s15 + $0x30] sm:$0xf]
    %v1587 = vld [vmem:[%s15 + $0x34] sm:$0xf]
    %v1588 = vld [vmem:[%s15 + $0x38] sm:$0xf]
    %v1589 = vld [vmem:[%s15 + $0x3c] sm:$0xf]
    %v1590 = vld [vmem:[%s16] sm:$0x1]
    %v1592 = vlaneseq
    %v1593 = vshrl.u32 %v1592, 7
    %v1594 = vsub.s32 0, %v1593
    %v1595 = vrot.slane %v1590, %v1594
    %v1613 = vunpack.c.l.b16 %v1574
    %v1614 = vunpack.c.l.b16 %v1575
    %v1615 = vunpack.c.l.b16 %v1576
    %v1616 = vunpack.c.l.b16 %v1577
    %v1617 = vunpack.c.l.b16 %v1578
    %v1618 = vunpack.c.l.b16 %v1579
    %v1619 = vunpack.c.l.b16 %v1580
    %v1620 = vunpack.c.l.b16 %v1581
    %v1621 = vunpack.c.l.b16 %v1582
    %v1622 = vunpack.c.l.b16 %v1583
    %v1623 = vunpack.c.l.b16 %v1584
    %v1624 = vunpack.c.l.b16 %v1585
    %v1625 = vunpack.c.l.b16 %v1586
    %v1626 = vunpack.c.l.b16 %v1587
    %v1627 = vunpack.c.l.b16 %v1588
    %v1628 = vunpack.c.l.b16 %v1589
    %v1629 = vpack.c.b16 %v1614, %v1613
    %v1630 = vpack.c.b16 %v1616, %v1615
    %v1631 = vpack.c.b16 %v1618, %v1617
    %v1632 = vpack.c.b16 %v1620, %v1619
    %v1633 = vpack.c.b16 %v1622, %v1621
    %v1634 = vpack.c.b16 %v1624, %v1623
    %v1635 = vpack.c.b16 %v1626, %v1625
    %v1636 = vpack.c.b16 %v1628, %v1627
    %1645 = vmatprep.subr.bf16.mxu0 0
    %1646 = vmatpush1.bf16.msra.mxu0 %v1629
    %1647 = vmatprep.subr.bf16.mxu0 0
    %1648 = vmatpush1.bf16.msra.mxu0 %v1630
    %1649 = vmatprep.subr.bf16.mxu0 0
    %1650 = vmatpush1.bf16.msra.mxu0 %v1631
    %1651 = vmatprep.subr.bf16.mxu0 0
    %1652 = vmatpush1.bf16.msra.mxu0 %v1632
    %1653 = vmatprep.subr.bf16.mxu0 0
    %1654 = vmatpush1.bf16.msra.mxu0 %v1633
    %1655 = vmatprep.subr.bf16.mxu0 0
    %1656 = vmatpush1.bf16.msra.mxu0 %v1634
    %1657 = vmatprep.subr.bf16.mxu0 0
    %1658 = vmatpush1.bf16.msra.mxu0 %v1635
    %1659 = vmatprep.subr.bf16.mxu0 0
    %1660 = vmatpush1.bf16.msra.mxu0 %v1636
    %1661 = vmatprep.subr.bf16.mxu0 0
    %1662 = vmatpush1.bf16.msra.mxu0 0
    %1663 = vmatprep.subr.bf16.mxu0 0
    %1664 = vmatpush1.bf16.msra.mxu0 0
    %1665 = vmatprep.subr.bf16.mxu0 0
    %1666 = vmatpush1.bf16.msra.mxu0 0
    %1667 = vmatprep.subr.bf16.mxu0 0
    %1668 = vmatpush1.bf16.msra.mxu0 0
    %1669 = vmatprep.subr.bf16.mxu0 0
    %1670 = vmatpush1.bf16.msra.mxu0 0
    %1671 = vmatprep.subr.bf16.mxu0 0
    %1672 = vmatpush1.bf16.msra.mxu0 0
    %1673 = vmatprep.subr.bf16.mxu0 0
    %1674 = vmatpush1.bf16.msra.mxu0 0
    %1675 = vmatprep.subr.bf16.mxu0 0
    %1676 = vmatpush1.bf16.msra.mxu0 0
    %1677 = vmatprep.mubr.bf16.mxu0 0
    %1678 = vmatmul.mubr.bf16.gmra.mrb[0].mxu0 %v1573
    %v1679 = vpop.f32.mrb[0].mxu0
    %v1680 = vadd.f32 %v1595, %v1679
    %v1681 = vpop.f32.mrb[0].mxu0
    %v1682 = vpop.f32.mrb[0].mxu0
    %v1683 = vadd.f32 %v1595, %v1682
    %v1684 = vpop.f32.mrb[0].mxu0
    %1685 = vdwg.mxu0
    %v1686 = vadd.f32 %v1443, %v1680
    %v1687 = vadd.f32 %v1444, %v1683
    %1688 = vst.msk [vmem:[#allocation8] sm:$0xff] %vm95, %v1686
    %1689 = vst.msk [vmem:[#allocation8 + $0x8] sm:$0xff] %vm95, %v1687
    // Predicated region
    $region82: #{tpu_custom_call.1} parent=1 // pred_check
      _
    $region83: #{tpu_custom_call.1} parent=1 // pred_check_branch
      %1691 = sbr.rel (0) target = $region85
    $region84: #{tpu_custom_call.1} parent=1 // pred_region
      %s1693 = ssub.s32 256, 256
      %1694 = vsyncadd [#allocation4], %s1693
      %s1695 = sshll.u32 [#allocation8], 4
      %s1696 = int_to_ptr.vmem [resolvable:$true] %s1695
      %1701 = dma.vmem_to_hbm [thread:$0]  %s1696, 256, %s17, [#allocation4], 128, 128, 8
    $region85: #{tpu_custom_call.1} parent=1 // pred_fallthru
      _
    // Predicated region
    $region86: #{tpu_custom_call.1} parent=1 // pred_check
      _
    $region87: #{tpu_custom_call.1} parent=1 // pred_check_branch
      %1703 = sbr.rel (0) target = $region89
    $region88: #{tpu_custom_call.1} parent=1 // pred_region
      %1704 = dma.done [#allocation4], 256
    $region89: #{tpu_custom_call.1} parent=1 // pred_fallthru
      _
    %1705 = vsyncpa [#allocation3], 1
    %1706 = vsyncpa [#allocation6], 1
    %1707 = vsyncpa [#allocation4], 1

</llo_original>
